<compile_context>
chip_gen: v6e
topology: v6e:2x2x1
jax: 0.10.0
libtpu: 0.0.40
codegen_flags: <defaults>
</compile_context>

<pallas_src>
import math

import jax
import jax.numpy as jnp
from jax.experimental import pallas as pl
from jax.experimental.pallas import tpu as pltpu

LN_EPS = 1e-12


def _gelu(x):
    # Exact (erf-based) GELU, as in the reference implementation.
    return x * 0.5 * (1.0 + jax.lax.erf(x / math.sqrt(2.0)))


# ----------------------------------------------------------------------------
# Kernel
# ----------------------------------------------------------------------------
def _make_encoder_kernel(num_heads, dh_p, real_hidden, hidden_pad, alpha,
                         compute_dtype):
    """All layers of the BSARec encoder for one batch tile (grid axis 1 = layer)."""
    f32 = jnp.float32
    nh = num_heads
    inv_h = 1.0 / float(real_hidden)

    def layer_norm(x, gamma, beta):
        # LayerNorm over the REAL hidden dim only.  Padded channels are zero and
        # gamma/beta are zero-padded, so padded channels stay exactly zero.
        u = jnp.sum(x, axis=-1, keepdims=True) * inv_h
        xc = x - u
        ssq = jnp.sum(xc * xc, axis=-1, keepdims=True)
        if hidden_pad:
            ssq = jnp.maximum(ssq - float(hidden_pad) * (u * u), 0.0)
        return xc * jax.lax.rsqrt(ssq * inv_h + LN_EPS) * gamma + beta

    def kernel(x_ref, lp_ref, beta2_ref, ln1_g_ref, ln1_b_ref,
               wqkv_ref, bqkv_ref, wo_ref, bo_ref, ln2_g_ref, ln2_b_ref,
               w1_ref, b1_ref, w2_ref, b2_ref, ln3_g_ref, ln3_b_ref,
               out_ref, h_sc):
        layer = pl.program_id(1)

        # Load the encoder input into the resident VMEM state on the first layer.
        @pl.when(layer == 0)
        def _():
            h_sc[...] = x_ref[...].astype(f32)

        bt, seq, hid = h_sc.shape        # hid = padded hidden (multiple of 128)
        rows = bt * seq

        x3 = h_sc[...]                   # (Bt, S, Hp) f32 layer input
        x3m = x3.astype(compute_dtype)
        x2m = x3m.reshape(rows, hid)     # (Bt*S, Hp) matmul operand

        # ---------------- FrequencyLayer (dsp branch) -----------------------
        # low = L @ x along the sequence axis; L already contains the truncated
        # orthonormal rFFT projection and any per-user per-bin gains.
        low = jnp.einsum('bts,bsh->bth', lp_ref[...], x3m,
                         preferred_element_type=f32)
        seq_fft = low + beta2_ref[...] * (x3 - low)        # beta2 = sqrt_beta**2
        dsp = layer_norm(seq_fft + x3, ln1_g_ref[...], ln1_b_ref[...])

        # -------------- MultiHeadAttention (gsp branch) ----------------------
        # TODO(synk): no attention_mask is applied, matching the provided
        # forward signature (only user_freq_weights is threaded through).
        qkv = jnp.dot(x2m, wqkv_ref[...], preferred_element_type=f32) + bqkv_ref[...]
        qkv = qkv.astype(compute_dtype).reshape(bt, seq, 3 * hid)
        q = qkv[:, :, :hid]              # 1/sqrt(dh) already folded into wq/bq
        k = qkv[:, :, hid:2 * hid]
        v = qkv[:, :, 2 * hid:]

        attn = jnp.zeros((rows, hid), f32)
        for h in range(nh):              # static unroll; nh is small
            sl = slice(h * dh_p, (h + 1) * dh_p)
            scores = jnp.einsum('bqd,bkd->bqk', q[:, :, sl], k[:, :, sl],
                                preferred_element_type=f32)
            scores = scores - jnp.max(scores, axis=-1, keepdims=True)
            probs = jnp.exp(scores)
            probs = probs * pl.reciprocal(
                jnp.sum(probs, axis=-1, keepdims=True), approx=True)
            ctx = jnp.einsum('bqk,bkd->bqd', probs.astype(compute_dtype),
                             v[:, :, sl], preferred_element_type=f32)
            # Fold this head straight into the output projection (no lane concat).
            attn = attn + jnp.dot(ctx.astype(compute_dtype).reshape(rows, dh_p),
                                  wo_ref[h], preferred_element_type=f32)
        attn = attn + bo_ref[...]
        gsp = layer_norm(attn.reshape(bt, seq, hid) + x3,
                         ln2_g_ref[...], ln2_b_ref[...])

        # ----------------------- mix (alpha) ---------------------------------
        h_mix = alpha * dsp + (1.0 - alpha) * gsp          # (Bt, S, Hp) f32

        # ------------------------ FeedForward --------------------------------
        hm2 = h_mix.reshape(rows, hid).astype(compute_dtype)
        inter = _gelu(jnp.dot(hm2, w1_ref[...], preferred_element_type=f32)
                      + b1_ref[...])
        ff = jnp.dot(inter.astype(compute_dtype), w2_ref[...],
                     preferred_element_type=f32) + b2_ref[...]
        out = layer_norm(ff.reshape(bt, seq, hid) + h_mix,
                         ln3_g_ref[...], ln3_b_ref[...])

        h_sc[...] = out                  # stays resident for the next layer

        @pl.when(layer == pl.num_programs(1) - 1)
        def _():                         # single lane-dense writeback per tile
            out_ref[...] = out.astype(out_ref.dtype)

    return kernel


# ----------------------------------------------------------------------------
# Host-side helpers
# ----------------------------------------------------------------------------
_PARAM_ORDER = ("beta2", "ln1_g", "ln1_b",
                "wqkv", "bqkv", "wo", "bo", "ln2_g", "ln2_b",
                "w1", "b1", "w2", "b2", "ln3_g", "ln3_b")


def _pad_axis(a, axis, new_size):
    pad = new_size - a.shape[axis]
    if pad <= 0:
        return a
    widths = [(0, 0)] * a.ndim
    widths[axis] = (0, pad)
    return jnp.pad(a, widths)


def _pad_last(a, new_size):
    return _pad_axis(a, a.ndim - 1, new_size)


def _padded_dims(hidden, intermediate, num_heads):
    """Pad per-head dim so the padded hidden is a multiple of 128."""
    dh = hidden // num_heads
    quantum = 128 // math.gcd(num_heads, 128)
    dh_p = ((dh + quantum - 1) // quantum) * quantum
    hp = num_heads * dh_p                       # multiple of 128 by construction
    ip = ((intermediate + 127) // 128) * 128
    return hp, ip, dh_p


def _build_lowpass_factors(seq_len, c):
    """P (S, r) with orthonormal real Fourier columns for the kept rFFT bins.

    P @ P.T == irfft(keep_low(rfft(x, ortho)), ortho); also returns the rfft bin
    index of every column (to expand per-user per-bin gains).
    """
    nf = seq_len // 2 + 1
    c_keep = min(c // 2 + 1, nf)                # FrequencyLayer: self.c = args.c // 2 + 1
    s = jnp.arange(seq_len, dtype=jnp.float32)
    cols = [jnp.full((seq_len,), 1.0 / math.sqrt(seq_len), jnp.float32)]
    bins = [0]
    for k in range(1, c_keep):
        ang = (2.0 * math.pi * k / seq_len) * s
        if seq_len % 2 == 0 and k == seq_len // 2:      # Nyquist bin (real only)
            cols.append(jnp.cos(ang) / math.sqrt(seq_len))
            bins.append(k)
        else:
            amp = math.sqrt(2.0 / seq_len)
            cols.append(amp * jnp.cos(ang)); bins.append(k)
            cols.append(amp * jnp.sin(ang)); bins.append(k)
    P = jnp.stack(cols, axis=1).astype(jnp.float32)      # (S, r)
    return P, jnp.asarray(bins, dtype=jnp.int32)


def _build_lowpass_operator(seq_len, c, user_freq_weights, batch_tile):
    """Dense (batched) low-pass operator L with gains folded in, host-side."""
    P, bins = _build_lowpass_factors(seq_len, c)
    if user_freq_weights is None:
        L = P @ P.T                                       # (S, S)
        return jnp.broadcast_to(L[None], (batch_tile, seq_len, seq_len)), False
    # TODO(synk): BSARecBlock source not provided; user_freq_weights is
    # interpreted as per-user real gains on the kept rFFT bins, shape (B, S//2+1).
    g = user_freq_weights.astype(jnp.float32)[:, bins]    # (B, r)
    L = jnp.einsum('tr,br,sr->bts', P, g, P)              # (B, S, S)
    return L, True


def _prepare_params(params, num_heads, hp, ip, dh_p, compute_dtype):
    f32 = jnp.float32
    H = params["wq"].shape[0]
    nh = num_heads
    dh = H // nh
    scale = 1.0 / math.sqrt(dh)                 # folded into wq/bq

    def pad_head_cols(w):
        # (in, H) -> (in, nh*dh_p): per-head zero pad of the head (column) dim.
        w = w.reshape(w.shape[0], nh, dh)
        w = _pad_axis(w, 2, dh_p)
        return w.reshape(w.shape[0], nh * dh_p)

    wq = pad_head_cols(params["wq"].astype(f32) * scale)
    wk = pad_head_cols(params["wk"].astype(f32))
    wv = pad_head_cols(params["wv"].astype(f32))
    wqkv = _pad_axis(jnp.concatenate([wq, wk, wv], axis=1), 0, hp)     # (Hp, 3Hp)

    bq = pad_head_cols(params["bq"].astype(f32) * scale)
    bk = pad_head_cols(params["bk"].astype(f32))
    bv = pad_head_cols(params["bv"].astype(f32))
    bqkv = jnp.concatenate([bq, bk, bv], axis=1)                        # (1, 3Hp)

    wo = params["wo"].astype(f32).reshape(nh, dh, H)
    wo = _pad_axis(_pad_axis(wo, 1, dh_p), 2, hp)                       # (nh, dh_p, Hp)

    w1 = _pad_axis(_pad_last(params["w1"].astype(f32), ip), 0, hp)      # (Hp, Ip)
    w2 = _pad_axis(_pad_last(params["w2"].astype(f32), hp), 0, ip)      # (Ip, Hp)

    return {
        "beta2": _pad_last(params["sqrt_beta"].astype(f32) ** 2, hp),   # hoisted square
        "ln1_g": _pad_last(params["ln1_g"].astype(f32), hp),
        "ln1_b": _pad_last(params["ln1_b"].astype(f32), hp),
        "wqkv": wqkv.astype(compute_dtype),
        "bqkv": bqkv,
        "wo": wo.astype(compute_dtype),
        "bo": _pad_last(params["bo"].astype(f32), hp),
        "ln2_g": _pad_last(params["ln2_g"].astype(f32), hp),
        "ln2_b": _pad_last(params["ln2_b"].astype(f32), hp),
        "w1": w1.astype(compute_dtype),
        "b1": _pad_last(params["b1"].astype(f32), ip),
        "w2": w2.astype(compute_dtype),
        "b2": _pad_last(params["b2"].astype(f32), hp),
        "ln3_g": _pad_last(params["ln3_g"].astype(f32), hp),
        "ln3_b": _pad_last(params["ln3_b"].astype(f32), hp),
    }


def _vmem_capacity_bytes():
    cap = 128 * 1024 * 1024
    try:
        cap = int(getattr(pltpu.get_tpu_info(), "vmem_capacity_bytes", cap))
    except Exception:
        pass
    return cap


def _is_multi_tensorcore():
    try:
        kind = jax.devices()[0].device_kind.lower()
    except Exception:
        return False
    return "v7" in kind


def _pick_batch_tile(batch, seq_len, hp, ip, prepared, lp_itemsize, x_itemsize,
                     per_user, multi_tc, vmem_limit):
    # Bigger tiles amortize the ~0.35us per-step overhead; only force >=2 batch
    # grid steps on multi-TensorCore chips (megacore sharding of the parallel axis).
    bt = max(1, min(batch, max(1, 512 // max(seq_len, 1))))
    if multi_tc:
        while bt > 1 and batch // bt < 2:
            bt -= 1
    while batch % bt != 0:
        bt -= 1

    weight_bytes = sum(int(p.size) * p.dtype.itemsize for p in prepared.values())

    def estimate(b):
        f32b = 4
        t = b * seq_len * hp * f32b                    # resident h_sc scratch
        t += 4 * b * seq_len * hp * x_itemsize         # double-buffered x + out blocks
        t += (2 if per_user else 1) * b * seq_len * seq_len * lp_itemsize
        t += weight_bytes                              # single-buffered weights
        t += 2 * b * seq_len * seq_len * f32b          # live attention scores/probs
        t += b * seq_len * max(3 * hp, ip) * f32b      # live qkv / FFN intermediate
        return t

    while bt > 1 and estimate(bt) > 0.7 * vmem_limit:
        bt -= 1
        while batch % bt != 0:
            bt -= 1
    return bt


def _encoder_blocks(x_pad, lp, prepared, *, num_layers, num_heads, dh_p,
                    real_hidden, alpha, batch_tile, compute_dtype, per_user,
                    vmem_limit):
    B, S, Hp = x_pad.shape
    bt = batch_tile
    assert B % bt == 0, "batch_tile must divide batch"

    x_map = lambda b, l: (b, 0, 0)

    def build(use_single_buffer):
        def const_spec(arr):
            nd = arr.ndim

            def idx(b, l, _nd=nd):
                return (0,) * _nd

            if use_single_buffer and hasattr(pl, "Buffered"):
                # Constant blocks are fetched once; no need for double buffers.
                return pl.BlockSpec(arr.shape, idx, pipeline_mode=pl.Buffered(1))
            return pl.BlockSpec(arr.shape, idx)

        lp_spec = (pl.BlockSpec((bt, S, S), lambda b, l: (b, 0, 0))
                   if per_user else const_spec(lp))
        in_specs = [pl.BlockSpec((bt, S, Hp), x_map), lp_spec]
        in_specs += [const_spec(prepared[name]) for name in _PARAM_ORDER]

        kernel = _make_encoder_kernel(num_heads, dh_p, real_hidden,
                                      Hp - real_hidden, alpha, compute_dtype)
        return pl.pallas_call(
            kernel,
            out_shape=jax.ShapeDtypeStruct((B, S, Hp), x_pad.dtype),
            grid_spec=pltpu.PrefetchScalarGridSpec(
                num_scalar_prefetch=0,
                grid=(B // bt, num_layers),        # layers innermost (resident state)
                in_specs=in_specs,
                out_specs=pl.BlockSpec((bt, S, Hp), x_map),
                scratch_shapes=[pltpu.VMEM((bt, S, Hp), jnp.float32)],
            ),
            compiler_params=pltpu.CompilerParams(
                dimension_semantics=("parallel", "arbitrary"),
                vmem_limit_bytes=vmem_limit,
            ),
        )

    args = (x_pad, lp, *[prepared[n] for n in _PARAM_ORDER])
    try:
        return build(True)(*args)
    except Exception:
        # Fallback in case single-buffer pipeline_mode is rejected by this jax build.
        return build(False)(*args)


def bsarec_encoder(hidden_states, params, *, num_layers, num_heads, alpha, c,
                   user_freq_weights=None, output_all_encoded_layers=False,
                   compute_dtype=jnp.bfloat16, batch_tile=None):
    B, S, H = hidden_states.shape
    assert H % num_heads == 0
    intermediate = params["w1"].shape[1]
    hp, ip, dh_p = _padded_dims(H, intermediate, num_heads)

    prepared = _prepare_params(params, num_heads, hp, ip, dh_p, compute_dtype)

    vmem_cap = _vmem_capacity_bytes()
    multi_tc = _is_multi_tensorcore()
    # ~40 MiB cap on 64 MiB-VMEM parts (v7x-class); ~100 MiB on 128 MiB parts.
    vmem_limit = (40 * 1024 * 1024 if vmem_cap <= 64 * 1024 * 1024
                  else 100 * 1024 * 1024)

    per_user = user_freq_weights is not None
    if per_user:
        assert user_freq_weights.shape[0] == B

    lp_itemsize = jnp.dtype(compute_dtype).itemsize
    x_itemsize = jnp.dtype(hidden_states.dtype).itemsize
    bt = batch_tile if batch_tile is not None else _pick_batch_tile(
        B, S, hp, ip, prepared, lp_itemsize, x_itemsize, per_user, multi_tc,
        vmem_limit)

    lp, per_user = _build_lowpass_operator(S, c, user_freq_weights, bt)
    lp = lp.astype(compute_dtype)

    common = dict(num_heads=num_heads, dh_p=dh_p, real_hidden=H, alpha=alpha,
                  batch_tile=bt, compute_dtype=compute_dtype, per_user=per_user,
                  vmem_limit=vmem_limit)

    def run(x, layers):
        x_pad = _pad_last(x, hp)
        y = _encoder_blocks(x_pad, lp, prepared, num_layers=layers, **common)
        return y[..., :H]

    all_encoder_layers = [hidden_states]
    if output_all_encoded_layers:
        h = hidden_states
        for _ in range(num_layers):
            h = run(h, 1)
            all_encoder_layers.append(h)
        return all_encoder_layers

    all_encoder_layers.append(run(hidden_states, num_layers))
    return all_encoder_layers


# ----------------------------------------------------------------------------
# Pure-JAX reference (for validation) and parameter init
# ----------------------------------------------------------------------------
def bsarec_encoder_ref(x, params, *, num_layers, num_heads, alpha, c,
                       user_freq_weights=None):
    B, S, H = x.shape
    nf = S // 2 + 1
    c_keep = min(c // 2 + 1, nf)
    mask = (jnp.arange(nf) < c_keep).astype(jnp.float32)
    beta2 = params["sqrt_beta"].astype(jnp.float32) ** 2
    dh = H // num_heads

    def ln(v, g, b):
        u = jnp.mean(v, -1, keepdims=True)
        s2 = jnp.mean((v - u) ** 2, -1, keepdims=True)
        return (v - u) / jnp.sqrt(s2 + LN_EPS) * g + b

    def split(t):
        return t.reshape(B, S, num_heads, dh).transpose(0, 2, 1, 3)

    h = x.astype(jnp.float32)
    for _ in range(num_layers):
        X = jnp.fft.rfft(h, axis=1, norm="ortho")
        w = mask[None, :] if user_freq_weights is None else \
            user_freq_weights.astype(jnp.float32) * mask[None, :]
        low = jnp.fft.irfft(X * w[:, :, None], n=S, axis=1, norm="ortho")
        seq_fft = low + beta2 * (h - low)
        dsp = ln(seq_fft + h, params["ln1_g"], params["ln1_b"])

        q = h @ params["wq"] + params["bq"]
        k = h @ params["wk"] + params["bk"]
        v = h @ params["wv"] + params["bv"]
        sc = jnp.einsum("bnqd,bnkd->bnqk", split(q), split(k)) / math.sqrt(dh)
        p = jax.nn.softmax(sc, axis=-1)
        ctx = jnp.einsum("bnqk,bnkd->bnqd", p, split(v)).transpose(0, 2, 1, 3)
        attn = ctx.reshape(B, S, H) @ params["wo"] + params["bo"]
        gsp = ln(attn + h, params["ln2_g"], params["ln2_b"])

        hm = alpha * dsp + (1.0 - alpha) * gsp
        inter = _gelu(hm @ params["w1"] + params["b1"])
        ff = inter @ params["w2"] + params["b2"]
        h = ln(ff + hm, params["ln3_g"], params["ln3_b"])
    return h


def init_params(key, hidden, intermediate):
    ks = jax.random.split(key, 7)
    n = lambda k, shp: 0.02 * jax.random.normal(k, shp, dtype=jnp.float32)
    ones = lambda d: jnp.ones((1, d), jnp.float32)
    zeros = lambda d: jnp.zeros((1, d), jnp.float32)
    return {
        "sqrt_beta": jax.random.normal(ks[0], (1, hidden), dtype=jnp.float32),
        "ln1_g": ones(hidden), "ln1_b": zeros(hidden),
        "wq": n(ks[1], (hidden, hidden)), "bq": zeros(hidden),
        "wk": n(ks[2], (hidden, hidden)), "bk": zeros(hidden),
        "wv": n(ks[3], (hidden, hidden)), "bv": zeros(hidden),
        "wo": n(ks[4], (hidden, hidden)), "bo": zeros(hidden),
        "ln2_g": ones(hidden), "ln2_b": zeros(hidden),
        "w1": n(ks[5], (hidden, intermediate)), "b1": zeros(intermediate),
        "w2": n(ks[6], (intermediate, hidden)), "b2": zeros(hidden),
        "ln3_g": ones(hidden), "ln3_b": zeros(hidden),
    }


if __name__ == "__main__":
    B, S, H = 2, 8, 32
    NUM_HEADS = 2
    NUM_LAYERS = 2
    ALPHA = 0.7
    C = 5                      # args.c
    INTERMEDIATE = 4 * H

    key = jax.random.PRNGKey(0)
    k_x, k_p, k_w = jax.random.split(key, 3)
    hidden_states = jax.random.normal(k_x, (B, S, H), dtype=jnp.float32)
    params = init_params(k_p, H, INTERMEDIATE)
    freq_w = 0.5 + jax.random.uniform(k_w, (B, S // 2 + 1), dtype=jnp.float32)

    common = dict(num_layers=NUM_LAYERS, num_heads=NUM_HEADS, alpha=ALPHA, c=C)
    ref = bsarec_encoder_ref(hidden_states, params, **common)

    # 1) f32 compute path: tight check against the pure-JAX reference.
    out_f32 = jax.block_until_ready(
        bsarec_encoder(hidden_states, params, compute_dtype=jnp.float32, **common)[-1])
    assert out_f32.shape == (B, S, H)
    err = float(jnp.max(jnp.abs(out_f32 - ref)))
    assert err < 2e-2, f"f32 kernel mismatch: {err}"

    # 2) f32 compute path with per-user frequency gains.
    out_w = jax.block_until_ready(
        bsarec_encoder(hidden_states, params, user_freq_weights=freq_w,
                       compute_dtype=jnp.float32, **common)[-1])
    ref_w = bsarec_encoder_ref(hidden_states, params,
                               user_freq_weights=freq_w, **common)
    err_w = float(jnp.max(jnp.abs(out_w - ref_w)))
    assert err_w < 2e-2, f"freq-weighted kernel mismatch: {err_w}"

    # 3) default bf16 MXU path (performance configuration).
    out_bf16 = jax.block_until_ready(
        bsarec_encoder(hidden_states, params, **common)[-1])
    assert out_bf16.shape == (B, S, H) and bool(jnp.all(jnp.isfinite(out_bf16)))
    err_bf = float(jnp.max(jnp.abs(out_bf16 - ref)))
    assert err_bf < 0.5, f"bf16 kernel far from reference: {err_bf}"

    print("KERNEL_OK")
</pallas_src>

<mosaic_0001>
module attributes {stable_mosaic.version = 11 : i64} {
  func.func @kernel(%arg0: i32, %arg1: i32, %arg2: memref<2x8x128xf32, #tpu.memory_space<vmem>>, %arg3: memref<2x8x8xf32, #tpu.memory_space<vmem>>, %arg4: memref<1x128xf32, #tpu.memory_space<vmem>>, %arg5: memref<1x128xf32, #tpu.memory_space<vmem>>, %arg6: memref<1x128xf32, #tpu.memory_space<vmem>>, %arg7: memref<128x384xf32, #tpu.memory_space<vmem>>, %arg8: memref<1x384xf32, #tpu.memory_space<vmem>>, %arg9: memref<2x64x128xf32, #tpu.memory_space<vmem>>, %arg10: memref<1x128xf32, #tpu.memory_space<vmem>>, %arg11: memref<1x128xf32, #tpu.memory_space<vmem>>, %arg12: memref<1x128xf32, #tpu.memory_space<vmem>>, %arg13: memref<128x128xf32, #tpu.memory_space<vmem>>, %arg14: memref<1x128xf32, #tpu.memory_space<vmem>>, %arg15: memref<128x128xf32, #tpu.memory_space<vmem>>, %arg16: memref<1x128xf32, #tpu.memory_space<vmem>>, %arg17: memref<1x128xf32, #tpu.memory_space<vmem>>, %arg18: memref<1x128xf32, #tpu.memory_space<vmem>>, %arg19: memref<2x8x128xf32, #tpu.memory_space<vmem>>, %arg20: memref<2x8x128xf32, #tpu.memory_space<vmem>>) attributes {dimension_semantics = [#tpu.dimension_semantics<parallel>, #tpu.dimension_semantics<arbitrary>], iteration_bounds = array<i64: 1, 2>, scalar_prefetch = 0 : i64, scratch_operands = 1 : i64, tpu.core_type = #tpu.core_type<tc>, window_params = [{transform_indices = @transform_0, window_bounds = array<i64: 2, 8, 128>}, {pipeline_mode = #tpu.pipeline_mode<synchronous>, transform_indices = @transform_1, window_bounds = array<i64: 2, 8, 8>}, {pipeline_mode = #tpu.pipeline_mode<synchronous>, transform_indices = @transform_2, window_bounds = array<i64: 1, 128>}, {pipeline_mode = #tpu.pipeline_mode<synchronous>, transform_indices = @transform_3, window_bounds = array<i64: 1, 128>}, {pipeline_mode = #tpu.pipeline_mode<synchronous>, transform_indices = @transform_4, window_bounds = array<i64: 1, 128>}, {pipeline_mode = #tpu.pipeline_mode<synchronous>, transform_indices = @transform_5, window_bounds = array<i64: 128, 384>}, {pipeline_mode = #tpu.pipeline_mode<synchronous>, transform_indices = @transform_6, window_bounds = array<i64: 1, 384>}, {pipeline_mode = #tpu.pipeline_mode<synchronous>, transform_indices = @transform_7, window_bounds = array<i64: 2, 64, 128>}, {pipeline_mode = #tpu.pipeline_mode<synchronous>, transform_indices = @transform_8, window_bounds = array<i64: 1, 128>}, {pipeline_mode = #tpu.pipeline_mode<synchronous>, transform_indices = @transform_9, window_bounds = array<i64: 1, 128>}, {pipeline_mode = #tpu.pipeline_mode<synchronous>, transform_indices = @transform_10, window_bounds = array<i64: 1, 128>}, {pipeline_mode = #tpu.pipeline_mode<synchronous>, transform_indices = @transform_11, window_bounds = array<i64: 128, 128>}, {pipeline_mode = #tpu.pipeline_mode<synchronous>, transform_indices = @transform_12, window_bounds = array<i64: 1, 128>}, {pipeline_mode = #tpu.pipeline_mode<synchronous>, transform_indices = @transform_13, window_bounds = array<i64: 128, 128>}, {pipeline_mode = #tpu.pipeline_mode<synchronous>, transform_indices = @transform_14, window_bounds = array<i64: 1, 128>}, {pipeline_mode = #tpu.pipeline_mode<synchronous>, transform_indices = @transform_15, window_bounds = array<i64: 1, 128>}, {pipeline_mode = #tpu.pipeline_mode<synchronous>, transform_indices = @transform_16, window_bounds = array<i64: 1, 128>}, {transform_indices = @transform_17, window_bounds = array<i64: 2, 8, 128>}]} {
    %c0_i32 = arith.constant 0 : i32
    %0 = arith.cmpi eq, %arg1, %c0_i32 : i32
    %1 = arith.extui %0 : i1 to i32
    %c0_i32_0 = arith.constant 0 : i32
    %2 = arith.cmpi ne, %1, %c0_i32_0 : i32
    scf.if %2 {
      %c0_83 = arith.constant 0 : index
      %c0_84 = arith.constant 0 : index
      %c0_85 = arith.constant 0 : index
      %189 = vector.load %arg2[%c0_83, %c0_84, %c0_85] : memref<2x8x128xf32, #tpu.memory_space<vmem>>, vector<2x8x128xf32>
      %c0_86 = arith.constant 0 : index
      %c0_87 = arith.constant 0 : index
      %c0_88 = arith.constant 0 : index
      %190 = vector.load %arg20[%c0_86, %c0_87, %c0_88] : memref<2x8x128xf32, #tpu.memory_space<vmem>>, vector<2x8x128xf32>
      tpu.vector_store %arg20[%c0_86, %c0_87, %c0_88], %189 {strides = array<i32>} : memref<2x8x128xf32, #tpu.memory_space<vmem>>, vector<2x8x128xf32>,
    } else {
    }
    %c0 = arith.constant 0 : index
    %c0_1 = arith.constant 0 : index
    %c0_2 = arith.constant 0 : index
    %3 = vector.load %arg20[%c0, %c0_1, %c0_2] : memref<2x8x128xf32, #tpu.memory_space<vmem>>, vector<2x8x128xf32>
    %4 = vector.shape_cast %3 : vector<2x8x128xf32> to vector<16x128xf32>
    %c0_3 = arith.constant 0 : index
    %c0_4 = arith.constant 0 : index
    %c0_5 = arith.constant 0 : index
    %5 = vector.load %arg3[%c0_3, %c0_4, %c0_5] : memref<2x8x8xf32, #tpu.memory_space<vmem>>, vector<2x8x8xf32>
    "tpu.trace_start"() <{level = 10 : i32, message = "bts,bsh->bth"}> : () -> ()
    %cst = arith.constant dense<0.000000e+00> : vector<2x8x128xf32>
    %6 = tpu.matmul %5, %3, %cst {dimension_numbers = #tpu.dot_dimension_numbers<[2], [1], [1], [2], [0, 0, 0, 1, 1, 2], [0], [0]>} : vector<2x8x8xf32>, vector<2x8x128xf32>, vector<2x8x128xf32> -> vector<2x8x128xf32>
    "tpu.trace_stop"() : () -> ()
    %c0_6 = arith.constant 0 : index
    %c0_7 = arith.constant 0 : index
    %7 = vector.load %arg4[%c0_6, %c0_7] : memref<1x128xf32, #tpu.memory_space<vmem>>, vector<1x128xf32>
    %8 = arith.subf %3, %6 : vector<2x8x128xf32>
    %9 = vector.shape_cast %7 : vector<1x128xf32> to vector<1x1x128xf32>
    %10 = vector.broadcast %9 : vector<1x1x128xf32> to vector<2x8x128xf32>
    %11 = arith.mulf %10, %8 : vector<2x8x128xf32>
    %12 = arith.addf %6, %11 : vector<2x8x128xf32>
    %13 = arith.addf %12, %3 : vector<2x8x128xf32>
    %c0_8 = arith.constant 0 : index
    %c0_9 = arith.constant 0 : index
    %14 = vector.load %arg5[%c0_8, %c0_9] : memref<1x128xf32, #tpu.memory_space<vmem>>, vector<1x128xf32>
    %c0_10 = arith.constant 0 : index
    %c0_11 = arith.constant 0 : index
    %15 = vector.load %arg6[%c0_10, %c0_11] : memref<1x128xf32, #tpu.memory_space<vmem>>, vector<1x128xf32>
    %cst_12 = arith.constant dense<0.000000e+00> : vector<2x8xf32>
    %16 = vector.multi_reduction <add>, %13, %cst_12 [2] : vector<2x8x128xf32> to vector<2x8xf32>
    %17 = vector.shape_cast %16 : vector<2x8xf32> to vector<2x8x1xf32>
    %cst_13 = arith.constant 3.125000e-02 : f32
    %18 = vector.broadcast %cst_13 : f32 to vector<2x8x1xf32>
    %19 = arith.mulf %17, %18 : vector<2x8x1xf32>
    %20 = vector.broadcast %19 : vector<2x8x1xf32> to vector<2x8x128xf32>
    %21 = arith.subf %13, %20 : vector<2x8x128xf32>
    %22 = arith.mulf %21, %21 : vector<2x8x128xf32>
    %cst_14 = arith.constant dense<0.000000e+00> : vector<2x8xf32>
    %23 = vector.multi_reduction <add>, %22, %cst_14 [2] : vector<2x8x128xf32> to vector<2x8xf32>
    %24 = vector.shape_cast %23 : vector<2x8xf32> to vector<2x8x1xf32>
    %25 = arith.mulf %19, %19 : vector<2x8x1xf32>
    %cst_15 = arith.constant 9.600000e+01 : f32
    %26 = vector.broadcast %cst_15 : f32 to vector<2x8x1xf32>
    %27 = arith.mulf %26, %25 : vector<2x8x1xf32>
    %28 = arith.subf %24, %27 : vector<2x8x1xf32>
    %cst_16 = arith.constant 0.000000e+00 : f32
    %29 = vector.broadcast %cst_16 : f32 to vector<2x8x1xf32>
    %30 = arith.maximumf %28, %29 : vector<2x8x1xf32>
    %cst_17 = arith.constant 3.125000e-02 : f32
    %31 = vector.broadcast %cst_17 : f32 to vector<2x8x1xf32>
    %32 = arith.mulf %30, %31 : vector<2x8x1xf32>
    %cst_18 = arith.constant 9.99999996E-13 : f32
    %33 = vector.broadcast %cst_18 : f32 to vector<2x8x1xf32>
    %34 = arith.addf %32, %33 : vector<2x8x1xf32>
    %35 = math.rsqrt %34 : vector<2x8x1xf32>
    %36 = vector.broadcast %35 : vector<2x8x1xf32> to vector<2x8x128xf32>
    %37 = arith.mulf %21, %36 : vector<2x8x128xf32>
    %38 = vector.shape_cast %14 : vector<1x128xf32> to vector<1x1x128xf32>
    %39 = vector.broadcast %38 : vector<1x1x128xf32> to vector<2x8x128xf32>
    %40 = arith.mulf %37, %39 : vector<2x8x128xf32>
    %41 = vector.shape_cast %15 : vector<1x128xf32> to vector<1x1x128xf32>
    %42 = vector.broadcast %41 : vector<1x1x128xf32> to vector<2x8x128xf32>
    %43 = arith.addf %40, %42 : vector<2x8x128xf32>
    %c0_19 = arith.constant 0 : index
    %c0_20 = arith.constant 0 : index
    %44 = vector.load %arg7[%c0_19, %c0_20] : memref<128x384xf32, #tpu.memory_space<vmem>>, vector<128x384xf32>
    %cst_21 = arith.constant dense<0.000000e+00> : vector<16x384xf32>
    %45 = tpu.matmul %4, %44, %cst_21 {dimension_numbers = #tpu.dot_dimension_numbers<[1], [0], [0], [1], [0, 0, 1, 1], [], []>} : vector<16x128xf32>, vector<128x384xf32>, vector<16x384xf32> -> vector<16x384xf32>
    %c0_22 = arith.constant 0 : index
    %c0_23 = arith.constant 0 : index
    %46 = vector.load %arg8[%c0_22, %c0_23] : memref<1x384xf32, #tpu.memory_space<vmem>>, vector<1x384xf32>
    %47 = vector.broadcast %46 : vector<1x384xf32> to vector<16x384xf32>
    %48 = arith.addf %45, %47 : vector<16x384xf32>
    %49 = vector.shape_cast %48 : vector<16x384xf32> to vector<2x8x384xf32>
    %50 = vector.extract_strided_slice %49 {offsets = [0, 0, 0], sizes = [2, 8, 128], strides = [1, 1, 1]} : vector<2x8x384xf32> to vector<2x8x128xf32>
    %51 = vector.extract_strided_slice %49 {offsets = [0, 0, 128], sizes = [2, 8, 128], strides = [1, 1, 1]} : vector<2x8x384xf32> to vector<2x8x128xf32>
    %52 = vector.extract_strided_slice %49 {offsets = [0, 0, 256], sizes = [2, 8, 128], strides = [1, 1, 1]} : vector<2x8x384xf32> to vector<2x8x128xf32>
    %cst_24 = arith.constant 0.000000e+00 : f32
    %53 = vector.broadcast %cst_24 : f32 to vector<16x128xf32>
    %54 = vector.extract_strided_slice %50 {offsets = [0, 0, 0], sizes = [2, 8, 64], strides = [1, 1, 1]} : vector<2x8x128xf32> to vector<2x8x64xf32>
    %55 = vector.extract_strided_slice %51 {offsets = [0, 0, 0], sizes = [2, 8, 64], strides = [1, 1, 1]} : vector<2x8x128xf32> to vector<2x8x64xf32>
    "tpu.trace_start"() <{level = 10 : i32, message = "bqd,bkd->bqk"}> : () -> ()
    %cst_25 = arith.constant dense<0.000000e+00> : vector<2x8x8xf32>
    %56 = tpu.matmul %54, %55, %cst_25 {dimension_numbers = #tpu.dot_dimension_numbers<[2], [2], [1], [1], [0, 0, 0, 1, 1, 1], [0], [0]>} : vector<2x8x64xf32>, vector<2x8x64xf32>, vector<2x8x8xf32> -> vector<2x8x8xf32>
    "tpu.trace_stop"() : () -> ()
    %cst_26 = arith.constant dense<0xFF800000> : vector<2x8xf32>
    %57 = vector.multi_reduction <maximumf>, %56, %cst_26 [2] : vector<2x8x8xf32> to vector<2x8xf32>
    %58 = vector.shape_cast %57 : vector<2x8xf32> to vector<2x8x1xf32>
    %59 = vector.broadcast %58 : vector<2x8x1xf32> to vector<2x8x8xf32>
    %60 = arith.subf %56, %59 : vector<2x8x8xf32>
    %61 = math.exp %60 : vector<2x8x8xf32>
    %cst_27 = arith.constant dense<0.000000e+00> : vector<2x8xf32>
    %62 = vector.multi_reduction <add>, %61, %cst_27 [2] : vector<2x8x8xf32> to vector<2x8xf32>
    %63 = vector.shape_cast %62 : vector<2x8xf32> to vector<2x8x1xf32>
    %64 = tpu.reciprocal %63 {approx = true} : vector<2x8x1xf32> -> vector<2x8x1xf32>
    %65 = vector.broadcast %64 : vector<2x8x1xf32> to vector<2x8x8xf32>
    %66 = arith.mulf %61, %65 : vector<2x8x8xf32>
    %67 = vector.extract_strided_slice %52 {offsets = [0, 0, 0], sizes = [2, 8, 64], strides = [1, 1, 1]} : vector<2x8x128xf32> to vector<2x8x64xf32>
    "tpu.trace_start"() <{level = 10 : i32, message = "bqk,bkd->bqd"}> : () -> ()
    %cst_28 = arith.constant dense<0.000000e+00> : vector<2x8x64xf32>
    %68 = tpu.matmul %66, %67, %cst_28 {dimension_numbers = #tpu.dot_dimension_numbers<[2], [1], [1], [2], [0, 0, 0, 1, 1, 2], [0], [0]>} : vector<2x8x8xf32>, vector<2x8x64xf32>, vector<2x8x64xf32> -> vector<2x8x64xf32>
    "tpu.trace_stop"() : () -> ()
    %69 = vector.shape_cast %68 : vector<2x8x64xf32> to vector<16x64xf32>
    %c0_29 = arith.constant 0 : index
    %c0_30 = arith.constant 0 : index
    %c0_31 = arith.constant 0 : index
    %70 = vector.load %arg9[%c0_29, %c0_30, %c0_31] : memref<2x64x128xf32, #tpu.memory_space<vmem>>, vector<1x64x128xf32>
    %71 = vector.shape_cast %70 : vector<1x64x128xf32> to vector<64x128xf32>
    %cst_32 = arith.constant dense<0.000000e+00> : vector<16x128xf32>
    %72 = tpu.matmul %69, %71, %cst_32 {dimension_numbers = #tpu.dot_dimension_numbers<[1], [0], [0], [1], [0, 0, 1, 1], [], []>} : vector<16x64xf32>, vector<64x128xf32>, vector<16x128xf32> -> vector<16x128xf32>
    %73 = arith.addf %53, %72 : vector<16x128xf32>
    %74 = vector.extract_strided_slice %50 {offsets = [0, 0, 64], sizes = [2, 8, 64], strides = [1, 1, 1]} : vector<2x8x128xf32> to vector<2x8x64xf32>
    %75 = vector.extract_strided_slice %51 {offsets = [0, 0, 64], sizes = [2, 8, 64], strides = [1, 1, 1]} : vector<2x8x128xf32> to vector<2x8x64xf32>
    "tpu.trace_start"() <{level = 10 : i32, message = "bqd,bkd->bqk"}> : () -> ()
    %cst_33 = arith.constant dense<0.000000e+00> : vector<2x8x8xf32>
    %76 = tpu.matmul %74, %75, %cst_33 {dimension_numbers = #tpu.dot_dimension_numbers<[2], [2], [1], [1], [0, 0, 0, 1, 1, 1], [0], [0]>} : vector<2x8x64xf32>, vector<2x8x64xf32>, vector<2x8x8xf32> -> vector<2x8x8xf32>
    "tpu.trace_stop"() : () -> ()
    %cst_34 = arith.constant dense<0xFF800000> : vector<2x8xf32>
    %77 = vector.multi_reduction <maximumf>, %76, %cst_34 [2] : vector<2x8x8xf32> to vector<2x8xf32>
    %78 = vector.shape_cast %77 : vector<2x8xf32> to vector<2x8x1xf32>
    %79 = vector.broadcast %78 : vector<2x8x1xf32> to vector<2x8x8xf32>
    %80 = arith.subf %76, %79 : vector<2x8x8xf32>
    %81 = math.exp %80 : vector<2x8x8xf32>
    %cst_35 = arith.constant dense<0.000000e+00> : vector<2x8xf32>
    %82 = vector.multi_reduction <add>, %81, %cst_35 [2] : vector<2x8x8xf32> to vector<2x8xf32>
    %83 = vector.shape_cast %82 : vector<2x8xf32> to vector<2x8x1xf32>
    %84 = tpu.reciprocal %83 {approx = true} : vector<2x8x1xf32> -> vector<2x8x1xf32>
    %85 = vector.broadcast %84 : vector<2x8x1xf32> to vector<2x8x8xf32>
    %86 = arith.mulf %81, %85 : vector<2x8x8xf32>
    %87 = vector.extract_strided_slice %52 {offsets = [0, 0, 64], sizes = [2, 8, 64], strides = [1, 1, 1]} : vector<2x8x128xf32> to vector<2x8x64xf32>
    "tpu.trace_start"() <{level = 10 : i32, message = "bqk,bkd->bqd"}> : () -> ()
    %cst_36 = arith.constant dense<0.000000e+00> : vector<2x8x64xf32>
    %88 = tpu.matmul %86, %87, %cst_36 {dimension_numbers = #tpu.dot_dimension_numbers<[2], [1], [1], [2], [0, 0, 0, 1, 1, 2], [0], [0]>} : vector<2x8x8xf32>, vector<2x8x64xf32>, vector<2x8x64xf32> -> vector<2x8x64xf32>
    "tpu.trace_stop"() : () -> ()
    %89 = vector.shape_cast %88 : vector<2x8x64xf32> to vector<16x64xf32>
    %c1 = arith.constant 1 : index
    %c0_37 = arith.constant 0 : index
    %c0_38 = arith.constant 0 : index
    %90 = vector.load %arg9[%c1, %c0_37, %c0_38] : memref<2x64x128xf32, #tpu.memory_space<vmem>>, vector<1x64x128xf32>
    %91 = vector.shape_cast %90 : vector<1x64x128xf32> to vector<64x128xf32>
    %cst_39 = arith.constant dense<0.000000e+00> : vector<16x128xf32>
    %92 = tpu.matmul %89, %91, %cst_39 {dimension_numbers = #tpu.dot_dimension_numbers<[1], [0], [0], [1], [0, 0, 1, 1], [], []>} : vector<16x64xf32>, vector<64x128xf32>, vector<16x128xf32> -> vector<16x128xf32>
    %93 = arith.addf %73, %92 : vector<16x128xf32>
    %c0_40 = arith.constant 0 : index
    %c0_41 = arith.constant 0 : index
    %94 = vector.load %arg10[%c0_40, %c0_41] : memref<1x128xf32, #tpu.memory_space<vmem>>, vector<1x128xf32>
    %95 = vector.broadcast %94 : vector<1x128xf32> to vector<16x128xf32>
    %96 = arith.addf %93, %95 : vector<16x128xf32>
    %97 = vector.shape_cast %96 : vector<16x128xf32> to vector<2x8x128xf32>
    %98 = arith.addf %97, %3 : vector<2x8x128xf32>
    %c0_42 = arith.constant 0 : index
    %c0_43 = arith.constant 0 : index
    %99 = vector.load %arg11[%c0_42, %c0_43] : memref<1x128xf32, #tpu.memory_space<vmem>>, vector<1x128xf32>
    %c0_44 = arith.constant 0 : index
    %c0_45 = arith.constant 0 : index
    %100 = vector.load %arg12[%c0_44, %c0_45] : memref<1x128xf32, #tpu.memory_space<vmem>>, vector<1x128xf32>
    %cst_46 = arith.constant dense<0.000000e+00> : vector<2x8xf32>
    %101 = vector.multi_reduction <add>, %98, %cst_46 [2] : vector<2x8x128xf32> to vector<2x8xf32>
    %102 = vector.shape_cast %101 : vector<2x8xf32> to vector<2x8x1xf32>
    %cst_47 = arith.constant 3.125000e-02 : f32
    %103 = vector.broadcast %cst_47 : f32 to vector<2x8x1xf32>
    %104 = arith.mulf %102, %103 : vector<2x8x1xf32>
    %105 = vector.broadcast %104 : vector<2x8x1xf32> to vector<2x8x128xf32>
    %106 = arith.subf %98, %105 : vector<2x8x128xf32>
    %107 = arith.mulf %106, %106 : vector<2x8x128xf32>
    %cst_48 = arith.constant dense<0.000000e+00> : vector<2x8xf32>
    %108 = vector.multi_reduction <add>, %107, %cst_48 [2] : vector<2x8x128xf32> to vector<2x8xf32>
    %109 = vector.shape_cast %108 : vector<2x8xf32> to vector<2x8x1xf32>
    %110 = arith.mulf %104, %104 : vector<2x8x1xf32>
    %cst_49 = arith.constant 9.600000e+01 : f32
    %111 = vector.broadcast %cst_49 : f32 to vector<2x8x1xf32>
    %112 = arith.mulf %111, %110 : vector<2x8x1xf32>
    %113 = arith.subf %109, %112 : vector<2x8x1xf32>
    %cst_50 = arith.constant 0.000000e+00 : f32
    %114 = vector.broadcast %cst_50 : f32 to vector<2x8x1xf32>
    %115 = arith.maximumf %113, %114 : vector<2x8x1xf32>
    %cst_51 = arith.constant 3.125000e-02 : f32
    %116 = vector.broadcast %cst_51 : f32 to vector<2x8x1xf32>
    %117 = arith.mulf %115, %116 : vector<2x8x1xf32>
    %cst_52 = arith.constant 9.99999996E-13 : f32
    %118 = vector.broadcast %cst_52 : f32 to vector<2x8x1xf32>
    %119 = arith.addf %117, %118 : vector<2x8x1xf32>
    %120 = math.rsqrt %119 : vector<2x8x1xf32>
    %121 = vector.broadcast %120 : vector<2x8x1xf32> to vector<2x8x128xf32>
    %122 = arith.mulf %106, %121 : vector<2x8x128xf32>
    %123 = vector.shape_cast %99 : vector<1x128xf32> to vector<1x1x128xf32>
    %124 = vector.broadcast %123 : vector<1x1x128xf32> to vector<2x8x128xf32>
    %125 = arith.mulf %122, %124 : vector<2x8x128xf32>
    %126 = vector.shape_cast %100 : vector<1x128xf32> to vector<1x1x128xf32>
    %127 = vector.broadcast %126 : vector<1x1x128xf32> to vector<2x8x128xf32>
    %128 = arith.addf %125, %127 : vector<2x8x128xf32>
    %cst_53 = arith.constant 0.699999988 : f32
    %129 = vector.broadcast %cst_53 : f32 to vector<2x8x128xf32>
    %130 = arith.mulf %129, %43 : vector<2x8x128xf32>
    %cst_54 = arith.constant 3.000000e-01 : f32
    %131 = vector.broadcast %cst_54 : f32 to vector<2x8x128xf32>
    %132 = arith.mulf %131, %128 : vector<2x8x128xf32>
    %133 = arith.addf %130, %132 : vector<2x8x128xf32>
    %134 = vector.shape_cast %133 : vector<2x8x128xf32> to vector<16x128xf32>
    %c0_55 = arith.constant 0 : index
    %c0_56 = arith.constant 0 : index
    %135 = vector.load %arg13[%c0_55, %c0_56] : memref<128x128xf32, #tpu.memory_space<vmem>>, vector<128x128xf32>
    %cst_57 = arith.constant dense<0.000000e+00> : vector<16x128xf32>
    %136 = tpu.matmul %134, %135, %cst_57 {dimension_numbers = #tpu.dot_dimension_numbers<[1], [0], [0], [1], [0, 0, 1, 1], [], []>} : vector<16x128xf32>, vector<128x128xf32>, vector<16x128xf32> -> vector<16x128xf32>
    %c0_58 = arith.constant 0 : index
    %c0_59 = arith.constant 0 : index
    %137 = vector.load %arg14[%c0_58, %c0_59] : memref<1x128xf32, #tpu.memory_space<vmem>>, vector<1x128xf32>
    %138 = vector.broadcast %137 : vector<1x128xf32> to vector<16x128xf32>
    %139 = arith.addf %136, %138 : vector<16x128xf32>
    %cst_60 = arith.constant 5.000000e-01 : f32
    %140 = vector.broadcast %cst_60 : f32 to vector<16x128xf32>
    %141 = arith.mulf %139, %140 : vector<16x128xf32>
    %cst_61 = arith.constant 1.41421354 : f32
    %142 = vector.broadcast %cst_61 : f32 to vector<16x128xf32>
    %143 = arith.divf %139, %142 : vector<16x128xf32>
    %144 = math.erf %143 : vector<16x128xf32>
    %cst_62 = arith.constant 1.000000e+00 : f32
    %145 = vector.broadcast %cst_62 : f32 to vector<16x128xf32>
    %146 = arith.addf %145, %144 : vector<16x128xf32>
    %147 = arith.mulf %141, %146 : vector<16x128xf32>
    %c0_63 = arith.constant 0 : index
    %c0_64 = arith.constant 0 : index
    %148 = vector.load %arg15[%c0_63, %c0_64] : memref<128x128xf32, #tpu.memory_space<vmem>>, vector<128x128xf32>
    %cst_65 = arith.constant dense<0.000000e+00> : vector<16x128xf32>
    %149 = tpu.matmul %147, %148, %cst_65 {dimension_numbers = #tpu.dot_dimension_numbers<[1], [0], [0], [1], [0, 0, 1, 1], [], []>} : vector<16x128xf32>, vector<128x128xf32>, vector<16x128xf32> -> vector<16x128xf32>
    %c0_66 = arith.constant 0 : index
    %c0_67 = arith.constant 0 : index
    %150 = vector.load %arg16[%c0_66, %c0_67] : memref<1x128xf32, #tpu.memory_space<vmem>>, vector<1x128xf32>
    %151 = vector.broadcast %150 : vector<1x128xf32> to vector<16x128xf32>
    %152 = arith.addf %149, %151 : vector<16x128xf32>
    %153 = vector.shape_cast %152 : vector<16x128xf32> to vector<2x8x128xf32>
    %154 = arith.addf %153, %133 : vector<2x8x128xf32>
    %c0_68 = arith.constant 0 : index
    %c0_69 = arith.constant 0 : index
    %155 = vector.load %arg17[%c0_68, %c0_69] : memref<1x128xf32, #tpu.memory_space<vmem>>, vector<1x128xf32>
    %c0_70 = arith.constant 0 : index
    %c0_71 = arith.constant 0 : index
    %156 = vector.load %arg18[%c0_70, %c0_71] : memref<1x128xf32, #tpu.memory_space<vmem>>, vector<1x128xf32>
    %cst_72 = arith.constant dense<0.000000e+00> : vector<2x8xf32>
    %157 = vector.multi_reduction <add>, %154, %cst_72 [2] : vector<2x8x128xf32> to vector<2x8xf32>
    %158 = vector.shape_cast %157 : vector<2x8xf32> to vector<2x8x1xf32>
    %cst_73 = arith.constant 3.125000e-02 : f32
    %159 = vector.broadcast %cst_73 : f32 to vector<2x8x1xf32>
    %160 = arith.mulf %158, %159 : vector<2x8x1xf32>
    %161 = vector.broadcast %160 : vector<2x8x1xf32> to vector<2x8x128xf32>
    %162 = arith.subf %154, %161 : vector<2x8x128xf32>
    %163 = arith.mulf %162, %162 : vector<2x8x128xf32>
    %cst_74 = arith.constant dense<0.000000e+00> : vector<2x8xf32>
    %164 = vector.multi_reduction <add>, %163, %cst_74 [2] : vector<2x8x128xf32> to vector<2x8xf32>
    %165 = vector.shape_cast %164 : vector<2x8xf32> to vector<2x8x1xf32>
    %166 = arith.mulf %160, %160 : vector<2x8x1xf32>
    %cst_75 = arith.constant 9.600000e+01 : f32
    %167 = vector.broadcast %cst_75 : f32 to vector<2x8x1xf32>
    %168 = arith.mulf %167, %166 : vector<2x8x1xf32>
    %169 = arith.subf %165, %168 : vector<2x8x1xf32>
    %cst_76 = arith.constant 0.000000e+00 : f32
    %170 = vector.broadcast %cst_76 : f32 to vector<2x8x1xf32>
    %171 = arith.maximumf %169, %170 : vector<2x8x1xf32>
    %cst_77 = arith.constant 3.125000e-02 : f32
    %172 = vector.broadcast %cst_77 : f32 to vector<2x8x1xf32>
    %173 = arith.mulf %171, %172 : vector<2x8x1xf32>
    %cst_78 = arith.constant 9.99999996E-13 : f32
    %174 = vector.broadcast %cst_78 : f32 to vector<2x8x1xf32>
    %175 = arith.addf %173, %174 : vector<2x8x1xf32>
    %176 = math.rsqrt %175 : vector<2x8x1xf32>
    %177 = vector.broadcast %176 : vector<2x8x1xf32> to vector<2x8x128xf32>
    %178 = arith.mulf %162, %177 : vector<2x8x128xf32>
    %179 = vector.shape_cast %155 : vector<1x128xf32> to vector<1x1x128xf32>
    %180 = vector.broadcast %179 : vector<1x1x128xf32> to vector<2x8x128xf32>
    %181 = arith.mulf %178, %180 : vector<2x8x128xf32>
    %182 = vector.shape_cast %156 : vector<1x128xf32> to vector<1x1x128xf32>
    %183 = vector.broadcast %182 : vector<1x1x128xf32> to vector<2x8x128xf32>
    %184 = arith.addf %181, %183 : vector<2x8x128xf32>
    %c0_79 = arith.constant 0 : index
    %c0_80 = arith.constant 0 : index
    %c0_81 = arith.constant 0 : index
    %185 = vector.load %arg20[%c0_79, %c0_80, %c0_81] : memref<2x8x128xf32, #tpu.memory_space<vmem>>, vector<2x8x128xf32>
    tpu.vector_store %arg20[%c0_79, %c0_80, %c0_81], %184 {strides = array<i32>} : memref<2x8x128xf32, #tpu.memory_space<vmem>>, vector<2x8x128xf32>,
    %c1_i32 = arith.constant 1 : i32
    %186 = arith.cmpi eq, %arg1, %c1_i32 : i32
    %187 = arith.extui %186 : i1 to i32
    %c0_i32_82 = arith.constant 0 : i32
    %188 = arith.cmpi ne, %187, %c0_i32_82 : i32
    scf.if %188 {
      %c0_83 = arith.constant 0 : index
      %c0_84 = arith.constant 0 : index
      %c0_85 = arith.constant 0 : index
      %189 = vector.load %arg19[%c0_83, %c0_84, %c0_85] : memref<2x8x128xf32, #tpu.memory_space<vmem>>, vector<2x8x128xf32>
      tpu.vector_store %arg19[%c0_83, %c0_84, %c0_85], %184 {strides = array<i32>} : memref<2x8x128xf32, #tpu.memory_space<vmem>>, vector<2x8x128xf32>,
    } else {
    }
    return
  }
  func.func @transform_0(%arg0: i32, %arg1: i32) -> (i32, i32, i32) {
    %c0_i32 = arith.constant 0 : i32
    %c0_i32_0 = arith.constant 0 : i32
    %c0_i32_1 = arith.constant 0 : i32
    return %arg0, %c0_i32, %c0_i32_0 : i32, i32, i32
  }
  func.func @transform_1(%arg0: i32, %arg1: i32) -> (i32, i32, i32) {
    %c0_i32 = arith.constant 0 : i32
    %c0_i32_0 = arith.constant 0 : i32
    %c0_i32_1 = arith.constant 0 : i32
    %c0_i32_2 = arith.constant 0 : i32
    return %c0_i32, %c0_i32_0, %c0_i32_1 : i32, i32, i32
  }
  func.func @transform_2(%arg0: i32, %arg1: i32) -> (i32, i32) {
    %c0_i32 = arith.constant 0 : i32
    %c0_i32_0 = arith.constant 0 : i32
    %c0_i32_1 = arith.constant 0 : i32
    return %c0_i32, %c0_i32_0 : i32, i32
  }
  func.func @transform_3(%arg0: i32, %arg1: i32) -> (i32, i32) {
    %c0_i32 = arith.constant 0 : i32
    %c0_i32_0 = arith.constant 0 : i32
    %c0_i32_1 = arith.constant 0 : i32
    return %c0_i32, %c0_i32_0 : i32, i32
  }
  func.func @transform_4(%arg0: i32, %arg1: i32) -> (i32, i32) {
    %c0_i32 = arith.constant 0 : i32
    %c0_i32_0 = arith.constant 0 : i32
    %c0_i32_1 = arith.constant 0 : i32
    return %c0_i32, %c0_i32_0 : i32, i32
  }
  func.func @transform_5(%arg0: i32, %arg1: i32) -> (i32, i32) {
    %c0_i32 = arith.constant 0 : i32
    %c0_i32_0 = arith.constant 0 : i32
    %c0_i32_1 = arith.constant 0 : i32
    return %c0_i32, %c0_i32_0 : i32, i32
  }
  func.func @transform_6(%arg0: i32, %arg1: i32) -> (i32, i32) {
    %c0_i32 = arith.constant 0 : i32
    %c0_i32_0 = arith.constant 0 : i32
    %c0_i32_1 = arith.constant 0 : i32
    return %c0_i32, %c0_i32_0 : i32, i32
  }
  func.func @transform_7(%arg0: i32, %arg1: i32) -> (i32, i32, i32) {
    %c0_i32 = arith.constant 0 : i32
    %c0_i32_0 = arith.constant 0 : i32
    %c0_i32_1 = arith.constant 0 : i32
    %c0_i32_2 = arith.constant 0 : i32
    return %c0_i32, %c0_i32_0, %c0_i32_1 : i32, i32, i32
  }
  func.func @transform_8(%arg0: i32, %arg1: i32) -> (i32, i32) {
    %c0_i32 = arith.constant 0 : i32
    %c0_i32_0 = arith.constant 0 : i32
    %c0_i32_1 = arith.constant 0 : i32
    return %c0_i32, %c0_i32_0 : i32, i32
  }
  func.func @transform_9(%arg0: i32, %arg1: i32) -> (i32, i32) {
    %c0_i32 = arith.constant 0 : i32
    %c0_i32_0 = arith.constant 0 : i32
    %c0_i32_1 = arith.constant 0 : i32
    return %c0_i32, %c0_i32_0 : i32, i32
  }
  func.func @transform_10(%arg0: i32, %arg1: i32) -> (i32, i32) {
    %c0_i32 = arith.constant 0 : i32
    %c0_i32_0 = arith.constant 0 : i32
    %c0_i32_1 = arith.constant 0 : i32
    return %c0_i32, %c0_i32_0 : i32, i32
  }
  func.func @transform_11(%arg0: i32, %arg1: i32) -> (i32, i32) {
    %c0_i32 = arith.constant 0 : i32
    %c0_i32_0 = arith.constant 0 : i32
    %c0_i32_1 = arith.constant 0 : i32
    return %c0_i32, %c0_i32_0 : i32, i32
  }
  func.func @transform_12(%arg0: i32, %arg1: i32) -> (i32, i32) {
    %c0_i32 = arith.constant 0 : i32
    %c0_i32_0 = arith.constant 0 : i32
    %c0_i32_1 = arith.constant 0 : i32
    return %c0_i32, %c0_i32_0 : i32, i32
  }
  func.func @transform_13(%arg0: i32, %arg1: i32) -> (i32, i32) {
    %c0_i32 = arith.constant 0 : i32
    %c0_i32_0 = arith.constant 0 : i32
    %c0_i32_1 = arith.constant 0 : i32
    return %c0_i32, %c0_i32_0 : i32, i32
  }
  func.func @transform_14(%arg0: i32, %arg1: i32) -> (i32, i32) {
    %c0_i32 = arith.constant 0 : i32
    %c0_i32_0 = arith.constant 0 : i32
    %c0_i32_1 = arith.constant 0 : i32
    return %c0_i32, %c0_i32_0 : i32, i32
  }
  func.func @transform_15(%arg0: i32, %arg1: i32) -> (i32, i32) {
    %c0_i32 = arith.constant 0 : i32
    %c0_i32_0 = arith.constant 0 : i32
    %c0_i32_1 = arith.constant 0 : i32
    return %c0_i32, %c0_i32_0 : i32, i32
  }
  func.func @transform_16(%arg0: i32, %arg1: i32) -> (i32, i32) {
    %c0_i32 = arith.constant 0 : i32
    %c0_i32_0 = arith.constant 0 : i32
    %c0_i32_1 = arith.constant 0 : i32
    return %c0_i32, %c0_i32_0 : i32, i32
  }
  func.func @transform_17(%arg0: i32, %arg1: i32) -> (i32, i32, i32) {
    %c0_i32 = arith.constant 0 : i32
    %c0_i32_0 = arith.constant 0 : i32
    %c0_i32_1 = arith.constant 0 : i32
    return %arg0, %c0_i32, %c0_i32_0 : i32, i32, i32
  }
}

module attributes {stable_mosaic.version = 11 : i64} {
  func.func @kernel(%arg0: i32, %arg1: i32, %arg2: memref<2x8x128xf32, #tpu.memory_space<vmem>>, %arg3: memref<2x8x8xf32, #tpu.memory_space<vmem>>, %arg4: memref<1x128xf32, #tpu.memory_space<vmem>>, %arg5: memref<1x128xf32, #tpu.memory_space<vmem>>, %arg6: memref<1x128xf32, #tpu.memory_space<vmem>>, %arg7: memref<128x384xf32, #tpu.memory_space<vmem>>, %arg8: memref<1x384xf32, #tpu.memory_space<vmem>>, %arg9: memref<2x64x128xf32, #tpu.memory_space<vmem>>, %arg10: memref<1x128xf32, #tpu.memory_space<vmem>>, %arg11: memref<1x128xf32, #tpu.memory_space<vmem>>, %arg12: memref<1x128xf32, #tpu.memory_space<vmem>>, %arg13: memref<128x128xf32, #tpu.memory_space<vmem>>, %arg14: memref<1x128xf32, #tpu.memory_space<vmem>>, %arg15: memref<128x128xf32, #tpu.memory_space<vmem>>, %arg16: memref<1x128xf32, #tpu.memory_space<vmem>>, %arg17: memref<1x128xf32, #tpu.memory_space<vmem>>, %arg18: memref<1x128xf32, #tpu.memory_space<vmem>>, %arg19: memref<2x8x128xf32, #tpu.memory_space<vmem>>, %arg20: memref<2x8x128xf32, #tpu.memory_space<vmem>>) attributes {dimension_semantics = [#tpu.dimension_semantics<parallel>, #tpu.dimension_semantics<arbitrary>], iteration_bounds = array<i64: 1, 2>, scalar_prefetch = 0 : i64, scratch_operands = 1 : i64, tpu.core_type = #tpu.core_type<tc>, window_params = [{transform_indices = @transform_0, window_bounds = array<i64: 2, 8, 128>}, {pipeline_mode = #tpu.pipeline_mode<synchronous>, transform_indices = @transform_1, window_bounds = array<i64: 2, 8, 8>}, {pipeline_mode = #tpu.pipeline_mode<synchronous>, transform_indices = @transform_2, window_bounds = array<i64: 1, 128>}, {pipeline_mode = #tpu.pipeline_mode<synchronous>, transform_indices = @transform_3, window_bounds = array<i64: 1, 128>}, {pipeline_mode = #tpu.pipeline_mode<synchronous>, transform_indices = @transform_4, window_bounds = array<i64: 1, 128>}, {pipeline_mode = #tpu.pipeline_mode<synchronous>, transform_indices = @transform_5, window_bounds = array<i64: 128, 384>}, {pipeline_mode = #tpu.pipeline_mode<synchronous>, transform_indices = @transform_6, window_bounds = array<i64: 1, 384>}, {pipeline_mode = #tpu.pipeline_mode<synchronous>, transform_indices = @transform_7, window_bounds = array<i64: 2, 64, 128>}, {pipeline_mode = #tpu.pipeline_mode<synchronous>, transform_indices = @transform_8, window_bounds = array<i64: 1, 128>}, {pipeline_mode = #tpu.pipeline_mode<synchronous>, transform_indices = @transform_9, window_bounds = array<i64: 1, 128>}, {pipeline_mode = #tpu.pipeline_mode<synchronous>, transform_indices = @transform_10, window_bounds = array<i64: 1, 128>}, {pipeline_mode = #tpu.pipeline_mode<synchronous>, transform_indices = @transform_11, window_bounds = array<i64: 128, 128>}, {pipeline_mode = #tpu.pipeline_mode<synchronous>, transform_indices = @transform_12, window_bounds = array<i64: 1, 128>}, {pipeline_mode = #tpu.pipeline_mode<synchronous>, transform_indices = @transform_13, window_bounds = array<i64: 128, 128>}, {pipeline_mode = #tpu.pipeline_mode<synchronous>, transform_indices = @transform_14, window_bounds = array<i64: 1, 128>}, {pipeline_mode = #tpu.pipeline_mode<synchronous>, transform_indices = @transform_15, window_bounds = array<i64: 1, 128>}, {pipeline_mode = #tpu.pipeline_mode<synchronous>, transform_indices = @transform_16, window_bounds = array<i64: 1, 128>}, {transform_indices = @transform_17, window_bounds = array<i64: 2, 8, 128>}]} {
    %c0_i32 = arith.constant 0 : i32
    %0 = arith.cmpi eq, %arg1, %c0_i32 : i32
    %1 = arith.extui %0 : i1 to i32
    %c0_i32_0 = arith.constant 0 : i32
    %2 = arith.cmpi ne, %1, %c0_i32_0 : i32
    scf.if %2 {
      %c0_83 = arith.constant 0 : index
      %c0_84 = arith.constant 0 : index
      %c0_85 = arith.constant 0 : index
      %189 = vector.load %arg2[%c0_83, %c0_84, %c0_85] : memref<2x8x128xf32, #tpu.memory_space<vmem>>, vector<2x8x128xf32>
      %c0_86 = arith.constant 0 : index
      %c0_87 = arith.constant 0 : index
      %c0_88 = arith.constant 0 : index
      %190 = vector.load %arg20[%c0_86, %c0_87, %c0_88] : memref<2x8x128xf32, #tpu.memory_space<vmem>>, vector<2x8x128xf32>
      tpu.vector_store %arg20[%c0_86, %c0_87, %c0_88], %189 {strides = array<i32>} : memref<2x8x128xf32, #tpu.memory_space<vmem>>, vector<2x8x128xf32>,
    } else {
    }
    %c0 = arith.constant 0 : index
    %c0_1 = arith.constant 0 : index
    %c0_2 = arith.constant 0 : index
    %3 = vector.load %arg20[%c0, %c0_1, %c0_2] : memref<2x8x128xf32, #tpu.memory_space<vmem>>, vector<2x8x128xf32>
    %4 = vector.shape_cast %3 : vector<2x8x128xf32> to vector<16x128xf32>
    %c0_3 = arith.constant 0 : index
    %c0_4 = arith.constant 0 : index
    %c0_5 = arith.constant 0 : index
    %5 = vector.load %arg3[%c0_3, %c0_4, %c0_5] : memref<2x8x8xf32, #tpu.memory_space<vmem>>, vector<2x8x8xf32>
    "tpu.trace_start"() <{level = 10 : i32, message = "bts,bsh->bth"}> : () -> ()
    %cst = arith.constant dense<0.000000e+00> : vector<2x8x128xf32>
    %6 = tpu.matmul %5, %3, %cst {dimension_numbers = #tpu.dot_dimension_numbers<[2], [1], [1], [2], [0, 0, 0, 1, 1, 2], [0], [0]>} : vector<2x8x8xf32>, vector<2x8x128xf32>, vector<2x8x128xf32> -> vector<2x8x128xf32>
    "tpu.trace_stop"() : () -> ()
    %c0_6 = arith.constant 0 : index
    %c0_7 = arith.constant 0 : index
    %7 = vector.load %arg4[%c0_6, %c0_7] : memref<1x128xf32, #tpu.memory_space<vmem>>, vector<1x128xf32>
    %8 = arith.subf %3, %6 : vector<2x8x128xf32>
    %9 = vector.shape_cast %7 : vector<1x128xf32> to vector<1x1x128xf32>
    %10 = vector.broadcast %9 : vector<1x1x128xf32> to vector<2x8x128xf32>
    %11 = arith.mulf %10, %8 : vector<2x8x128xf32>
    %12 = arith.addf %6, %11 : vector<2x8x128xf32>
    %13 = arith.addf %12, %3 : vector<2x8x128xf32>
    %c0_8 = arith.constant 0 : index
    %c0_9 = arith.constant 0 : index
    %14 = vector.load %arg5[%c0_8, %c0_9] : memref<1x128xf32, #tpu.memory_space<vmem>>, vector<1x128xf32>
    %c0_10 = arith.constant 0 : index
    %c0_11 = arith.constant 0 : index
    %15 = vector.load %arg6[%c0_10, %c0_11] : memref<1x128xf32, #tpu.memory_space<vmem>>, vector<1x128xf32>
    %cst_12 = arith.constant dense<0.000000e+00> : vector<2x8xf32>
    %16 = vector.multi_reduction <add>, %13, %cst_12 [2] : vector<2x8x128xf32> to vector<2x8xf32>
    %17 = vector.shape_cast %16 : vector<2x8xf32> to vector<2x8x1xf32>
    %cst_13 = arith.constant 3.125000e-02 : f32
    %18 = vector.broadcast %cst_13 : f32 to vector<2x8x1xf32>
    %19 = arith.mulf %17, %18 : vector<2x8x1xf32>
    %20 = vector.broadcast %19 : vector<2x8x1xf32> to vector<2x8x128xf32>
    %21 = arith.subf %13, %20 : vector<2x8x128xf32>
    %22 = arith.mulf %21, %21 : vector<2x8x128xf32>
    %cst_14 = arith.constant dense<0.000000e+00> : vector<2x8xf32>
    %23 = vector.multi_reduction <add>, %22, %cst_14 [2] : vector<2x8x128xf32> to vector<2x8xf32>
    %24 = vector.shape_cast %23 : vector<2x8xf32> to vector<2x8x1xf32>
    %25 = arith.mulf %19, %19 : vector<2x8x1xf32>
    %cst_15 = arith.constant 9.600000e+01 : f32
    %26 = vector.broadcast %cst_15 : f32 to vector<2x8x1xf32>
    %27 = arith.mulf %26, %25 : vector<2x8x1xf32>
    %28 = arith.subf %24, %27 : vector<2x8x1xf32>
    %cst_16 = arith.constant 0.000000e+00 : f32
    %29 = vector.broadcast %cst_16 : f32 to vector<2x8x1xf32>
    %30 = arith.maximumf %28, %29 : vector<2x8x1xf32>
    %cst_17 = arith.constant 3.125000e-02 : f32
    %31 = vector.broadcast %cst_17 : f32 to vector<2x8x1xf32>
    %32 = arith.mulf %30, %31 : vector<2x8x1xf32>
    %cst_18 = arith.constant 9.99999996E-13 : f32
    %33 = vector.broadcast %cst_18 : f32 to vector<2x8x1xf32>
    %34 = arith.addf %32, %33 : vector<2x8x1xf32>
    %35 = math.rsqrt %34 : vector<2x8x1xf32>
    %36 = vector.broadcast %35 : vector<2x8x1xf32> to vector<2x8x128xf32>
    %37 = arith.mulf %21, %36 : vector<2x8x128xf32>
    %38 = vector.shape_cast %14 : vector<1x128xf32> to vector<1x1x128xf32>
    %39 = vector.broadcast %38 : vector<1x1x128xf32> to vector<2x8x128xf32>
    %40 = arith.mulf %37, %39 : vector<2x8x128xf32>
    %41 = vector.shape_cast %15 : vector<1x128xf32> to vector<1x1x128xf32>
    %42 = vector.broadcast %41 : vector<1x1x128xf32> to vector<2x8x128xf32>
    %43 = arith.addf %40, %42 : vector<2x8x128xf32>
    %c0_19 = arith.constant 0 : index
    %c0_20 = arith.constant 0 : index
    %44 = vector.load %arg7[%c0_19, %c0_20] : memref<128x384xf32, #tpu.memory_space<vmem>>, vector<128x384xf32>
    %cst_21 = arith.constant dense<0.000000e+00> : vector<16x384xf32>
    %45 = tpu.matmul %4, %44, %cst_21 {dimension_numbers = #tpu.dot_dimension_numbers<[1], [0], [0], [1], [0, 0, 1, 1], [], []>} : vector<16x128xf32>, vector<128x384xf32>, vector<16x384xf32> -> vector<16x384xf32>
    %c0_22 = arith.constant 0 : index
    %c0_23 = arith.constant 0 : index
    %46 = vector.load %arg8[%c0_22, %c0_23] : memref<1x384xf32, #tpu.memory_space<vmem>>, vector<1x384xf32>
    %47 = vector.broadcast %46 : vector<1x384xf32> to vector<16x384xf32>
    %48 = arith.addf %45, %47 : vector<16x384xf32>
    %49 = vector.shape_cast %48 : vector<16x384xf32> to vector<2x8x384xf32>
    %50 = vector.extract_strided_slice %49 {offsets = [0, 0, 0], sizes = [2, 8, 128], strides = [1, 1, 1]} : vector<2x8x384xf32> to vector<2x8x128xf32>
    %51 = vector.extract_strided_slice %49 {offsets = [0, 0, 128], sizes = [2, 8, 128], strides = [1, 1, 1]} : vector<2x8x384xf32> to vector<2x8x128xf32>
    %52 = vector.extract_strided_slice %49 {offsets = [0, 0, 256], sizes = [2, 8, 128], strides = [1, 1, 1]} : vector<2x8x384xf32> to vector<2x8x128xf32>
    %cst_24 = arith.constant 0.000000e+00 : f32
    %53 = vector.broadcast %cst_24 : f32 to vector<16x128xf32>
    %54 = vector.extract_strided_slice %50 {offsets = [0, 0, 0], sizes = [2, 8, 64], strides = [1, 1, 1]} : vector<2x8x128xf32> to vector<2x8x64xf32>
    %55 = vector.extract_strided_slice %51 {offsets = [0, 0, 0], sizes = [2, 8, 64], strides = [1, 1, 1]} : vector<2x8x128xf32> to vector<2x8x64xf32>
    "tpu.trace_start"() <{level = 10 : i32, message = "bqd,bkd->bqk"}> : () -> ()
    %cst_25 = arith.constant dense<0.000000e+00> : vector<2x8x8xf32>
    %56 = tpu.matmul %54, %55, %cst_25 {dimension_numbers = #tpu.dot_dimension_numbers<[2], [2], [1], [1], [0, 0, 0, 1, 1, 1], [0], [0]>} : vector<2x8x64xf32>, vector<2x8x64xf32>, vector<2x8x8xf32> -> vector<2x8x8xf32>
    "tpu.trace_stop"() : () -> ()
    %cst_26 = arith.constant dense<0xFF800000> : vector<2x8xf32>
    %57 = vector.multi_reduction <maximumf>, %56, %cst_26 [2] : vector<2x8x8xf32> to vector<2x8xf32>
    %58 = vector.shape_cast %57 : vector<2x8xf32> to vector<2x8x1xf32>
    %59 = vector.broadcast %58 : vector<2x8x1xf32> to vector<2x8x8xf32>
    %60 = arith.subf %56, %59 : vector<2x8x8xf32>
    %61 = math.exp %60 : vector<2x8x8xf32>
    %cst_27 = arith.constant dense<0.000000e+00> : vector<2x8xf32>
    %62 = vector.multi_reduction <add>, %61, %cst_27 [2] : vector<2x8x8xf32> to vector<2x8xf32>
    %63 = vector.shape_cast %62 : vector<2x8xf32> to vector<2x8x1xf32>
    %64 = tpu.reciprocal %63 {approx = true} : vector<2x8x1xf32> -> vector<2x8x1xf32>
    %65 = vector.broadcast %64 : vector<2x8x1xf32> to vector<2x8x8xf32>
    %66 = arith.mulf %61, %65 : vector<2x8x8xf32>
    %67 = vector.extract_strided_slice %52 {offsets = [0, 0, 0], sizes = [2, 8, 64], strides = [1, 1, 1]} : vector<2x8x128xf32> to vector<2x8x64xf32>
    "tpu.trace_start"() <{level = 10 : i32, message = "bqk,bkd->bqd"}> : () -> ()
    %cst_28 = arith.constant dense<0.000000e+00> : vector<2x8x64xf32>
    %68 = tpu.matmul %66, %67, %cst_28 {dimension_numbers = #tpu.dot_dimension_numbers<[2], [1], [1], [2], [0, 0, 0, 1, 1, 2], [0], [0]>} : vector<2x8x8xf32>, vector<2x8x64xf32>, vector<2x8x64xf32> -> vector<2x8x64xf32>
    "tpu.trace_stop"() : () -> ()
    %69 = vector.shape_cast %68 : vector<2x8x64xf32> to vector<16x64xf32>
    %c0_29 = arith.constant 0 : index
    %c0_30 = arith.constant 0 : index
    %c0_31 = arith.constant 0 : index
    %70 = vector.load %arg9[%c0_29, %c0_30, %c0_31] : memref<2x64x128xf32, #tpu.memory_space<vmem>>, vector<1x64x128xf32>
    %71 = vector.shape_cast %70 : vector<1x64x128xf32> to vector<64x128xf32>
    %cst_32 = arith.constant dense<0.000000e+00> : vector<16x128xf32>
    %72 = tpu.matmul %69, %71, %cst_32 {dimension_numbers = #tpu.dot_dimension_numbers<[1], [0], [0], [1], [0, 0, 1, 1], [], []>} : vector<16x64xf32>, vector<64x128xf32>, vector<16x128xf32> -> vector<16x128xf32>
    %73 = arith.addf %53, %72 : vector<16x128xf32>
    %74 = vector.extract_strided_slice %50 {offsets = [0, 0, 64], sizes = [2, 8, 64], strides = [1, 1, 1]} : vector<2x8x128xf32> to vector<2x8x64xf32>
    %75 = vector.extract_strided_slice %51 {offsets = [0, 0, 64], sizes = [2, 8, 64], strides = [1, 1, 1]} : vector<2x8x128xf32> to vector<2x8x64xf32>
    "tpu.trace_start"() <{level = 10 : i32, message = "bqd,bkd->bqk"}> : () -> ()
    %cst_33 = arith.constant dense<0.000000e+00> : vector<2x8x8xf32>
    %76 = tpu.matmul %74, %75, %cst_33 {dimension_numbers = #tpu.dot_dimension_numbers<[2], [2], [1], [1], [0, 0, 0, 1, 1, 1], [0], [0]>} : vector<2x8x64xf32>, vector<2x8x64xf32>, vector<2x8x8xf32> -> vector<2x8x8xf32>
    "tpu.trace_stop"() : () -> ()
    %cst_34 = arith.constant dense<0xFF800000> : vector<2x8xf32>
    %77 = vector.multi_reduction <maximumf>, %76, %cst_34 [2] : vector<2x8x8xf32> to vector<2x8xf32>
    %78 = vector.shape_cast %77 : vector<2x8xf32> to vector<2x8x1xf32>
    %79 = vector.broadcast %78 : vector<2x8x1xf32> to vector<2x8x8xf32>
    %80 = arith.subf %76, %79 : vector<2x8x8xf32>
    %81 = math.exp %80 : vector<2x8x8xf32>
    %cst_35 = arith.constant dense<0.000000e+00> : vector<2x8xf32>
    %82 = vector.multi_reduction <add>, %81, %cst_35 [2] : vector<2x8x8xf32> to vector<2x8xf32>
    %83 = vector.shape_cast %82 : vector<2x8xf32> to vector<2x8x1xf32>
    %84 = tpu.reciprocal %83 {approx = true} : vector<2x8x1xf32> -> vector<2x8x1xf32>
    %85 = vector.broadcast %84 : vector<2x8x1xf32> to vector<2x8x8xf32>
    %86 = arith.mulf %81, %85 : vector<2x8x8xf32>
    %87 = vector.extract_strided_slice %52 {offsets = [0, 0, 64], sizes = [2, 8, 64], strides = [1, 1, 1]} : vector<2x8x128xf32> to vector<2x8x64xf32>
    "tpu.trace_start"() <{level = 10 : i32, message = "bqk,bkd->bqd"}> : () -> ()
    %cst_36 = arith.constant dense<0.000000e+00> : vector<2x8x64xf32>
    %88 = tpu.matmul %86, %87, %cst_36 {dimension_numbers = #tpu.dot_dimension_numbers<[2], [1], [1], [2], [0, 0, 0, 1, 1, 2], [0], [0]>} : vector<2x8x8xf32>, vector<2x8x64xf32>, vector<2x8x64xf32> -> vector<2x8x64xf32>
    "tpu.trace_stop"() : () -> ()
    %89 = vector.shape_cast %88 : vector<2x8x64xf32> to vector<16x64xf32>
    %c1 = arith.constant 1 : index
    %c0_37 = arith.constant 0 : index
    %c0_38 = arith.constant 0 : index
    %90 = vector.load %arg9[%c1, %c0_37, %c0_38] : memref<2x64x128xf32, #tpu.memory_space<vmem>>, vector<1x64x128xf32>
    %91 = vector.shape_cast %90 : vector<1x64x128xf32> to vector<64x128xf32>
    %cst_39 = arith.constant dense<0.000000e+00> : vector<16x128xf32>
    %92 = tpu.matmul %89, %91, %cst_39 {dimension_numbers = #tpu.dot_dimension_numbers<[1], [0], [0], [1], [0, 0, 1, 1], [], []>} : vector<16x64xf32>, vector<64x128xf32>, vector<16x128xf32> -> vector<16x128xf32>
    %93 = arith.addf %73, %92 : vector<16x128xf32>
    %c0_40 = arith.constant 0 : index
    %c0_41 = arith.constant 0 : index
    %94 = vector.load %arg10[%c0_40, %c0_41] : memref<1x128xf32, #tpu.memory_space<vmem>>, vector<1x128xf32>
    %95 = vector.broadcast %94 : vector<1x128xf32> to vector<16x128xf32>
    %96 = arith.addf %93, %95 : vector<16x128xf32>
    %97 = vector.shape_cast %96 : vector<16x128xf32> to vector<2x8x128xf32>
    %98 = arith.addf %97, %3 : vector<2x8x128xf32>
    %c0_42 = arith.constant 0 : index
    %c0_43 = arith.constant 0 : index
    %99 = vector.load %arg11[%c0_42, %c0_43] : memref<1x128xf32, #tpu.memory_space<vmem>>, vector<1x128xf32>
    %c0_44 = arith.constant 0 : index
    %c0_45 = arith.constant 0 : index
    %100 = vector.load %arg12[%c0_44, %c0_45] : memref<1x128xf32, #tpu.memory_space<vmem>>, vector<1x128xf32>
    %cst_46 = arith.constant dense<0.000000e+00> : vector<2x8xf32>
    %101 = vector.multi_reduction <add>, %98, %cst_46 [2] : vector<2x8x128xf32> to vector<2x8xf32>
    %102 = vector.shape_cast %101 : vector<2x8xf32> to vector<2x8x1xf32>
    %cst_47 = arith.constant 3.125000e-02 : f32
    %103 = vector.broadcast %cst_47 : f32 to vector<2x8x1xf32>
    %104 = arith.mulf %102, %103 : vector<2x8x1xf32>
    %105 = vector.broadcast %104 : vector<2x8x1xf32> to vector<2x8x128xf32>
    %106 = arith.subf %98, %105 : vector<2x8x128xf32>
    %107 = arith.mulf %106, %106 : vector<2x8x128xf32>
    %cst_48 = arith.constant dense<0.000000e+00> : vector<2x8xf32>
    %108 = vector.multi_reduction <add>, %107, %cst_48 [2] : vector<2x8x128xf32> to vector<2x8xf32>
    %109 = vector.shape_cast %108 : vector<2x8xf32> to vector<2x8x1xf32>
    %110 = arith.mulf %104, %104 : vector<2x8x1xf32>
    %cst_49 = arith.constant 9.600000e+01 : f32
    %111 = vector.broadcast %cst_49 : f32 to vector<2x8x1xf32>
    %112 = arith.mulf %111, %110 : vector<2x8x1xf32>
    %113 = arith.subf %109, %112 : vector<2x8x1xf32>
    %cst_50 = arith.constant 0.000000e+00 : f32
    %114 = vector.broadcast %cst_50 : f32 to vector<2x8x1xf32>
    %115 = arith.maximumf %113, %114 : vector<2x8x1xf32>
    %cst_51 = arith.constant 3.125000e-02 : f32
    %116 = vector.broadcast %cst_51 : f32 to vector<2x8x1xf32>
    %117 = arith.mulf %115, %116 : vector<2x8x1xf32>
    %cst_52 = arith.constant 9.99999996E-13 : f32
    %118 = vector.broadcast %cst_52 : f32 to vector<2x8x1xf32>
    %119 = arith.addf %117, %118 : vector<2x8x1xf32>
    %120 = math.rsqrt %119 : vector<2x8x1xf32>
    %121 = vector.broadcast %120 : vector<2x8x1xf32> to vector<2x8x128xf32>
    %122 = arith.mulf %106, %121 : vector<2x8x128xf32>
    %123 = vector.shape_cast %99 : vector<1x128xf32> to vector<1x1x128xf32>
    %124 = vector.broadcast %123 : vector<1x1x128xf32> to vector<2x8x128xf32>
    %125 = arith.mulf %122, %124 : vector<2x8x128xf32>
    %126 = vector.shape_cast %100 : vector<1x128xf32> to vector<1x1x128xf32>
    %127 = vector.broadcast %126 : vector<1x1x128xf32> to vector<2x8x128xf32>
    %128 = arith.addf %125, %127 : vector<2x8x128xf32>
    %cst_53 = arith.constant 0.699999988 : f32
    %129 = vector.broadcast %cst_53 : f32 to vector<2x8x128xf32>
    %130 = arith.mulf %129, %43 : vector<2x8x128xf32>
    %cst_54 = arith.constant 3.000000e-01 : f32
    %131 = vector.broadcast %cst_54 : f32 to vector<2x8x128xf32>
    %132 = arith.mulf %131, %128 : vector<2x8x128xf32>
    %133 = arith.addf %130, %132 : vector<2x8x128xf32>
    %134 = vector.shape_cast %133 : vector<2x8x128xf32> to vector<16x128xf32>
    %c0_55 = arith.constant 0 : index
    %c0_56 = arith.constant 0 : index
    %135 = vector.load %arg13[%c0_55, %c0_56] : memref<128x128xf32, #tpu.memory_space<vmem>>, vector<128x128xf32>
    %cst_57 = arith.constant dense<0.000000e+00> : vector<16x128xf32>
    %136 = tpu.matmul %134, %135, %cst_57 {dimension_numbers = #tpu.dot_dimension_numbers<[1], [0], [0], [1], [0, 0, 1, 1], [], []>} : vector<16x128xf32>, vector<128x128xf32>, vector<16x128xf32> -> vector<16x128xf32>
    %c0_58 = arith.constant 0 : index
    %c0_59 = arith.constant 0 : index
    %137 = vector.load %arg14[%c0_58, %c0_59] : memref<1x128xf32, #tpu.memory_space<vmem>>, vector<1x128xf32>
    %138 = vector.broadcast %137 : vector<1x128xf32> to vector<16x128xf32>
    %139 = arith.addf %136, %138 : vector<16x128xf32>
    %cst_60 = arith.constant 5.000000e-01 : f32
    %140 = vector.broadcast %cst_60 : f32 to vector<16x128xf32>
    %141 = arith.mulf %139, %140 : vector<16x128xf32>
    %cst_61 = arith.constant 1.41421354 : f32
    %142 = vector.broadcast %cst_61 : f32 to vector<16x128xf32>
    %143 = arith.divf %139, %142 : vector<16x128xf32>
    %144 = math.erf %143 : vector<16x128xf32>
    %cst_62 = arith.constant 1.000000e+00 : f32
    %145 = vector.broadcast %cst_62 : f32 to vector<16x128xf32>
    %146 = arith.addf %145, %144 : vector<16x128xf32>
    %147 = arith.mulf %141, %146 : vector<16x128xf32>
    %c0_63 = arith.constant 0 : index
    %c0_64 = arith.constant 0 : index
    %148 = vector.load %arg15[%c0_63, %c0_64] : memref<128x128xf32, #tpu.memory_space<vmem>>, vector<128x128xf32>
    %cst_65 = arith.constant dense<0.000000e+00> : vector<16x128xf32>
    %149 = tpu.matmul %147, %148, %cst_65 {dimension_numbers = #tpu.dot_dimension_numbers<[1], [0], [0], [1], [0, 0, 1, 1], [], []>} : vector<16x128xf32>, vector<128x128xf32>, vector<16x128xf32> -> vector<16x128xf32>
    %c0_66 = arith.constant 0 : index
    %c0_67 = arith.constant 0 : index
    %150 = vector.load %arg16[%c0_66, %c0_67] : memref<1x128xf32, #tpu.memory_space<vmem>>, vector<1x128xf32>
    %151 = vector.broadcast %150 : vector<1x128xf32> to vector<16x128xf32>
    %152 = arith.addf %149, %151 : vector<16x128xf32>
    %153 = vector.shape_cast %152 : vector<16x128xf32> to vector<2x8x128xf32>
    %154 = arith.addf %153, %133 : vector<2x8x128xf32>
    %c0_68 = arith.constant 0 : index
    %c0_69 = arith.constant 0 : index
    %155 = vector.load %arg17[%c0_68, %c0_69] : memref<1x128xf32, #tpu.memory_space<vmem>>, vector<1x128xf32>
    %c0_70 = arith.constant 0 : index
    %c0_71 = arith.constant 0 : index
    %156 = vector.load %arg18[%c0_70, %c0_71] : memref<1x128xf32, #tpu.memory_space<vmem>>, vector<1x128xf32>
    %cst_72 = arith.constant dense<0.000000e+00> : vector<2x8xf32>
    %157 = vector.multi_reduction <add>, %154, %cst_72 [2] : vector<2x8x128xf32> to vector<2x8xf32>
    %158 = vector.shape_cast %157 : vector<2x8xf32> to vector<2x8x1xf32>
    %cst_73 = arith.constant 3.125000e-02 : f32
    %159 = vector.broadcast %cst_73 : f32 to vector<2x8x1xf32>
    %160 = arith.mulf %158, %159 : vector<2x8x1xf32>
    %161 = vector.broadcast %160 : vector<2x8x1xf32> to vector<2x8x128xf32>
    %162 = arith.subf %154, %161 : vector<2x8x128xf32>
    %163 = arith.mulf %162, %162 : vector<2x8x128xf32>
    %cst_74 = arith.constant dense<0.000000e+00> : vector<2x8xf32>
    %164 = vector.multi_reduction <add>, %163, %cst_74 [2] : vector<2x8x128xf32> to vector<2x8xf32>
    %165 = vector.shape_cast %164 : vector<2x8xf32> to vector<2x8x1xf32>
    %166 = arith.mulf %160, %160 : vector<2x8x1xf32>
    %cst_75 = arith.constant 9.600000e+01 : f32
    %167 = vector.broadcast %cst_75 : f32 to vector<2x8x1xf32>
    %168 = arith.mulf %167, %166 : vector<2x8x1xf32>
    %169 = arith.subf %165, %168 : vector<2x8x1xf32>
    %cst_76 = arith.constant 0.000000e+00 : f32
    %170 = vector.broadcast %cst_76 : f32 to vector<2x8x1xf32>
    %171 = arith.maximumf %169, %170 : vector<2x8x1xf32>
    %cst_77 = arith.constant 3.125000e-02 : f32
    %172 = vector.broadcast %cst_77 : f32 to vector<2x8x1xf32>
    %173 = arith.mulf %171, %172 : vector<2x8x1xf32>
    %cst_78 = arith.constant 9.99999996E-13 : f32
    %174 = vector.broadcast %cst_78 : f32 to vector<2x8x1xf32>
    %175 = arith.addf %173, %174 : vector<2x8x1xf32>
    %176 = math.rsqrt %175 : vector<2x8x1xf32>
    %177 = vector.broadcast %176 : vector<2x8x1xf32> to vector<2x8x128xf32>
    %178 = arith.mulf %162, %177 : vector<2x8x128xf32>
    %179 = vector.shape_cast %155 : vector<1x128xf32> to vector<1x1x128xf32>
    %180 = vector.broadcast %179 : vector<1x1x128xf32> to vector<2x8x128xf32>
    %181 = arith.mulf %178, %180 : vector<2x8x128xf32>
    %182 = vector.shape_cast %156 : vector<1x128xf32> to vector<1x1x128xf32>
    %183 = vector.broadcast %182 : vector<1x1x128xf32> to vector<2x8x128xf32>
    %184 = arith.addf %181, %183 : vector<2x8x128xf32>
    %c0_79 = arith.constant 0 : index
    %c0_80 = arith.constant 0 : index
    %c0_81 = arith.constant 0 : index
    %185 = vector.load %arg20[%c0_79, %c0_80, %c0_81] : memref<2x8x128xf32, #tpu.memory_space<vmem>>, vector<2x8x128xf32>
    tpu.vector_store %arg20[%c0_79, %c0_80, %c0_81], %184 {strides = array<i32>} : memref<2x8x128xf32, #tpu.memory_space<vmem>>, vector<2x8x128xf32>,
    %c1_i32 = arith.constant 1 : i32
    %186 = arith.cmpi eq, %arg1, %c1_i32 : i32
    %187 = arith.extui %186 : i1 to i32
    %c0_i32_82 = arith.constant 0 : i32
    %188 = arith.cmpi ne, %187, %c0_i32_82 : i32
    scf.if %188 {
      %c0_83 = arith.constant 0 : index
      %c0_84 = arith.constant 0 : index
      %c0_85 = arith.constant 0 : index
      %189 = vector.load %arg19[%c0_83, %c0_84, %c0_85] : memref<2x8x128xf32, #tpu.memory_space<vmem>>, vector<2x8x128xf32>
      tpu.vector_store %arg19[%c0_83, %c0_84, %c0_85], %184 {strides = array<i32>} : memref<2x8x128xf32, #tpu.memory_space<vmem>>, vector<2x8x128xf32>,
    } else {
    }
    return
  }
  func.func @transform_0(%arg0: i32, %arg1: i32) -> (i32, i32, i32) {
    %c0_i32 = arith.constant 0 : i32
    %c0_i32_0 = arith.constant 0 : i32
    %c0_i32_1 = arith.constant 0 : i32
    return %arg0, %c0_i32, %c0_i32_0 : i32, i32, i32
  }
  func.func @transform_1(%arg0: i32, %arg1: i32) -> (i32, i32, i32) {
    %c0_i32 = arith.constant 0 : i32
    %c0_i32_0 = arith.constant 0 : i32
    %c0_i32_1 = arith.constant 0 : i32
    %c0_i32_2 = arith.constant 0 : i32
    return %c0_i32, %c0_i32_0, %c0_i32_1 : i32, i32, i32
  }
  func.func @transform_2(%arg0: i32, %arg1: i32) -> (i32, i32) {
    %c0_i32 = arith.constant 0 : i32
    %c0_i32_0 = arith.constant 0 : i32
    %c0_i32_1 = arith.constant 0 : i32
    return %c0_i32, %c0_i32_0 : i32, i32
  }
  func.func @transform_3(%arg0: i32, %arg1: i32) -> (i32, i32) {
    %c0_i32 = arith.constant 0 : i32
    %c0_i32_0 = arith.constant 0 : i32
    %c0_i32_1 = arith.constant 0 : i32
    return %c0_i32, %c0_i32_0 : i32, i32
  }
  func.func @transform_4(%arg0: i32, %arg1: i32) -> (i32, i32) {
    %c0_i32 = arith.constant 0 : i32
    %c0_i32_0 = arith.constant 0 : i32
    %c0_i32_1 = arith.constant 0 : i32
    return %c0_i32, %c0_i32_0 : i32, i32
  }
  func.func @transform_5(%arg0: i32, %arg1: i32) -> (i32, i32) {
    %c0_i32 = arith.constant 0 : i32
    %c0_i32_0 = arith.constant 0 : i32
    %c0_i32_1 = arith.constant 0 : i32
    return %c0_i32, %c0_i32_0 : i32, i32
  }
  func.func @transform_6(%arg0: i32, %arg1: i32) -> (i32, i32) {
    %c0_i32 = arith.constant 0 : i32
    %c0_i32_0 = arith.constant 0 : i32
    %c0_i32_1 = arith.constant 0 : i32
    return %c0_i32, %c0_i32_0 : i32, i32
  }
  func.func @transform_7(%arg0: i32, %arg1: i32) -> (i32, i32, i32) {
    %c0_i32 = arith.constant 0 : i32
    %c0_i32_0 = arith.constant 0 : i32
    %c0_i32_1 = arith.constant 0 : i32
    %c0_i32_2 = arith.constant 0 : i32
    return %c0_i32, %c0_i32_0, %c0_i32_1 : i32, i32, i32
  }
  func.func @transform_8(%arg0: i32, %arg1: i32) -> (i32, i32) {
    %c0_i32 = arith.constant 0 : i32
    %c0_i32_0 = arith.constant 0 : i32
    %c0_i32_1 = arith.constant 0 : i32
    return %c0_i32, %c0_i32_0 : i32, i32
  }
  func.func @transform_9(%arg0: i32, %arg1: i32) -> (i32, i32) {
    %c0_i32 = arith.constant 0 : i32
    %c0_i32_0 = arith.constant 0 : i32
    %c0_i32_1 = arith.constant 0 : i32
    return %c0_i32, %c0_i32_0 : i32, i32
  }
  func.func @transform_10(%arg0: i32, %arg1: i32) -> (i32, i32) {
    %c0_i32 = arith.constant 0 : i32
    %c0_i32_0 = arith.constant 0 : i32
    %c0_i32_1 = arith.constant 0 : i32
    return %c0_i32, %c0_i32_0 : i32, i32
  }
  func.func @transform_11(%arg0: i32, %arg1: i32) -> (i32, i32) {
    %c0_i32 = arith.constant 0 : i32
    %c0_i32_0 = arith.constant 0 : i32
    %c0_i32_1 = arith.constant 0 : i32
    return %c0_i32, %c0_i32_0 : i32, i32
  }
  func.func @transform_12(%arg0: i32, %arg1: i32) -> (i32, i32) {
    %c0_i32 = arith.constant 0 : i32
    %c0_i32_0 = arith.constant 0 : i32
    %c0_i32_1 = arith.constant 0 : i32
    return %c0_i32, %c0_i32_0 : i32, i32
  }
  func.func @transform_13(%arg0: i32, %arg1: i32) -> (i32, i32) {
    %c0_i32 = arith.constant 0 : i32
    %c0_i32_0 = arith.constant 0 : i32
    %c0_i32_1 = arith.constant 0 : i32
    return %c0_i32, %c0_i32_0 : i32, i32
  }
  func.func @transform_14(%arg0: i32, %arg1: i32) -> (i32, i32) {
    %c0_i32 = arith.constant 0 : i32
    %c0_i32_0 = arith.constant 0 : i32
    %c0_i32_1 = arith.constant 0 : i32
    return %c0_i32, %c0_i32_0 : i32, i32
  }
  func.func @transform_15(%arg0: i32, %arg1: i32) -> (i32, i32) {
    %c0_i32 = arith.constant 0 : i32
    %c0_i32_0 = arith.constant 0 : i32
    %c0_i32_1 = arith.constant 0 : i32
    return %c0_i32, %c0_i32_0 : i32, i32
  }
  func.func @transform_16(%arg0: i32, %arg1: i32) -> (i32, i32) {
    %c0_i32 = arith.constant 0 : i32
    %c0_i32_0 = arith.constant 0 : i32
    %c0_i32_1 = arith.constant 0 : i32
    return %c0_i32, %c0_i32_0 : i32, i32
  }
  func.func @transform_17(%arg0: i32, %arg1: i32) -> (i32, i32, i32) {
    %c0_i32 = arith.constant 0 : i32
    %c0_i32_0 = arith.constant 0 : i32
    %c0_i32_1 = arith.constant 0 : i32
    return %arg0, %c0_i32, %c0_i32_0 : i32, i32, i32
  }
}

</mosaic_0001>

<llo_original>
// kernel: tpu_custom_call.1
$region0: #{tpu_custom_call.1}
  #allocation0 [shape = 'u32[]', space=smem, size = 0x4, offset = 0x4, fixed_abs, tag = 'smem constant byte address 0x4 - core index']
  #allocation1 [shape = 'u32[144,128]{1,0:T(1,128)}', space=vmem, size = 0x12000, scoped, tag = 'internal scratch']
  #allocation2 [shape = 'f32[2,8,128]{2,1,0:T(8,128)}', space=vmem, size = 0x2000, scoped, tag = 'scratch operand']
  %s0 = inlined_call_operand.hbm [shape: f32[2,8,128], index: 0, kind: input, shape index: {}]
  %s1 = inlined_call_operand.hbm [shape: f32[2,8,8], index: 1, kind: input, shape index: {}]
  %s2 = inlined_call_operand.vmem [shape: f32[1,128], index: 2, kind: input, shape index: {}]
  %s3 = inlined_call_operand.vmem [shape: f32[1,128], index: 3, kind: input, shape index: {}]
  %s4 = inlined_call_operand.vmem [shape: f32[1,128], index: 4, kind: input, shape index: {}]
  %s5 = inlined_call_operand.hbm [shape: f32[128,384], index: 5, kind: input, shape index: {}]
  %s6 = inlined_call_operand.vmem [shape: f32[1,384], index: 6, kind: input, shape index: {}]
  %s7 = inlined_call_operand.hbm [shape: f32[2,64,128], index: 7, kind: input, shape index: {}]
  %s8 = inlined_call_operand.vmem [shape: f32[1,128], index: 8, kind: input, shape index: {}]
  %s9 = inlined_call_operand.vmem [shape: f32[1,128], index: 9, kind: input, shape index: {}]
  %s10 = inlined_call_operand.vmem [shape: f32[1,128], index: 10, kind: input, shape index: {}]
  %s11 = inlined_call_operand.hbm [shape: f32[128,128], index: 11, kind: input, shape index: {}]
  %s12 = inlined_call_operand.vmem [shape: f32[1,128], index: 12, kind: input, shape index: {}]
  %s13 = inlined_call_operand.hbm [shape: f32[128,128], index: 13, kind: input, shape index: {}]
  %s14 = inlined_call_operand.vmem [shape: f32[1,128], index: 14, kind: input, shape index: {}]
  %s15 = inlined_call_operand.vmem [shape: f32[1,128], index: 15, kind: input, shape index: {}]
  %s16 = inlined_call_operand.vmem [shape: f32[1,128], index: 16, kind: input, shape index: {}]
  %s17 = inlined_call_operand.hbm [shape: f32[2,8,128], index: 17, kind: output, shape index: {}]
  %s18 = sld [smem:[#allocation0]]
  $region133: #{tpu_custom_call.1} parent=0
    _
  %s20 = ssub.s32 1, %s18
  %s21 = scalar_select 0, %s20, %s18
  $region1: #{tpu_custom_call.1} parent=0
    #allocation3 [shape = 'u8[8192]{0}', space=vmem, size = 0x2000, scoped, tag = 'input window, operand 0, single buffered']
    #allocation4 [shape = 's32[2]{0}', space=sflag, size = 0x8, scoped, tag = 'scoped memory for tpu_custom_call.1']
    #allocation5 [shape = 's32[2]{0}', space=sflag, size = 0x8, scoped, tag = 'scoped memory for tpu_custom_call.1']
    #allocation6 [shape = 'u8[8192]{0}', space=vmem, size = 0x2000, scoped, tag = 'input window, operand 1, single buffered']
    #allocation7 [shape = 's32[1]{0}', space=sflag, size = 0x4, scoped, tag = 'scoped memory for tpu_custom_call.1']
    #allocation8 [shape = 'u8[196608]{0}', space=vmem, size = 0x30000, scoped, tag = 'input window, operand 5, single buffered']
    #allocation9 [shape = 'u8[65536]{0}', space=vmem, size = 0x10000, scoped, tag = 'input window, operand 7, single buffered']
    #allocation10 [shape = 's32[1]{0}', space=sflag, size = 0x4, scoped, tag = 'scoped memory for tpu_custom_call.1']
    #allocation11 [shape = 'u8[65536]{0}', space=vmem, size = 0x10000, scoped, tag = 'input window, operand 11, single buffered']
    #allocation12 [shape = 'u8[65536]{0}', space=vmem, size = 0x10000, scoped, tag = 'input window, operand 13, single buffered']
    #allocation13 [shape = 's32[1]{0}', space=sflag, size = 0x4, scoped, tag = 'scoped memory for tpu_custom_call.1']
    #allocation14 [shape = 'u8[8192]{0}', space=vmem, size = 0x2000, scoped, tag = 'output window, operand 0, single buffered']
    %22 = vsyncpa [#allocation4], 0
    %23 = vsyncpa [#allocation7], 0
    %24 = vsyncpa [#allocation10], 0
    %25 = vsyncpa [#allocation13], 0
    %26 = vsyncpa [#allocation5], 0
    loop: start=0, step=1, limit=4
    $region2: #{tpu_custom_call.1} parent=1 // loop_pre_header
      _
    $region3: #{tpu_custom_call.1} parent=1 // loop_header
      %s28 = sphi 0, %s32
      %p29 = scmp.ge.s32.totalorder %s28, 4
      %s35 = sphi 0, %s47
      %s36 = sphi 0, %s43
      %s37 = sphi 0, %s35
      %s38 = sphi 0, %s36
      %s39 = sphi 0, %s37
      %s40 = sphi 0, %s38
      %s50 = sphi 0, %s52
      %s53 = sphi 0, %s50
      %s54 = sphi 0, %s53
      %s70 = sphi 0, %s54
      %s74 = sphi 0, %s74
      %s76 = sphi 0, %s74
      %s77 = sphi 0, %s76
      %s91 = sphi 0, %s77
      %s95 = sphi 0, %s95
      %s97 = sphi 0, %s95
      %s98 = sphi 0, %s97
      %s112 = sphi 0, %s98
      %s116 = sphi 0, %s116
      %s118 = sphi 0, %s116
      %s119 = sphi 0, %s118
      %s133 = sphi 0, %s119
      %s137 = sphi 0, %s137
      %s139 = sphi 0, %s137
      %s140 = sphi 0, %s139
      %s154 = sphi 0, %s140
      %s158 = sphi 0, %s158
      %s160 = sphi 0, %s158
      %s161 = sphi 0, %s160
      %s175 = sphi 0, %s161
      %s179 = sphi 0, %s179
      %s181 = sphi 0, %s179
      %s182 = sphi 0, %s181
      %s196 = sphi 0, %s182
      %s200 = sphi 0, %s200
      %s202 = sphi 0, %s200
      %s203 = sphi 0, %s202
      %s217 = sphi 0, %s203
      %s221 = sphi 0, %s221
      %s223 = sphi 0, %s221
      %s224 = sphi 0, %s223
      %s238 = sphi 0, %s224
      %s242 = sphi 0, %s242
      %s244 = sphi 0, %s242
      %s245 = sphi 0, %s244
      %s259 = sphi 0, %s245
      %s263 = sphi 0, %s263
      %s265 = sphi 0, %s263
      %s266 = sphi 0, %s265
      %s280 = sphi 0, %s266
      %s284 = sphi 0, %s284
      %s286 = sphi 0, %s284
      %s287 = sphi 0, %s286
      %s301 = sphi 0, %s287
      %s305 = sphi 0, %s305
      %s307 = sphi 0, %s305
      %s308 = sphi 0, %s307
      %s322 = sphi 0, %s308
      %s326 = sphi 0, %s326
      %s328 = sphi 0, %s326
      %s329 = sphi 0, %s328
      %s343 = sphi 0, %s329
      %s347 = sphi 0, %s347
      %s349 = sphi 0, %s347
      %s350 = sphi 0, %s349
      %s364 = sphi 0, %s350
      %s368 = sphi 0, %s368
      %s370 = sphi 0, %s368
      %s371 = sphi 0, %s370
      %s385 = sphi 0, %s371
      %s389 = sphi 0, %s389
      %s391 = sphi 0, %s389
      %s392 = sphi 0, %s391
      %s406 = sphi 0, %s392
      %s412 = sphi 0, %s414
      %s415 = sphi 0, %s412
      %s416 = sphi 0, %s415
      %s432 = sphi 0, %s416
    $region4: #{tpu_custom_call.1} parent=1 // loop_header_branch
      %31 = sbr.rel (%p29) target = $region8
    $region5: #{tpu_custom_call.1} parent=1 // loop_body
      %s33 = ssub.s32 %s28, 1
      %s34 = ssub.s32 %s28, 2
      %s41 = sadd.s32 1, %s36
      %p42 = scmp.ge.s32.totalorder %s41, 2
      %s43 = scalar_select %p42, 0, %s41
      %s44 = sadd.s32 1, %s35
      %s45 = scalar_select %p42, %s44, %s35
      %p46 = scmp.ge.s32.totalorder %s45, 1
      %s47 = scalar_select %p46, 0, %s45
      %s48 = ssub.s32 %s35, %s47
      %p49 = scmp.eq.s32.totalorder %s48, 0
      %s51 = sadd.s32 %s50, 1
      %s52 = scalar_select %p49, %s50, %s51
      %p55 = pneg %p49
      %p56 = scmp.eq.s32.totalorder %s28, 1
      %p57 = por %p55, %p56
      %p58 = scmp.ne.s32.totalorder %s50, %s53
      %p59 = scmp.eq.s32.totalorder %s28, 0
      %p60 = por %p58, %p59
      %p61 = scmp.ne.s32.totalorder %s50, %s53
      %p62 = scmp.eq.s32.totalorder %s33, 1
      %p63 = por %p61, %p62
      %p64 = scmp.ne.s32.totalorder %s53, %s54
      %p65 = scmp.eq.s32.totalorder %s33, 0
      %p66 = por %p64, %p65
      %p67 = scmp.ne.s32.totalorder %s53, %s54
      %p68 = scmp.eq.s32.totalorder %s34, 1
      %p69 = por %p67, %p68
      %p71 = scmp.ne.s32.totalorder %s54, %s70
      %p72 = scmp.eq.s32.totalorder %s34, 0
      %p73 = por %p71, %p72
      %s75 = sadd.s32 %s74, 1
      %p78 = scmp.eq.s32.totalorder %s28, 1
      %p79 = scmp.ne.s32.totalorder %s74, %s76
      %p80 = scmp.eq.s32.totalorder %s28, 0
      %p81 = por %p79, %p80
      %p82 = scmp.ne.s32.totalorder %s74, %s76
      %p83 = scmp.eq.s32.totalorder %s33, 1
      %p84 = por %p82, %p83
      %p85 = scmp.ne.s32.totalorder %s76, %s77
      %p86 = scmp.eq.s32.totalorder %s33, 0
      %p87 = por %p85, %p86
      %p88 = scmp.ne.s32.totalorder %s76, %s77
      %p89 = scmp.eq.s32.totalorder %s34, 1
      %p90 = por %p88, %p89
      %p92 = scmp.ne.s32.totalorder %s77, %s91
      %p93 = scmp.eq.s32.totalorder %s34, 0
      %p94 = por %p92, %p93
      %s96 = sadd.s32 %s95, 1
      %p99 = scmp.eq.s32.totalorder %s28, 1
      %p100 = scmp.ne.s32.totalorder %s95, %s97
      %p101 = scmp.eq.s32.totalorder %s28, 0
      %p102 = por %p100, %p101
      %p103 = scmp.ne.s32.totalorder %s95, %s97
      %p104 = scmp.eq.s32.totalorder %s33, 1
      %p105 = por %p103, %p104
      %p106 = scmp.ne.s32.totalorder %s97, %s98
      %p107 = scmp.eq.s32.totalorder %s33, 0
      %p108 = por %p106, %p107
      %p109 = scmp.ne.s32.totalorder %s97, %s98
      %p110 = scmp.eq.s32.totalorder %s34, 1
      %p111 = por %p109, %p110
      %p113 = scmp.ne.s32.totalorder %s98, %s112
      %p114 = scmp.eq.s32.totalorder %s34, 0
      %p115 = por %p113, %p114
      %s117 = sadd.s32 %s116, 1
      %p120 = scmp.eq.s32.totalorder %s28, 1
      %p121 = scmp.ne.s32.totalorder %s116, %s118
      %p122 = scmp.eq.s32.totalorder %s28, 0
      %p123 = por %p121, %p122
      %p124 = scmp.ne.s32.totalorder %s116, %s118
      %p125 = scmp.eq.s32.totalorder %s33, 1
      %p126 = por %p124, %p125
      %p127 = scmp.ne.s32.totalorder %s118, %s119
      %p128 = scmp.eq.s32.totalorder %s33, 0
      %p129 = por %p127, %p128
      %p130 = scmp.ne.s32.totalorder %s118, %s119
      %p131 = scmp.eq.s32.totalorder %s34, 1
      %p132 = por %p130, %p131
      %p134 = scmp.ne.s32.totalorder %s119, %s133
      %p135 = scmp.eq.s32.totalorder %s34, 0
      %p136 = por %p134, %p135
      %s138 = sadd.s32 %s137, 1
      %p141 = scmp.eq.s32.totalorder %s28, 1
      %p142 = scmp.ne.s32.totalorder %s137, %s139
      %p143 = scmp.eq.s32.totalorder %s28, 0
      %p144 = por %p142, %p143
      %p145 = scmp.ne.s32.totalorder %s137, %s139
      %p146 = scmp.eq.s32.totalorder %s33, 1
      %p147 = por %p145, %p146
      %p148 = scmp.ne.s32.totalorder %s139, %s140
      %p149 = scmp.eq.s32.totalorder %s33, 0
      %p150 = por %p148, %p149
      %p151 = scmp.ne.s32.totalorder %s139, %s140
      %p152 = scmp.eq.s32.totalorder %s34, 1
      %p153 = por %p151, %p152
      %p155 = scmp.ne.s32.totalorder %s140, %s154
      %p156 = scmp.eq.s32.totalorder %s34, 0
      %p157 = por %p155, %p156
      %s159 = sadd.s32 %s158, 1
      %p162 = scmp.eq.s32.totalorder %s28, 1
      %p163 = scmp.ne.s32.totalorder %s158, %s160
      %p164 = scmp.eq.s32.totalorder %s28, 0
      %p165 = por %p163, %p164
      %p166 = scmp.ne.s32.totalorder %s158, %s160
      %p167 = scmp.eq.s32.totalorder %s33, 1
      %p168 = por %p166, %p167
      %p169 = scmp.ne.s32.totalorder %s160, %s161
      %p170 = scmp.eq.s32.totalorder %s33, 0
      %p171 = por %p169, %p170
      %p172 = scmp.ne.s32.totalorder %s160, %s161
      %p173 = scmp.eq.s32.totalorder %s34, 1
      %p174 = por %p172, %p173
      %p176 = scmp.ne.s32.totalorder %s161, %s175
      %p177 = scmp.eq.s32.totalorder %s34, 0
      %p178 = por %p176, %p177
      %s180 = sadd.s32 %s179, 1
      %p183 = scmp.eq.s32.totalorder %s28, 1
      %p184 = scmp.ne.s32.totalorder %s179, %s181
      %p185 = scmp.eq.s32.totalorder %s28, 0
      %p186 = por %p184, %p185
      %p187 = scmp.ne.s32.totalorder %s179, %s181
      %p188 = scmp.eq.s32.totalorder %s33, 1
      %p189 = por %p187, %p188
      %p190 = scmp.ne.s32.totalorder %s181, %s182
      %p191 = scmp.eq.s32.totalorder %s33, 0
      %p192 = por %p190, %p191
      %p193 = scmp.ne.s32.totalorder %s181, %s182
      %p194 = scmp.eq.s32.totalorder %s34, 1
      %p195 = por %p193, %p194
      %p197 = scmp.ne.s32.totalorder %s182, %s196
      %p198 = scmp.eq.s32.totalorder %s34, 0
      %p199 = por %p197, %p198
      %s201 = sadd.s32 %s200, 1
      %p204 = scmp.eq.s32.totalorder %s28, 1
      %p205 = scmp.ne.s32.totalorder %s200, %s202
      %p206 = scmp.eq.s32.totalorder %s28, 0
      %p207 = por %p205, %p206
      %p208 = scmp.ne.s32.totalorder %s200, %s202
      %p209 = scmp.eq.s32.totalorder %s33, 1
      %p210 = por %p208, %p209
      %p211 = scmp.ne.s32.totalorder %s202, %s203
      %p212 = scmp.eq.s32.totalorder %s33, 0
      %p213 = por %p211, %p212
      %p214 = scmp.ne.s32.totalorder %s202, %s203
      %p215 = scmp.eq.s32.totalorder %s34, 1
      %p216 = por %p214, %p215
      %p218 = scmp.ne.s32.totalorder %s203, %s217
      %p219 = scmp.eq.s32.totalorder %s34, 0
      %p220 = por %p218, %p219
      %s222 = sadd.s32 %s221, 1
      %p225 = scmp.eq.s32.totalorder %s28, 1
      %p226 = scmp.ne.s32.totalorder %s221, %s223
      %p227 = scmp.eq.s32.totalorder %s28, 0
      %p228 = por %p226, %p227
      %p229 = scmp.ne.s32.totalorder %s221, %s223
      %p230 = scmp.eq.s32.totalorder %s33, 1
      %p231 = por %p229, %p230
      %p232 = scmp.ne.s32.totalorder %s223, %s224
      %p233 = scmp.eq.s32.totalorder %s33, 0
      %p234 = por %p232, %p233
      %p235 = scmp.ne.s32.totalorder %s223, %s224
      %p236 = scmp.eq.s32.totalorder %s34, 1
      %p237 = por %p235, %p236
      %p239 = scmp.ne.s32.totalorder %s224, %s238
      %p240 = scmp.eq.s32.totalorder %s34, 0
      %p241 = por %p239, %p240
      %s243 = sadd.s32 %s242, 1
      %p246 = scmp.eq.s32.totalorder %s28, 1
      %p247 = scmp.ne.s32.totalorder %s242, %s244
      %p248 = scmp.eq.s32.totalorder %s28, 0
      %p249 = por %p247, %p248
      %p250 = scmp.ne.s32.totalorder %s242, %s244
      %p251 = scmp.eq.s32.totalorder %s33, 1
      %p252 = por %p250, %p251
      %p253 = scmp.ne.s32.totalorder %s244, %s245
      %p254 = scmp.eq.s32.totalorder %s33, 0
      %p255 = por %p253, %p254
      %p256 = scmp.ne.s32.totalorder %s244, %s245
      %p257 = scmp.eq.s32.totalorder %s34, 1
      %p258 = por %p256, %p257
      %p260 = scmp.ne.s32.totalorder %s245, %s259
      %p261 = scmp.eq.s32.totalorder %s34, 0
      %p262 = por %p260, %p261
      %s264 = sadd.s32 %s263, 1
      %p267 = scmp.eq.s32.totalorder %s28, 1
      %p268 = scmp.ne.s32.totalorder %s263, %s265
      %p269 = scmp.eq.s32.totalorder %s28, 0
      %p270 = por %p268, %p269
      %p271 = scmp.ne.s32.totalorder %s263, %s265
      %p272 = scmp.eq.s32.totalorder %s33, 1
      %p273 = por %p271, %p272
      %p274 = scmp.ne.s32.totalorder %s265, %s266
      %p275 = scmp.eq.s32.totalorder %s33, 0
      %p276 = por %p274, %p275
      %p277 = scmp.ne.s32.totalorder %s265, %s266
      %p278 = scmp.eq.s32.totalorder %s34, 1
      %p279 = por %p277, %p278
      %p281 = scmp.ne.s32.totalorder %s266, %s280
      %p282 = scmp.eq.s32.totalorder %s34, 0
      %p283 = por %p281, %p282
      %s285 = sadd.s32 %s284, 1
      %p288 = scmp.eq.s32.totalorder %s28, 1
      %p289 = scmp.ne.s32.totalorder %s284, %s286
      %p290 = scmp.eq.s32.totalorder %s28, 0
      %p291 = por %p289, %p290
      %p292 = scmp.ne.s32.totalorder %s284, %s286
      %p293 = scmp.eq.s32.totalorder %s33, 1
      %p294 = por %p292, %p293
      %p295 = scmp.ne.s32.totalorder %s286, %s287
      %p296 = scmp.eq.s32.totalorder %s33, 0
      %p297 = por %p295, %p296
      %p298 = scmp.ne.s32.totalorder %s286, %s287
      %p299 = scmp.eq.s32.totalorder %s34, 1
      %p300 = por %p298, %p299
      %p302 = scmp.ne.s32.totalorder %s287, %s301
      %p303 = scmp.eq.s32.totalorder %s34, 0
      %p304 = por %p302, %p303
      %s306 = sadd.s32 %s305, 1
      %p309 = scmp.eq.s32.totalorder %s28, 1
      %p310 = scmp.ne.s32.totalorder %s305, %s307
      %p311 = scmp.eq.s32.totalorder %s28, 0
      %p312 = por %p310, %p311
      %p313 = scmp.ne.s32.totalorder %s305, %s307
      %p314 = scmp.eq.s32.totalorder %s33, 1
      %p315 = por %p313, %p314
      %p316 = scmp.ne.s32.totalorder %s307, %s308
      %p317 = scmp.eq.s32.totalorder %s33, 0
      %p318 = por %p316, %p317
      %p319 = scmp.ne.s32.totalorder %s307, %s308
      %p320 = scmp.eq.s32.totalorder %s34, 1
      %p321 = por %p319, %p320
      %p323 = scmp.ne.s32.totalorder %s308, %s322
      %p324 = scmp.eq.s32.totalorder %s34, 0
      %p325 = por %p323, %p324
      %s327 = sadd.s32 %s326, 1
      %p330 = scmp.eq.s32.totalorder %s28, 1
      %p331 = scmp.ne.s32.totalorder %s326, %s328
      %p332 = scmp.eq.s32.totalorder %s28, 0
      %p333 = por %p331, %p332
      %p334 = scmp.ne.s32.totalorder %s326, %s328
      %p335 = scmp.eq.s32.totalorder %s33, 1
      %p336 = por %p334, %p335
      %p337 = scmp.ne.s32.totalorder %s328, %s329
      %p338 = scmp.eq.s32.totalorder %s33, 0
      %p339 = por %p337, %p338
      %p340 = scmp.ne.s32.totalorder %s328, %s329
      %p341 = scmp.eq.s32.totalorder %s34, 1
      %p342 = por %p340, %p341
      %p344 = scmp.ne.s32.totalorder %s329, %s343
      %p345 = scmp.eq.s32.totalorder %s34, 0
      %p346 = por %p344, %p345
      %s348 = sadd.s32 %s347, 1
      %p351 = scmp.eq.s32.totalorder %s28, 1
      %p352 = scmp.ne.s32.totalorder %s347, %s349
      %p353 = scmp.eq.s32.totalorder %s28, 0
      %p354 = por %p352, %p353
      %p355 = scmp.ne.s32.totalorder %s347, %s349
      %p356 = scmp.eq.s32.totalorder %s33, 1
      %p357 = por %p355, %p356
      %p358 = scmp.ne.s32.totalorder %s349, %s350
      %p359 = scmp.eq.s32.totalorder %s33, 0
      %p360 = por %p358, %p359
      %p361 = scmp.ne.s32.totalorder %s349, %s350
      %p362 = scmp.eq.s32.totalorder %s34, 1
      %p363 = por %p361, %p362
      %p365 = scmp.ne.s32.totalorder %s350, %s364
      %p366 = scmp.eq.s32.totalorder %s34, 0
      %p367 = por %p365, %p366
      %s369 = sadd.s32 %s368, 1
      %p372 = scmp.eq.s32.totalorder %s28, 1
      %p373 = scmp.ne.s32.totalorder %s368, %s370
      %p374 = scmp.eq.s32.totalorder %s28, 0
      %p375 = por %p373, %p374
      %p376 = scmp.ne.s32.totalorder %s368, %s370
      %p377 = scmp.eq.s32.totalorder %s33, 1
      %p378 = por %p376, %p377
      %p379 = scmp.ne.s32.totalorder %s370, %s371
      %p380 = scmp.eq.s32.totalorder %s33, 0
      %p381 = por %p379, %p380
      %p382 = scmp.ne.s32.totalorder %s370, %s371
      %p383 = scmp.eq.s32.totalorder %s34, 1
      %p384 = por %p382, %p383
      %p386 = scmp.ne.s32.totalorder %s371, %s385
      %p387 = scmp.eq.s32.totalorder %s34, 0
      %p388 = por %p386, %p387
      %s390 = sadd.s32 %s389, 1
      %p393 = scmp.eq.s32.totalorder %s28, 1
      %p394 = scmp.ne.s32.totalorder %s389, %s391
      %p395 = scmp.eq.s32.totalorder %s28, 0
      %p396 = por %p394, %p395
      %p397 = scmp.ne.s32.totalorder %s389, %s391
      %p398 = scmp.eq.s32.totalorder %s33, 1
      %p399 = por %p397, %p398
      %p400 = scmp.ne.s32.totalorder %s391, %s392
      %p401 = scmp.eq.s32.totalorder %s33, 0
      %p402 = por %p400, %p401
      %p403 = scmp.ne.s32.totalorder %s391, %s392
      %p404 = scmp.eq.s32.totalorder %s34, 1
      %p405 = por %p403, %p404
      %p407 = scmp.ne.s32.totalorder %s392, %s406
      %p408 = scmp.eq.s32.totalorder %s34, 0
      %p409 = por %p407, %p408
      %s410 = ssub.s32 %s35, %s47
      %p411 = scmp.eq.s32.totalorder %s410, 0
      %s413 = sadd.s32 %s412, 1
      %s414 = scalar_select %p411, %s412, %s413
      %p417 = pneg %p411
      %p418 = scmp.eq.s32.totalorder %s28, 1
      %p419 = por %p417, %p418
      %p420 = scmp.ne.s32.totalorder %s412, %s415
      %p421 = scmp.eq.s32.totalorder %s28, 0
      %p422 = por %p420, %p421
      %p423 = scmp.ne.s32.totalorder %s412, %s415
      %p424 = scmp.eq.s32.totalorder %s33, 1
      %p425 = por %p423, %p424
      %p426 = scmp.ne.s32.totalorder %s415, %s416
      %p427 = scmp.eq.s32.totalorder %s33, 0
      %p428 = por %p426, %p427
      %p429 = scmp.ne.s32.totalorder %s415, %s416
      %p430 = scmp.eq.s32.totalorder %s34, 1
      %p431 = por %p429, %p430
      %p433 = scmp.ne.s32.totalorder %s416, %s432
      %p434 = scmp.eq.s32.totalorder %s34, 0
      %p435 = por %p433, %p434
      %p436 = scmp.le.s32.totalorder 1, %s28
      %p437 = scmp.lt.s32.totalorder %s28, 3
      %p438 = pnand %p436, %p437
      %p439 = pneg %p438
      // Predicated region
      $region9: #{tpu_custom_call.1} parent=5 // pred_check
        _
      $region10: #{tpu_custom_call.1} parent=5 // pred_check_branch
        %441 = sbr.rel (%p438) target = $region12
      $region11: #{tpu_custom_call.1} parent=5 // pred_region
        %s442 = ssub.s32 %s28, 1
        // Predicated region
        $region13: #{tpu_custom_call.1} parent=11 // pred_check
          %p443 = pneg %p66
        $region14: #{tpu_custom_call.1} parent=11 // pred_check_branch
          %445 = sbr.rel (%p443) target = $region16
        $region15: #{tpu_custom_call.1} parent=11 // pred_region
          %s446 = smul.u32 2, %s37
          %s448 = ssub.s32 256, 256
          %449 = vsyncadd [#allocation4], %s448
          %s450 = smul.addr %s446, 128
          %s451 = scalar_lea.hbm %s0, %s450
          %s452 = sshll.u32 [#allocation3], 4
          %s453 = int_to_ptr.vmem [resolvable:$true] %s452
          %458 = dma.hbm_to_vmem [thread:$0]  %s451, 256, %s453, [#allocation4], 128, 128, 8
        $region16: #{tpu_custom_call.1} parent=11 // pred_fallthru
          _
        // Predicated region
        $region17: #{tpu_custom_call.1} parent=11 // pred_check
          %p459 = pneg %p87
        $region18: #{tpu_custom_call.1} parent=11 // pred_check_branch
          %461 = sbr.rel (%p459) target = $region20
        $region19: #{tpu_custom_call.1} parent=11 // pred_region
          %s463 = ssub.s32 256, 256
          %464 = vsyncadd [#allocation7], %s463
          %s465 = sshll.u32 [#allocation6], 4
          %s466 = int_to_ptr.vmem [resolvable:$true] %s465
          %471 = dma.hbm_to_vmem [thread:$0]  %s1, 256, %s466, [#allocation7], 128, 128, 8
        $region20: #{tpu_custom_call.1} parent=11 // pred_fallthru
          _
        // Predicated region
        $region21: #{tpu_custom_call.1} parent=11 // pred_check
          %p472 = pneg %p108
        $region22: #{tpu_custom_call.1} parent=11 // pred_check_branch
          %474 = sbr.rel (%p472) target = $region24
        $region23: #{tpu_custom_call.1} parent=11 // pred_region
          _
        $region24: #{tpu_custom_call.1} parent=11 // pred_fallthru
          _
        // Predicated region
        $region25: #{tpu_custom_call.1} parent=11 // pred_check
          %p475 = pneg %p129
        $region26: #{tpu_custom_call.1} parent=11 // pred_check_branch
          %477 = sbr.rel (%p475) target = $region28
        $region27: #{tpu_custom_call.1} parent=11 // pred_region
          _
        $region28: #{tpu_custom_call.1} parent=11 // pred_fallthru
          _
        // Predicated region
        $region29: #{tpu_custom_call.1} parent=11 // pred_check
          %p478 = pneg %p150
        $region30: #{tpu_custom_call.1} parent=11 // pred_check_branch
          %480 = sbr.rel (%p478) target = $region32
        $region31: #{tpu_custom_call.1} parent=11 // pred_region
          _
        $region32: #{tpu_custom_call.1} parent=11 // pred_fallthru
          _
        // Predicated region
        $region33: #{tpu_custom_call.1} parent=11 // pred_check
          %p481 = pneg %p171
        $region34: #{tpu_custom_call.1} parent=11 // pred_check_branch
          %483 = sbr.rel (%p481) target = $region36
        $region35: #{tpu_custom_call.1} parent=11 // pred_region
          %s485 = ssub.s32 6144, 6144
          %486 = vsyncadd [#allocation7], %s485
          %s487 = sshll.u32 [#allocation8], 4
          %s488 = int_to_ptr.vmem [resolvable:$true] %s487
          %493 = dma.hbm_to_vmem [thread:$0]  %s5, 6144, %s488, [#allocation7], 384, 384, 24
        $region36: #{tpu_custom_call.1} parent=11 // pred_fallthru
          _
        // Predicated region
        $region37: #{tpu_custom_call.1} parent=11 // pred_check
          %p494 = pneg %p192
        $region38: #{tpu_custom_call.1} parent=11 // pred_check_branch
          %496 = sbr.rel (%p494) target = $region40
        $region39: #{tpu_custom_call.1} parent=11 // pred_region
          _
        $region40: #{tpu_custom_call.1} parent=11 // pred_fallthru
          _
        // Predicated region
        $region41: #{tpu_custom_call.1} parent=11 // pred_check
          %p497 = pneg %p213
        $region42: #{tpu_custom_call.1} parent=11 // pred_check_branch
          %499 = sbr.rel (%p497) target = $region44
        $region43: #{tpu_custom_call.1} parent=11 // pred_region
          %s501 = ssub.s32 2048, 2048
          %502 = vsyncadd [#allocation10], %s501
          %s503 = sshll.u32 [#allocation9], 4
          %s504 = int_to_ptr.vmem [resolvable:$true] %s503
          %509 = dma.hbm_to_vmem [thread:$0]  %s7, 2048, %s504, [#allocation10], 128, 128, 8
        $region44: #{tpu_custom_call.1} parent=11 // pred_fallthru
          _
        // Predicated region
        $region45: #{tpu_custom_call.1} parent=11 // pred_check
          %p510 = pneg %p234
        $region46: #{tpu_custom_call.1} parent=11 // pred_check_branch
          %512 = sbr.rel (%p510) target = $region48
        $region47: #{tpu_custom_call.1} parent=11 // pred_region
          _
        $region48: #{tpu_custom_call.1} parent=11 // pred_fallthru
          _
        // Predicated region
        $region49: #{tpu_custom_call.1} parent=11 // pred_check
          %p513 = pneg %p255
        $region50: #{tpu_custom_call.1} parent=11 // pred_check_branch
          %515 = sbr.rel (%p513) target = $region52
        $region51: #{tpu_custom_call.1} parent=11 // pred_region
          _
        $region52: #{tpu_custom_call.1} parent=11 // pred_fallthru
          _
        // Predicated region
        $region53: #{tpu_custom_call.1} parent=11 // pred_check
          %p516 = pneg %p276
        $region54: #{tpu_custom_call.1} parent=11 // pred_check_branch
          %518 = sbr.rel (%p516) target = $region56
        $region55: #{tpu_custom_call.1} parent=11 // pred_region
          _
        $region56: #{tpu_custom_call.1} parent=11 // pred_fallthru
          _
        // Predicated region
        $region57: #{tpu_custom_call.1} parent=11 // pred_check
          %p519 = pneg %p297
        $region58: #{tpu_custom_call.1} parent=11 // pred_check_branch
          %521 = sbr.rel (%p519) target = $region60
        $region59: #{tpu_custom_call.1} parent=11 // pred_region
          %s523 = ssub.s32 2048, 2048
          %524 = vsyncadd [#allocation10], %s523
          %s525 = sshll.u32 [#allocation11], 4
          %s526 = int_to_ptr.vmem [resolvable:$true] %s525
          %531 = dma.hbm_to_vmem [thread:$0]  %s11, 2048, %s526, [#allocation10], 128, 128, 8
        $region60: #{tpu_custom_call.1} parent=11 // pred_fallthru
          _
        // Predicated region
        $region61: #{tpu_custom_call.1} parent=11 // pred_check
          %p532 = pneg %p318
        $region62: #{tpu_custom_call.1} parent=11 // pred_check_branch
          %534 = sbr.rel (%p532) target = $region64
        $region63: #{tpu_custom_call.1} parent=11 // pred_region
          _
        $region64: #{tpu_custom_call.1} parent=11 // pred_fallthru
          _
        // Predicated region
        $region65: #{tpu_custom_call.1} parent=11 // pred_check
          %p535 = pneg %p339
        $region66: #{tpu_custom_call.1} parent=11 // pred_check_branch
          %537 = sbr.rel (%p535) target = $region68
        $region67: #{tpu_custom_call.1} parent=11 // pred_region
          %s539 = ssub.s32 2048, 2048
          %540 = vsyncadd [#allocation13], %s539
          %s541 = sshll.u32 [#allocation12], 4
          %s542 = int_to_ptr.vmem [resolvable:$true] %s541
          %547 = dma.hbm_to_vmem [thread:$0]  %s13, 2048, %s542, [#allocation13], 128, 128, 8
        $region68: #{tpu_custom_call.1} parent=11 // pred_fallthru
          _
        // Predicated region
        $region69: #{tpu_custom_call.1} parent=11 // pred_check
          %p548 = pneg %p360
        $region70: #{tpu_custom_call.1} parent=11 // pred_check_branch
          %550 = sbr.rel (%p548) target = $region72
        $region71: #{tpu_custom_call.1} parent=11 // pred_region
          _
        $region72: #{tpu_custom_call.1} parent=11 // pred_fallthru
          _
        // Predicated region
        $region73: #{tpu_custom_call.1} parent=11 // pred_check
          %p551 = pneg %p381
        $region74: #{tpu_custom_call.1} parent=11 // pred_check_branch
          %553 = sbr.rel (%p551) target = $region76
        $region75: #{tpu_custom_call.1} parent=11 // pred_region
          _
        $region76: #{tpu_custom_call.1} parent=11 // pred_fallthru
          _
        // Predicated region
        $region77: #{tpu_custom_call.1} parent=11 // pred_check
          %p554 = pneg %p402
        $region78: #{tpu_custom_call.1} parent=11 // pred_check_branch
          %556 = sbr.rel (%p554) target = $region80
        $region79: #{tpu_custom_call.1} parent=11 // pred_region
          _
        $region80: #{tpu_custom_call.1} parent=11 // pred_fallthru
          _
      $region12: #{tpu_custom_call.1} parent=5 // pred_fallthru
        _
      %p557 = scmp.lt.s32.totalorder %s28, 2
      // Predicated region
      $region81: #{tpu_custom_call.1} parent=5 // pred_check
        %p558 = pneg %p557
      $region82: #{tpu_custom_call.1} parent=5 // pred_check_branch
        %560 = sbr.rel (%p558) target = $region84
      $region83: #{tpu_custom_call.1} parent=5 // pred_region
        _
      $region84: #{tpu_custom_call.1} parent=5 // pred_fallthru
        _
      %p561 = scmp.le.s32.totalorder 1, %s28
      %p562 = scmp.lt.s32.totalorder %s28, 3
      %p563 = pnand %p561, %p562
      %p564 = pneg %p563
      // Predicated region
      $region85: #{tpu_custom_call.1} parent=5 // pred_check
        _
      $region86: #{tpu_custom_call.1} parent=5 // pred_check_branch
        %566 = sbr.rel (%p563) target = $region88
      $region87: #{tpu_custom_call.1} parent=5 // pred_region
        %s567 = ssub.s32 %s28, 1
        // Predicated region
        $region89: #{tpu_custom_call.1} parent=87 // pred_check
          %p568 = pneg %p66
        $region90: #{tpu_custom_call.1} parent=87 // pred_check_branch
          %570 = sbr.rel (%p568) target = $region92
        $region91: #{tpu_custom_call.1} parent=87 // pred_region
          %571 = dma.done [#allocation4], 256
        $region92: #{tpu_custom_call.1} parent=87 // pred_fallthru
          _
        // Predicated region
        $region93: #{tpu_custom_call.1} parent=87 // pred_check
          %p572 = pneg %p87
        $region94: #{tpu_custom_call.1} parent=87 // pred_check_branch
          %574 = sbr.rel (%p572) target = $region96
        $region95: #{tpu_custom_call.1} parent=87 // pred_region
          %575 = dma.done [#allocation7], 256
        $region96: #{tpu_custom_call.1} parent=87 // pred_fallthru
          _
        // Predicated region
        $region97: #{tpu_custom_call.1} parent=87 // pred_check
          %p576 = pneg %p171
        $region98: #{tpu_custom_call.1} parent=87 // pred_check_branch
          %578 = sbr.rel (%p576) target = $region100
        $region99: #{tpu_custom_call.1} parent=87 // pred_region
          %579 = dma.done [#allocation7], 6144
        $region100: #{tpu_custom_call.1} parent=87 // pred_fallthru
          _
        // Predicated region
        $region101: #{tpu_custom_call.1} parent=87 // pred_check
          %p580 = pneg %p213
        $region102: #{tpu_custom_call.1} parent=87 // pred_check_branch
          %582 = sbr.rel (%p580) target = $region104
        $region103: #{tpu_custom_call.1} parent=87 // pred_region
          %583 = dma.done [#allocation10], 2048
        $region104: #{tpu_custom_call.1} parent=87 // pred_fallthru
          _
        // Predicated region
        $region105: #{tpu_custom_call.1} parent=87 // pred_check
          %p584 = pneg %p297
        $region106: #{tpu_custom_call.1} parent=87 // pred_check_branch
          %586 = sbr.rel (%p584) target = $region108
        $region107: #{tpu_custom_call.1} parent=87 // pred_region
          %587 = dma.done [#allocation10], 2048
        $region108: #{tpu_custom_call.1} parent=87 // pred_fallthru
          _
        // Predicated region
        $region109: #{tpu_custom_call.1} parent=87 // pred_check
          %p588 = pneg %p339
        $region110: #{tpu_custom_call.1} parent=87 // pred_check_branch
          %590 = sbr.rel (%p588) target = $region112
        $region111: #{tpu_custom_call.1} parent=87 // pred_region
          %591 = dma.done [#allocation13], 2048
        $region112: #{tpu_custom_call.1} parent=87 // pred_fallthru
          _
        %p592 = pneg %p66
        %p593 = pneg %p63
        %p594 = pneg %p87
        %p595 = pneg %p84
        %p596 = pneg %p108
        %p597 = pneg %p105
        %p598 = pneg %p129
        %p599 = pneg %p126
        %p600 = pneg %p150
        %p601 = pneg %p147
        %p602 = pneg %p171
        %p603 = pneg %p168
        %p604 = pneg %p192
        %p605 = pneg %p189
        %p606 = pneg %p213
        %p607 = pneg %p210
        %p608 = pneg %p234
        %p609 = pneg %p231
        %p610 = pneg %p255
        %p611 = pneg %p252
        %p612 = pneg %p276
        %p613 = pneg %p273
        %p614 = pneg %p297
        %p615 = pneg %p294
        %p616 = pneg %p318
        %p617 = pneg %p315
        %p618 = pneg %p339
        %p619 = pneg %p336
        %p620 = pneg %p360
        %p621 = pneg %p357
        %p622 = pneg %p381
        %p623 = pneg %p378
        %p624 = pneg %p402
        %p625 = pneg %p399
        %p626 = pneg %p428
        %p627 = pneg %p425
        %s628 = smul.u32 2, %s37
        %s629 = smul.u32 2, %s37
        %p630 = scmp.eq.s32.totalorder %s38, 0
        // Predicated region
        $region113: #{tpu_custom_call.1} parent=87 // pred_check
          %p631 = pneg %p630
        $region114: #{tpu_custom_call.1} parent=87 // pred_check_branch
          %633 = sbr.rel (%p631) target = $region116
        $region115: #{tpu_custom_call.1} parent=87 // pred_region
          %v634 = vld [vmem:[#allocation3] sm:$0xff]
          %v635 = vld [vmem:[#allocation3 + $0x8] sm:$0xff]
          %636 = vst [vmem:[#allocation2] sm:$0xff] %v634
          %637 = vst [vmem:[#allocation2 + $0x8] sm:$0xff] %v635
        $region116: #{tpu_custom_call.1} parent=87 // pred_fallthru
          _
        %v638 = vld [vmem:[#allocation2] sm:$0xff]
        %v639 = vld [vmem:[#allocation2 + $0x8] sm:$0xff]
        %v640 = vld [vmem:[#allocation6] sm:$0xff]
        %v641 = vld [vmem:[#allocation6 + $0x8] sm:$0xff]
        %vm642 = vcmask 64512
        %v644 = vsel %vm642, %v640, 0
        %646 = vmatprep.subr.mxu0 0.0
        %647 = vmatpush1.msra.mxu0 0.0
        %648 = vmatprep.subr.mxu0 0.0
        %649 = vmatpush1.msra.mxu0 0.0
        %650 = vmatprep.subr.mxu0 0.0
        %651 = vmatpush1.msra.mxu0 0.0
        %652 = vmatprep.subr.mxu0 0.0
        %653 = vmatpush1.msra.mxu0 0.0
        %654 = vmatprep.subr.mxu0 0.0
        %655 = vmatpush1.msra.mxu0 0.0
        %656 = vmatprep.subr.mxu0 0.0
        %657 = vmatpush1.msra.mxu0 0.0
        %658 = vmatprep.subr.mxu0 0.0
        %659 = vmatpush1.msra.mxu0 0.0
        %660 = vmatprep.subr.mxu0 0.0
        %661 = vmatpush1.msra.mxu0 0.0
        %662 = vmatprep.subr.mxu0 0.0
        %663 = vmatpush1.msra.mxu0 0.0
        %664 = vmatprep.subr.mxu0 0.0
        %665 = vmatpush1.msra.mxu0 0.0
        %666 = vmatprep.subr.mxu0 0.0
        %667 = vmatpush1.msra.mxu0 0.0
        %668 = vmatprep.subr.mxu0 0.0
        %669 = vmatpush1.msra.mxu0 0.0
        %670 = vmatprep.subr.mxu0 0.0
        %671 = vmatpush1.msra.mxu0 0.0
        %672 = vmatprep.subr.mxu0 0.0
        %673 = vmatpush1.msra.mxu0 0.0
        %674 = vmatprep.subr.mxu0 0.0
        %675 = vmatpush1.msra.mxu0 0.0
        %676 = vmatprep.subr.mxu0 0.0
        %677 = vmatpush1.msra.mxu0 %v638
        %678 = vmatprep.subr.mxu0 0.0
        %679 = vmatpush2.msra.mxu0 0.0
        %680 = vmatprep.subr.mxu0 0.0
        %681 = vmatpush2.msra.mxu0 0.0
        %682 = vmatprep.subr.mxu0 0.0
        %683 = vmatpush2.msra.mxu0 0.0
        %684 = vmatprep.subr.mxu0 0.0
        %685 = vmatpush2.msra.mxu0 0.0
        %686 = vmatprep.subr.mxu0 0.0
        %687 = vmatpush2.msra.mxu0 0.0
        %688 = vmatprep.subr.mxu0 0.0
        %689 = vmatpush2.msra.mxu0 0.0
        %690 = vmatprep.subr.mxu0 0.0
        %691 = vmatpush2.msra.mxu0 0.0
        %692 = vmatprep.subr.mxu0 0.0
        %693 = vmatpush2.msra.mxu0 0.0
        %694 = vmatprep.subr.mxu0 0.0
        %695 = vmatpush2.msra.mxu0 0.0
        %696 = vmatprep.subr.mxu0 0.0
        %697 = vmatpush2.msra.mxu0 0.0
        %698 = vmatprep.subr.mxu0 0.0
        %699 = vmatpush2.msra.mxu0 0.0
        %700 = vmatprep.subr.mxu0 0.0
        %701 = vmatpush2.msra.mxu0 0.0
        %702 = vmatprep.subr.mxu0 0.0
        %703 = vmatpush2.msra.mxu0 0.0
        %704 = vmatprep.subr.mxu0 0.0
        %705 = vmatpush2.msra.mxu0 0.0
        %706 = vmatprep.subr.mxu0 0.0
        %707 = vmatpush2.msra.mxu0 0.0
        %708 = vmatprep.subr.mxu0 0.0
        %709 = vmatpush2.msra.mxu0 0.0
        %710 = vmatprep.mubr.f32.mxu0 0.0
        %711 = vmatmul.mubr.f32.gmra.mxu0 %v644
        %v712 = vpop.f32.mrf.mxu0
        %v713 = vadd.f32 0.0, %v712
        %v714 = vpop.f32.mrf.mxu0
        %715 = vdwg.mxu0
        %v717 = vsel %vm642, %v641, 0
        %719 = vmatprep.subr.mxu0 0.0
        %720 = vmatpush1.msra.mxu0 0.0
        %721 = vmatprep.subr.mxu0 0.0
        %722 = vmatpush1.msra.mxu0 0.0
        %723 = vmatprep.subr.mxu0 0.0
        %724 = vmatpush1.msra.mxu0 0.0
        %725 = vmatprep.subr.mxu0 0.0
        %726 = vmatpush1.msra.mxu0 0.0
        %727 = vmatprep.subr.mxu0 0.0
        %728 = vmatpush1.msra.mxu0 0.0
        %729 = vmatprep.subr.mxu0 0.0
        %730 = vmatpush1.msra.mxu0 0.0
        %731 = vmatprep.subr.mxu0 0.0
        %732 = vmatpush1.msra.mxu0 0.0
        %733 = vmatprep.subr.mxu0 0.0
        %734 = vmatpush1.msra.mxu0 0.0
        %735 = vmatprep.subr.mxu0 0.0
        %736 = vmatpush1.msra.mxu0 0.0
        %737 = vmatprep.subr.mxu0 0.0
        %738 = vmatpush1.msra.mxu0 0.0
        %739 = vmatprep.subr.mxu0 0.0
        %740 = vmatpush1.msra.mxu0 0.0
        %741 = vmatprep.subr.mxu0 0.0
        %742 = vmatpush1.msra.mxu0 0.0
        %743 = vmatprep.subr.mxu0 0.0
        %744 = vmatpush1.msra.mxu0 0.0
        %745 = vmatprep.subr.mxu0 0.0
        %746 = vmatpush1.msra.mxu0 0.0
        %747 = vmatprep.subr.mxu0 0.0
        %748 = vmatpush1.msra.mxu0 0.0
        %749 = vmatprep.subr.mxu0 0.0
        %750 = vmatpush1.msra.mxu0 %v639
        %751 = vmatprep.subr.mxu0 0.0
        %752 = vmatpush2.msra.mxu0 0.0
        %753 = vmatprep.subr.mxu0 0.0
        %754 = vmatpush2.msra.mxu0 0.0
        %755 = vmatprep.subr.mxu0 0.0
        %756 = vmatpush2.msra.mxu0 0.0
        %757 = vmatprep.subr.mxu0 0.0
        %758 = vmatpush2.msra.mxu0 0.0
        %759 = vmatprep.subr.mxu0 0.0
        %760 = vmatpush2.msra.mxu0 0.0
        %761 = vmatprep.subr.mxu0 0.0
        %762 = vmatpush2.msra.mxu0 0.0
        %763 = vmatprep.subr.mxu0 0.0
        %764 = vmatpush2.msra.mxu0 0.0
        %765 = vmatprep.subr.mxu0 0.0
        %766 = vmatpush2.msra.mxu0 0.0
        %767 = vmatprep.subr.mxu0 0.0
        %768 = vmatpush2.msra.mxu0 0.0
        %769 = vmatprep.subr.mxu0 0.0
        %770 = vmatpush2.msra.mxu0 0.0
        %771 = vmatprep.subr.mxu0 0.0
        %772 = vmatpush2.msra.mxu0 0.0
        %773 = vmatprep.subr.mxu0 0.0
        %774 = vmatpush2.msra.mxu0 0.0
        %775 = vmatprep.subr.mxu0 0.0
        %776 = vmatpush2.msra.mxu0 0.0
        %777 = vmatprep.subr.mxu0 0.0
        %778 = vmatpush2.msra.mxu0 0.0
        %779 = vmatprep.subr.mxu0 0.0
        %780 = vmatpush2.msra.mxu0 0.0
        %781 = vmatprep.subr.mxu0 0.0
        %782 = vmatpush2.msra.mxu0 0.0
        %783 = vmatprep.mubr.f32.mxu0 0.0
        %784 = vmatmul.mubr.f32.gmra.mxu0 %v717
        %v785 = vpop.f32.mrf.mxu0
        %v786 = vadd.f32 0.0, %v785
        %v787 = vpop.f32.mrf.mxu0
        %788 = vdwg.mxu0
        %v789 = vld [vmem:[%s2] sm:$0x1]
        %v790 = vsub.f32 %v638, %v713
        %v791 = vsub.f32 %v639, %v786
        %v793 = vlaneseq
        %v794 = vshrl.u32 %v793, 7
        %v795 = vsub.s32 0, %v794
        %v796 = vrot.slane %v789, %v795
        %v798 = vmul.f32 %v796, %v790
        %v799 = vmul.f32 %v796, %v791
        %v800 = vadd.f32 %v713, %v798
        %v801 = vadd.f32 %v786, %v799
        %v802 = vadd.f32 %v800, %v638
        %v803 = vadd.f32 %v801, %v639
        %v804 = vld [vmem:[%s3] sm:$0x1]
        %v805 = vld [vmem:[%s4] sm:$0x1]
        %806 = vadd.xlane.f32.xlu0 %v802
        %v807 = vpop.xlane.xlu0 %806
        %808 = vadd.xlane.f32.xlu0 %v803
        %v809 = vpop.xlane.xlu0 %808
        %v810 = vmul.f32 %v807, 0.03125
        %v811 = vmul.f32 %v809, 0.03125
        %v812 = vsub.f32 %v802, %v810
        %v813 = vsub.f32 %v803, %v811
        %v814 = vmul.f32 %v812, %v812
        %v815 = vmul.f32 %v813, %v813
        %816 = vadd.xlane.f32.xlu0 %v814
        %v817 = vpop.xlane.xlu0 %816
        %818 = vadd.xlane.f32.xlu0 %v815
        %v819 = vpop.xlane.xlu0 %818
        %v820 = vmul.f32 %v810, %v810
        %v821 = vmul.f32 %v811, %v811
        %v822 = vmul.f32 %v820, 96.0
        %v823 = vmul.f32 %v821, 96.0
        %v824 = vsub.f32 %v817, %v822
        %v825 = vsub.f32 %v819, %v823
        %v826 = vmax.f32 %v824, 0.0
        %v827 = vmax.f32 %v825, 0.0
        %v828 = vmul.f32 %v826, 0.03125
        %v829 = vmul.f32 %v827, 0.03125
        %v830 = vadd.f32 %v828, 1e-12
        %v831 = vadd.f32 %v829, 1e-12
        %v832 = vrsqrt.pop %v830
        %v833 = vrsqrt.pop %v831
        %v834 = vmul.f32 %v812, %v832
        %v835 = vmul.f32 %v813, %v833
        %v837 = vlaneseq
        %v838 = vshrl.u32 %v837, 7
        %v839 = vsub.s32 0, %v838
        %v840 = vrot.slane %v804, %v839
        %v842 = vmul.f32 %v834, %v840
        %v843 = vmul.f32 %v835, %v840
        %v845 = vlaneseq
        %v846 = vshrl.u32 %v845, 7
        %v847 = vsub.s32 0, %v846
        %v848 = vrot.slane %v805, %v847
        %v850 = vadd.f32 %v842, %v848
        %v851 = vadd.f32 %v843, %v848
        %v852 = vld [vmem:[#allocation8] sm:$0xff]
        %v853 = vld [vmem:[#allocation8 + $0x8] sm:$0xff]
        %v854 = vld [vmem:[#allocation8 + $0x10] sm:$0xff]
        %v855 = vld [vmem:[#allocation8 + $0x18] sm:$0xff]
        %v856 = vld [vmem:[#allocation8 + $0x20] sm:$0xff]
        %v857 = vld [vmem:[#allocation8 + $0x28] sm:$0xff]
        %v858 = vld [vmem:[#allocation8 + $0x30] sm:$0xff]
        %v859 = vld [vmem:[#allocation8 + $0x38] sm:$0xff]
        %v860 = vld [vmem:[#allocation8 + $0x40] sm:$0xff]
        %v861 = vld [vmem:[#allocation8 + $0x48] sm:$0xff]
        %v862 = vld [vmem:[#allocation8 + $0x50] sm:$0xff]
        %v863 = vld [vmem:[#allocation8 + $0x58] sm:$0xff]
        %v864 = vld [vmem:[#allocation8 + $0x60] sm:$0xff]
        %v865 = vld [vmem:[#allocation8 + $0x68] sm:$0xff]
        %v866 = vld [vmem:[#allocation8 + $0x70] sm:$0xff]
        %v867 = vld [vmem:[#allocation8 + $0x78] sm:$0xff]
        %v868 = vld [vmem:[#allocation8 + $0x80] sm:$0xff]
        %v869 = vld [vmem:[#allocation8 + $0x88] sm:$0xff]
        %v870 = vld [vmem:[#allocation8 + $0x90] sm:$0xff]
        %v871 = vld [vmem:[#allocation8 + $0x98] sm:$0xff]
        %v872 = vld [vmem:[#allocation8 + $0xa0] sm:$0xff]
        %v873 = vld [vmem:[#allocation8 + $0xa8] sm:$0xff]
        %v874 = vld [vmem:[#allocation8 + $0xb0] sm:$0xff]
        %v875 = vld [vmem:[#allocation8 + $0xb8] sm:$0xff]
        %v876 = vld [vmem:[#allocation8 + $0xc0] sm:$0xff]
        %v877 = vld [vmem:[#allocation8 + $0xc8] sm:$0xff]
        %v878 = vld [vmem:[#allocation8 + $0xd0] sm:$0xff]
        %v879 = vld [vmem:[#allocation8 + $0xd8] sm:$0xff]
        %v880 = vld [vmem:[#allocation8 + $0xe0] sm:$0xff]
        %v881 = vld [vmem:[#allocation8 + $0xe8] sm:$0xff]
        %v882 = vld [vmem:[#allocation8 + $0xf0] sm:$0xff]
        %v883 = vld [vmem:[#allocation8 + $0xf8] sm:$0xff]
        %v884 = vld [vmem:[#allocation8 + $0x100] sm:$0xff]
        %v885 = vld [vmem:[#allocation8 + $0x108] sm:$0xff]
        %v886 = vld [vmem:[#allocation8 + $0x110] sm:$0xff]
        %v887 = vld [vmem:[#allocation8 + $0x118] sm:$0xff]
        %v888 = vld [vmem:[#allocation8 + $0x120] sm:$0xff]
        %v889 = vld [vmem:[#allocation8 + $0x128] sm:$0xff]
        %v890 = vld [vmem:[#allocation8 + $0x130] sm:$0xff]
        %v891 = vld [vmem:[#allocation8 + $0x138] sm:$0xff]
        %v892 = vld [vmem:[#allocation8 + $0x140] sm:$0xff]
        %v893 = vld [vmem:[#allocation8 + $0x148] sm:$0xff]
        %v894 = vld [vmem:[#allocation8 + $0x150] sm:$0xff]
        %v895 = vld [vmem:[#allocation8 + $0x158] sm:$0xff]
        %v896 = vld [vmem:[#allocation8 + $0x160] sm:$0xff]
        %v897 = vld [vmem:[#allocation8 + $0x168] sm:$0xff]
        %v898 = vld [vmem:[#allocation8 + $0x170] sm:$0xff]
        %v899 = vld [vmem:[#allocation8 + $0x178] sm:$0xff]
        %v900 = vld [vmem:[%s6] sm:$0x7]
        %v902 = vlaneseq
        %v903 = vshrl.u32 %v902, 7
        %v904 = vsub.s32 0, %v903
        %v905 = vrot.slane %v900, %v904
        %v906 = vlaneseq
        %v907 = vshrl.u32 %v906, 7
        %v908 = vsub.s32 1, %v907
        %v909 = vrot.slane %v900, %v908
        %v910 = vlaneseq
        %v911 = vshrl.u32 %v910, 7
        %v912 = vsub.s32 2, %v911
        %v913 = vrot.slane %v900, %v912
        %917 = vmatprep.subr.mxu0 %v898
        %918 = vmatpush1.msra.mxu0 %v897
        %919 = vmatprep.subr.mxu0 %v895
        %920 = vmatpush1.msra.mxu0 %v894
        %921 = vmatprep.subr.mxu0 %v892
        %922 = vmatpush1.msra.mxu0 %v891
        %923 = vmatprep.subr.mxu0 %v889
        %924 = vmatpush1.msra.mxu0 %v888
        %925 = vmatprep.subr.mxu0 %v886
        %926 = vmatpush1.msra.mxu0 %v885
        %927 = vmatprep.subr.mxu0 %v883
        %928 = vmatpush1.msra.mxu0 %v882
        %929 = vmatprep.subr.mxu0 %v880
        %930 = vmatpush1.msra.mxu0 %v879
        %931 = vmatprep.subr.mxu0 %v877
        %932 = vmatpush1.msra.mxu0 %v876
        %933 = vmatprep.subr.mxu0 %v874
        %934 = vmatpush1.msra.mxu0 %v873
        %935 = vmatprep.subr.mxu0 %v871
        %936 = vmatpush1.msra.mxu0 %v870
        %937 = vmatprep.subr.mxu0 %v868
        %938 = vmatpush1.msra.mxu0 %v867
        %939 = vmatprep.subr.mxu0 %v865
        %940 = vmatpush1.msra.mxu0 %v864
        %941 = vmatprep.subr.mxu0 %v862
        %942 = vmatpush1.msra.mxu0 %v861
        %943 = vmatprep.subr.mxu0 %v859
        %944 = vmatpush1.msra.mxu0 %v858
        %945 = vmatprep.subr.mxu0 %v856
        %946 = vmatpush1.msra.mxu0 %v855
        %947 = vmatprep.subr.mxu0 %v853
        %948 = vmatpush1.msra.mxu0 %v852
        %949 = vmatprep.subr.mxu0 0.0
        %950 = vmatpush2.msra.mxu0 0.0
        %951 = vmatprep.subr.mxu0 0.0
        %952 = vmatpush2.msra.mxu0 0.0
        %953 = vmatprep.subr.mxu0 0.0
        %954 = vmatpush2.msra.mxu0 0.0
        %955 = vmatprep.subr.mxu0 0.0
        %956 = vmatpush2.msra.mxu0 0.0
        %957 = vmatprep.subr.mxu0 0.0
        %958 = vmatpush2.msra.mxu0 0.0
        %959 = vmatprep.subr.mxu0 0.0
        %960 = vmatpush2.msra.mxu0 0.0
        %961 = vmatprep.subr.mxu0 0.0
        %962 = vmatpush2.msra.mxu0 0.0
        %963 = vmatprep.subr.mxu0 0.0
        %964 = vmatpush2.msra.mxu0 0.0
        %965 = vmatprep.subr.mxu0 0.0
        %966 = vmatpush2.msra.mxu0 0.0
        %967 = vmatprep.subr.mxu0 0.0
        %968 = vmatpush2.msra.mxu0 0.0
        %969 = vmatprep.subr.mxu0 0.0
        %970 = vmatpush2.msra.mxu0 0.0
        %971 = vmatprep.subr.mxu0 0.0
        %972 = vmatpush2.msra.mxu0 0.0
        %973 = vmatprep.subr.mxu0 0.0
        %974 = vmatpush2.msra.mxu0 0.0
        %975 = vmatprep.subr.mxu0 0.0
        %976 = vmatpush2.msra.mxu0 0.0
        %977 = vmatprep.subr.mxu0 0.0
        %978 = vmatpush2.msra.mxu0 0.0
        %979 = vmatprep.subr.mxu0 0.0
        %980 = vmatpush2.msra.mxu0 0.0
        %981 = vmatprep.mubr.f32.mxu0 0.0
        %982 = vmatmul.mubr.f32.gmra.mxu0 %v638
        %v983 = vpop.f32.mrf.mxu0
        %v984 = vadd.f32 %v905, %v983
        %v985 = vpop.f32.mrf.mxu0
        %v986 = vadd.f32 %v909, %v985
        %987 = vmatprep.mubr.f32.mxu0 0.0
        %988 = vmatmul.mubr.f32.gmra.mxu0 %v639
        %v989 = vpop.f32.mrf.mxu0
        %v990 = vadd.f32 %v905, %v989
        %v991 = vpop.f32.mrf.mxu0
        %v992 = vadd.f32 %v909, %v991
        %993 = vdwg.mxu0
        %994 = vmatprep.subr.mxu0 0.0
        %995 = vmatpush1.msra.mxu0 %v899
        %996 = vmatprep.subr.mxu0 0.0
        %997 = vmatpush1.msra.mxu0 %v896
        %998 = vmatprep.subr.mxu0 0.0
        %999 = vmatpush1.msra.mxu0 %v893
        %1000 = vmatprep.subr.mxu0 0.0
        %1001 = vmatpush1.msra.mxu0 %v890
        %1002 = vmatprep.subr.mxu0 0.0
        %1003 = vmatpush1.msra.mxu0 %v887
        %1004 = vmatprep.subr.mxu0 0.0
        %1005 = vmatpush1.msra.mxu0 %v884
        %1006 = vmatprep.subr.mxu0 0.0
        %1007 = vmatpush1.msra.mxu0 %v881
        %1008 = vmatprep.subr.mxu0 0.0
        %1009 = vmatpush1.msra.mxu0 %v878
        %1010 = vmatprep.subr.mxu0 0.0
        %1011 = vmatpush1.msra.mxu0 %v875
        %1012 = vmatprep.subr.mxu0 0.0
        %1013 = vmatpush1.msra.mxu0 %v872
        %1014 = vmatprep.subr.mxu0 0.0
        %1015 = vmatpush1.msra.mxu0 %v869
        %1016 = vmatprep.subr.mxu0 0.0
        %1017 = vmatpush1.msra.mxu0 %v866
        %1018 = vmatprep.subr.mxu0 0.0
        %1019 = vmatpush1.msra.mxu0 %v863
        %1020 = vmatprep.subr.mxu0 0.0
        %1021 = vmatpush1.msra.mxu0 %v860
        %1022 = vmatprep.subr.mxu0 0.0
        %1023 = vmatpush1.msra.mxu0 %v857
        %1024 = vmatprep.subr.mxu0 0.0
        %1025 = vmatpush1.msra.mxu0 %v854
        %1026 = vmatprep.subr.mxu0 0.0
        %1027 = vmatpush2.msra.mxu0 0.0
        %1028 = vmatprep.subr.mxu0 0.0
        %1029 = vmatpush2.msra.mxu0 0.0
        %1030 = vmatprep.subr.mxu0 0.0
        %1031 = vmatpush2.msra.mxu0 0.0
        %1032 = vmatprep.subr.mxu0 0.0
        %1033 = vmatpush2.msra.mxu0 0.0
        %1034 = vmatprep.subr.mxu0 0.0
        %1035 = vmatpush2.msra.mxu0 0.0
        %1036 = vmatprep.subr.mxu0 0.0
        %1037 = vmatpush2.msra.mxu0 0.0
        %1038 = vmatprep.subr.mxu0 0.0
        %1039 = vmatpush2.msra.mxu0 0.0
        %1040 = vmatprep.subr.mxu0 0.0
        %1041 = vmatpush2.msra.mxu0 0.0
        %1042 = vmatprep.subr.mxu0 0.0
        %1043 = vmatpush2.msra.mxu0 0.0
        %1044 = vmatprep.subr.mxu0 0.0
        %1045 = vmatpush2.msra.mxu0 0.0
        %1046 = vmatprep.subr.mxu0 0.0
        %1047 = vmatpush2.msra.mxu0 0.0
        %1048 = vmatprep.subr.mxu0 0.0
        %1049 = vmatpush2.msra.mxu0 0.0
        %1050 = vmatprep.subr.mxu0 0.0
        %1051 = vmatpush2.msra.mxu0 0.0
        %1052 = vmatprep.subr.mxu0 0.0
        %1053 = vmatpush2.msra.mxu0 0.0
        %1054 = vmatprep.subr.mxu0 0.0
        %1055 = vmatpush2.msra.mxu0 0.0
        %1056 = vmatprep.subr.mxu0 0.0
        %1057 = vmatpush2.msra.mxu0 0.0
        %1058 = vmatprep.mubr.f32.mxu0 0.0
        %1059 = vmatmul.mubr.f32.gmra.mxu0 %v638
        %v1060 = vpop.f32.mrf.mxu0
        %v1061 = vadd.f32 %v913, %v1060
        %v1062 = vpop.f32.mrf.mxu0
        %1063 = vmatprep.mubr.f32.mxu0 0.0
        %1064 = vmatmul.mubr.f32.gmra.mxu0 %v639
        %v1065 = vpop.f32.mrf.mxu0
        %v1066 = vadd.f32 %v913, %v1065
        %v1067 = vpop.f32.mrf.mxu0
        %1068 = vdwg.mxu0
        %vm1069 = vcmask 523264
        %v1071 = vsel %vm1069, %v984, 0
        %v1074 = vsel %vm1069, %v986, 0
        %1076 = vmatprep.subr.mxu0 0.0
        %1077 = vmatpush1.xpose.msra.mxu0 0.0
        %1078 = vmatprep.subr.mxu0 0.0
        %1079 = vmatpush1.xpose.msra.mxu0 0.0
        %1080 = vmatprep.subr.mxu0 0.0
        %1081 = vmatpush1.xpose.msra.mxu0 0.0
        %1082 = vmatprep.subr.mxu0 0.0
        %1083 = vmatpush1.xpose.msra.mxu0 0.0
        %1084 = vmatprep.subr.mxu0 0.0
        %1085 = vmatpush1.xpose.msra.mxu0 0.0
        %1086 = vmatprep.subr.mxu0 0.0
        %1087 = vmatpush1.xpose.msra.mxu0 0.0
        %1088 = vmatprep.subr.mxu0 0.0
        %1089 = vmatpush1.xpose.msra.mxu0 0.0
        %1090 = vmatprep.subr.mxu0 0.0
        %1091 = vmatpush1.xpose.msra.mxu0 0.0
        %1092 = vmatprep.subr.mxu0 0.0
        %1093 = vmatpush1.xpose.msra.mxu0 0.0
        %1094 = vmatprep.subr.mxu0 0.0
        %1095 = vmatpush1.xpose.msra.mxu0 0.0
        %1096 = vmatprep.subr.mxu0 0.0
        %1097 = vmatpush1.xpose.msra.mxu0 0.0
        %1098 = vmatprep.subr.mxu0 0.0
        %1099 = vmatpush1.xpose.msra.mxu0 0.0
        %1100 = vmatprep.subr.mxu0 0.0
        %1101 = vmatpush1.xpose.msra.mxu0 0.0
        %1102 = vmatprep.subr.mxu0 0.0
        %1103 = vmatpush1.xpose.msra.mxu0 0.0
        %1104 = vmatprep.subr.mxu0 0.0
        %1105 = vmatpush1.xpose.msra.mxu0 0.0
        %1106 = vmatprep.subr.mxu0 0.0
        %1107 = vmatpush1.xpose.msra.mxu0 %v1074
        %1108 = vmatprep.subr.mxu0 0.0
        %1109 = vmatpush2.xpose.msra.mxu0 0.0
        %1110 = vmatprep.subr.mxu0 0.0
        %1111 = vmatpush2.xpose.msra.mxu0 0.0
        %1112 = vmatprep.subr.mxu0 0.0
        %1113 = vmatpush2.xpose.msra.mxu0 0.0
        %1114 = vmatprep.subr.mxu0 0.0
        %1115 = vmatpush2.xpose.msra.mxu0 0.0
        %1116 = vmatprep.subr.mxu0 0.0
        %1117 = vmatpush2.xpose.msra.mxu0 0.0
        %1118 = vmatprep.subr.mxu0 0.0
        %1119 = vmatpush2.xpose.msra.mxu0 0.0
        %1120 = vmatprep.subr.mxu0 0.0
        %1121 = vmatpush2.xpose.msra.mxu0 0.0
        %1122 = vmatprep.subr.mxu0 0.0
        %1123 = vmatpush2.xpose.msra.mxu0 0.0
        %1124 = vmatprep.subr.mxu0 0.0
        %1125 = vmatpush2.xpose.msra.mxu0 0.0
        %1126 = vmatprep.subr.mxu0 0.0
        %1127 = vmatpush2.xpose.msra.mxu0 0.0
        %1128 = vmatprep.subr.mxu0 0.0
        %1129 = vmatpush2.xpose.msra.mxu0 0.0
        %1130 = vmatprep.subr.mxu0 0.0
        %1131 = vmatpush2.xpose.msra.mxu0 0.0
        %1132 = vmatprep.subr.mxu0 0.0
        %1133 = vmatpush2.xpose.msra.mxu0 0.0
        %1134 = vmatprep.subr.mxu0 0.0
        %1135 = vmatpush2.xpose.msra.mxu0 0.0
        %1136 = vmatprep.subr.mxu0 0.0
        %1137 = vmatpush2.xpose.msra.mxu0 0.0
        %1138 = vmatprep.subr.mxu0 0.0
        %1139 = vmatpush2.xpose.msra.mxu0 0.0
        %1140 = vmatprep.mubr.f32.mxu0 0.0
        %1141 = vmatmul.mubr.f32.gmra.mxu0 %v1071
        %v1142 = vpop.f32.mrf.mxu0
        %v1143 = vadd.f32 0.0, %v1142
        %v1144 = vpop.f32.mrf.mxu0
        %1145 = vdwg.mxu0
        %v1147 = vsel %vm1069, %v990, 0
        %v1150 = vsel %vm1069, %v992, 0
        %1152 = vmatprep.subr.mxu0 0.0
        %1153 = vmatpush1.xpose.msra.mxu0 0.0
        %1154 = vmatprep.subr.mxu0 0.0
        %1155 = vmatpush1.xpose.msra.mxu0 0.0
        %1156 = vmatprep.subr.mxu0 0.0
        %1157 = vmatpush1.xpose.msra.mxu0 0.0
        %1158 = vmatprep.subr.mxu0 0.0
        %1159 = vmatpush1.xpose.msra.mxu0 0.0
        %1160 = vmatprep.subr.mxu0 0.0
        %1161 = vmatpush1.xpose.msra.mxu0 0.0
        %1162 = vmatprep.subr.mxu0 0.0
        %1163 = vmatpush1.xpose.msra.mxu0 0.0
        %1164 = vmatprep.subr.mxu0 0.0
        %1165 = vmatpush1.xpose.msra.mxu0 0.0
        %1166 = vmatprep.subr.mxu0 0.0
        %1167 = vmatpush1.xpose.msra.mxu0 0.0
        %1168 = vmatprep.subr.mxu0 0.0
        %1169 = vmatpush1.xpose.msra.mxu0 0.0
        %1170 = vmatprep.subr.mxu0 0.0
        %1171 = vmatpush1.xpose.msra.mxu0 0.0
        %1172 = vmatprep.subr.mxu0 0.0
        %1173 = vmatpush1.xpose.msra.mxu0 0.0
        %1174 = vmatprep.subr.mxu0 0.0
        %1175 = vmatpush1.xpose.msra.mxu0 0.0
        %1176 = vmatprep.subr.mxu0 0.0
        %1177 = vmatpush1.xpose.msra.mxu0 0.0
        %1178 = vmatprep.subr.mxu0 0.0
        %1179 = vmatpush1.xpose.msra.mxu0 0.0
        %1180 = vmatprep.subr.mxu0 0.0
        %1181 = vmatpush1.xpose.msra.mxu0 0.0
        %1182 = vmatprep.subr.mxu0 0.0
        %1183 = vmatpush1.xpose.msra.mxu0 %v1150
        %1184 = vmatprep.subr.mxu0 0.0
        %1185 = vmatpush2.xpose.msra.mxu0 0.0
        %1186 = vmatprep.subr.mxu0 0.0
        %1187 = vmatpush2.xpose.msra.mxu0 0.0
        %1188 = vmatprep.subr.mxu0 0.0
        %1189 = vmatpush2.xpose.msra.mxu0 0.0
        %1190 = vmatprep.subr.mxu0 0.0
        %1191 = vmatpush2.xpose.msra.mxu0 0.0
        %1192 = vmatprep.subr.mxu0 0.0
        %1193 = vmatpush2.xpose.msra.mxu0 0.0
        %1194 = vmatprep.subr.mxu0 0.0
        %1195 = vmatpush2.xpose.msra.mxu0 0.0
        %1196 = vmatprep.subr.mxu0 0.0
        %1197 = vmatpush2.xpose.msra.mxu0 0.0
        %1198 = vmatprep.subr.mxu0 0.0
        %1199 = vmatpush2.xpose.msra.mxu0 0.0
        %1200 = vmatprep.subr.mxu0 0.0
        %1201 = vmatpush2.xpose.msra.mxu0 0.0
        %1202 = vmatprep.subr.mxu0 0.0
        %1203 = vmatpush2.xpose.msra.mxu0 0.0
        %1204 = vmatprep.subr.mxu0 0.0
        %1205 = vmatpush2.xpose.msra.mxu0 0.0
        %1206 = vmatprep.subr.mxu0 0.0
        %1207 = vmatpush2.xpose.msra.mxu0 0.0
        %1208 = vmatprep.subr.mxu0 0.0
        %1209 = vmatpush2.xpose.msra.mxu0 0.0
        %1210 = vmatprep.subr.mxu0 0.0
        %1211 = vmatpush2.xpose.msra.mxu0 0.0
        %1212 = vmatprep.subr.mxu0 0.0
        %1213 = vmatpush2.xpose.msra.mxu0 0.0
        %1214 = vmatprep.subr.mxu0 0.0
        %1215 = vmatpush2.xpose.msra.mxu0 0.0
        %1216 = vmatprep.mubr.f32.mxu0 0.0
        %1217 = vmatmul.mubr.f32.gmra.mxu0 %v1147
        %v1218 = vpop.f32.mrf.mxu0
        %v1219 = vadd.f32 0.0, %v1218
        %v1220 = vpop.f32.mrf.mxu0
        %1221 = vdwg.mxu0
        %v1222 = vsel %vm642, %v1143, -inf
        %1223 = vmax.xlane.f32.xlu0 %v1222
        %v1224 = vpop.xlane.xlu0 %1223
        %v1225 = vsel %vm642, %v1219, -inf
        %1226 = vmax.xlane.f32.xlu0 %v1225
        %v1227 = vpop.xlane.xlu0 %1226
        %v1228 = vsub.f32 %v1143, %v1224
        %v1229 = vsub.f32 %v1219, %v1227
        %v1230 = vmul.f32 %v1228, 1.442695
        %v1231 = vpow.pop %v1230
        %v1232 = vmul.f32 %v1229, 1.442695
        %v1233 = vpow.pop %v1232
        %v1234 = vsel %vm642, %v1231, 0.0
        %1235 = vadd.xlane.f32.xlu0 %v1234
        %v1236 = vpop.xlane.xlu0 %1235
        %v1237 = vsel %vm642, %v1233, 0.0
        %1238 = vadd.xlane.f32.xlu0 %v1237
        %v1239 = vpop.xlane.xlu0 %1238
        %v1240 = vrcp.pop %v1236
        %v1241 = vrcp.pop %v1239
        %v1242 = vmul.f32 %v1231, %v1240
        %v1243 = vmul.f32 %v1233, %v1241
        %v1245 = vsel %vm642, %v1242, 0
        %1247 = vmatprep.subr.mxu0 0.0
        %1248 = vmatpush1.msra.mxu0 0.0
        %1249 = vmatprep.subr.mxu0 0.0
        %1250 = vmatpush1.msra.mxu0 0.0
        %1251 = vmatprep.subr.mxu0 0.0
        %1252 = vmatpush1.msra.mxu0 0.0
        %1253 = vmatprep.subr.mxu0 0.0
        %1254 = vmatpush1.msra.mxu0 0.0
        %1255 = vmatprep.subr.mxu0 0.0
        %1256 = vmatpush1.msra.mxu0 0.0
        %1257 = vmatprep.subr.mxu0 0.0
        %1258 = vmatpush1.msra.mxu0 0.0
        %1259 = vmatprep.subr.mxu0 0.0
        %1260 = vmatpush1.msra.mxu0 0.0
        %1261 = vmatprep.subr.mxu0 0.0
        %1262 = vmatpush1.msra.mxu0 0.0
        %1263 = vmatprep.subr.mxu0 0.0
        %1264 = vmatpush1.msra.mxu0 0.0
        %1265 = vmatprep.subr.mxu0 0.0
        %1266 = vmatpush1.msra.mxu0 0.0
        %1267 = vmatprep.subr.mxu0 0.0
        %1268 = vmatpush1.msra.mxu0 0.0
        %1269 = vmatprep.subr.mxu0 0.0
        %1270 = vmatpush1.msra.mxu0 0.0
        %1271 = vmatprep.subr.mxu0 0.0
        %1272 = vmatpush1.msra.mxu0 0.0
        %1273 = vmatprep.subr.mxu0 0.0
        %1274 = vmatpush1.msra.mxu0 0.0
        %1275 = vmatprep.subr.mxu0 0.0
        %1276 = vmatpush1.msra.mxu0 0.0
        %1277 = vmatprep.subr.mxu0 0.0
        %1278 = vmatpush1.msra.mxu0 %v1061
        %1279 = vmatprep.subr.mxu0 0.0
        %1280 = vmatpush2.msra.mxu0 0.0
        %1281 = vmatprep.subr.mxu0 0.0
        %1282 = vmatpush2.msra.mxu0 0.0
        %1283 = vmatprep.subr.mxu0 0.0
        %1284 = vmatpush2.msra.mxu0 0.0
        %1285 = vmatprep.subr.mxu0 0.0
        %1286 = vmatpush2.msra.mxu0 0.0
        %1287 = vmatprep.subr.mxu0 0.0
        %1288 = vmatpush2.msra.mxu0 0.0
        %1289 = vmatprep.subr.mxu0 0.0
        %1290 = vmatpush2.msra.mxu0 0.0
        %1291 = vmatprep.subr.mxu0 0.0
        %1292 = vmatpush2.msra.mxu0 0.0
        %1293 = vmatprep.subr.mxu0 0.0
        %1294 = vmatpush2.msra.mxu0 0.0
        %1295 = vmatprep.subr.mxu0 0.0
        %1296 = vmatpush2.msra.mxu0 0.0
        %1297 = vmatprep.subr.mxu0 0.0
        %1298 = vmatpush2.msra.mxu0 0.0
        %1299 = vmatprep.subr.mxu0 0.0
        %1300 = vmatpush2.msra.mxu0 0.0
        %1301 = vmatprep.subr.mxu0 0.0
        %1302 = vmatpush2.msra.mxu0 0.0
        %1303 = vmatprep.subr.mxu0 0.0
        %1304 = vmatpush2.msra.mxu0 0.0
        %1305 = vmatprep.subr.mxu0 0.0
        %1306 = vmatpush2.msra.mxu0 0.0
        %1307 = vmatprep.subr.mxu0 0.0
        %1308 = vmatpush2.msra.mxu0 0.0
        %1309 = vmatprep.subr.mxu0 0.0
        %1310 = vmatpush2.msra.mxu0 0.0
        %1311 = vmatprep.mubr.f32.mxu0 0.0
        %1312 = vmatmul.mubr.f32.gmra.mxu0 %v1245
        %v1313 = vpop.f32.mrf.mxu0
        %v1314 = vadd.f32 0.0, %v1313
        %v1315 = vpop.f32.mrf.mxu0
        %1316 = vdwg.mxu0
        %v1318 = vsel %vm642, %v1243, 0
        %1320 = vmatprep.subr.mxu0 0.0
        %1321 = vmatpush1.msra.mxu0 0.0
        %1322 = vmatprep.subr.mxu0 0.0
        %1323 = vmatpush1.msra.mxu0 0.0
        %1324 = vmatprep.subr.mxu0 0.0
        %1325 = vmatpush1.msra.mxu0 0.0
        %1326 = vmatprep.subr.mxu0 0.0
        %1327 = vmatpush1.msra.mxu0 0.0
        %1328 = vmatprep.subr.mxu0 0.0
        %1329 = vmatpush1.msra.mxu0 0.0
        %1330 = vmatprep.subr.mxu0 0.0
        %1331 = vmatpush1.msra.mxu0 0.0
        %1332 = vmatprep.subr.mxu0 0.0
        %1333 = vmatpush1.msra.mxu0 0.0
        %1334 = vmatprep.subr.mxu0 0.0
        %1335 = vmatpush1.msra.mxu0 0.0
        %1336 = vmatprep.subr.mxu0 0.0
        %1337 = vmatpush1.msra.mxu0 0.0
        %1338 = vmatprep.subr.mxu0 0.0
        %1339 = vmatpush1.msra.mxu0 0.0
        %1340 = vmatprep.subr.mxu0 0.0
        %1341 = vmatpush1.msra.mxu0 0.0
        %1342 = vmatprep.subr.mxu0 0.0
        %1343 = vmatpush1.msra.mxu0 0.0
        %1344 = vmatprep.subr.mxu0 0.0
        %1345 = vmatpush1.msra.mxu0 0.0
        %1346 = vmatprep.subr.mxu0 0.0
        %1347 = vmatpush1.msra.mxu0 0.0
        %1348 = vmatprep.subr.mxu0 0.0
        %1349 = vmatpush1.msra.mxu0 0.0
        %1350 = vmatprep.subr.mxu0 0.0
        %1351 = vmatpush1.msra.mxu0 %v1066
        %1352 = vmatprep.subr.mxu0 0.0
        %1353 = vmatpush2.msra.mxu0 0.0
        %1354 = vmatprep.subr.mxu0 0.0
        %1355 = vmatpush2.msra.mxu0 0.0
        %1356 = vmatprep.subr.mxu0 0.0
        %1357 = vmatpush2.msra.mxu0 0.0
        %1358 = vmatprep.subr.mxu0 0.0
        %1359 = vmatpush2.msra.mxu0 0.0
        %1360 = vmatprep.subr.mxu0 0.0
        %1361 = vmatpush2.msra.mxu0 0.0
        %1362 = vmatprep.subr.mxu0 0.0
        %1363 = vmatpush2.msra.mxu0 0.0
        %1364 = vmatprep.subr.mxu0 0.0
        %1365 = vmatpush2.msra.mxu0 0.0
        %1366 = vmatprep.subr.mxu0 0.0
        %1367 = vmatpush2.msra.mxu0 0.0
        %1368 = vmatprep.subr.mxu0 0.0
        %1369 = vmatpush2.msra.mxu0 0.0
        %1370 = vmatprep.subr.mxu0 0.0
        %1371 = vmatpush2.msra.mxu0 0.0
        %1372 = vmatprep.subr.mxu0 0.0
        %1373 = vmatpush2.msra.mxu0 0.0
        %1374 = vmatprep.subr.mxu0 0.0
        %1375 = vmatpush2.msra.mxu0 0.0
        %1376 = vmatprep.subr.mxu0 0.0
        %1377 = vmatpush2.msra.mxu0 0.0
        %1378 = vmatprep.subr.mxu0 0.0
        %1379 = vmatpush2.msra.mxu0 0.0
        %1380 = vmatprep.subr.mxu0 0.0
        %1381 = vmatpush2.msra.mxu0 0.0
        %1382 = vmatprep.subr.mxu0 0.0
        %1383 = vmatpush2.msra.mxu0 0.0
        %1384 = vmatprep.mubr.f32.mxu0 0.0
        %1385 = vmatmul.mubr.f32.gmra.mxu0 %v1318
        %v1386 = vpop.f32.mrf.mxu0
        %v1387 = vadd.f32 0.0, %v1386
        %v1388 = vpop.f32.mrf.mxu0
        %1389 = vdwg.mxu0
        %v1390 = vld [vmem:[#allocation9] sm:$0xff]
        %v1391 = vld [vmem:[#allocation9 + $0x8] sm:$0xff]
        %v1392 = vld [vmem:[#allocation9 + $0x10] sm:$0xff]
        %v1393 = vld [vmem:[#allocation9 + $0x18] sm:$0xff]
        %v1394 = vld [vmem:[#allocation9 + $0x20] sm:$0xff]
        %v1395 = vld [vmem:[#allocation9 + $0x28] sm:$0xff]
        %v1396 = vld [vmem:[#allocation9 + $0x30] sm:$0xff]
        %v1397 = vld [vmem:[#allocation9 + $0x38] sm:$0xff]
        %1398 = vrot.lane.b32.xlu0 %v984, 64
        %v1399 = vpop.permute.xlu0 %1398
        %1400 = vrot.lane.b32.xlu0 %v986, 64
        %v1401 = vpop.permute.xlu0 %1400
        %v1402 = vsel %vm1069, %v1399, 0
        %v1404 = vsel %vm1069, %v1401, 0
        %1406 = vmatprep.subr.mxu0 0.0
        %1407 = vmatpush1.xpose.msra.mxu0 0.0
        %1408 = vmatprep.subr.mxu0 0.0
        %1409 = vmatpush1.xpose.msra.mxu0 0.0
        %1410 = vmatprep.subr.mxu0 0.0
        %1411 = vmatpush1.xpose.msra.mxu0 0.0
        %1412 = vmatprep.subr.mxu0 0.0
        %1413 = vmatpush1.xpose.msra.mxu0 0.0
        %1414 = vmatprep.subr.mxu0 0.0
        %1415 = vmatpush1.xpose.msra.mxu0 0.0
        %1416 = vmatprep.subr.mxu0 0.0
        %1417 = vmatpush1.xpose.msra.mxu0 0.0
        %1418 = vmatprep.subr.mxu0 0.0
        %1419 = vmatpush1.xpose.msra.mxu0 0.0
        %1420 = vmatprep.subr.mxu0 0.0
        %1421 = vmatpush1.xpose.msra.mxu0 0.0
        %1422 = vmatprep.subr.mxu0 0.0
        %1423 = vmatpush1.xpose.msra.mxu0 0.0
        %1424 = vmatprep.subr.mxu0 0.0
        %1425 = vmatpush1.xpose.msra.mxu0 0.0
        %1426 = vmatprep.subr.mxu0 0.0
        %1427 = vmatpush1.xpose.msra.mxu0 0.0
        %1428 = vmatprep.subr.mxu0 0.0
        %1429 = vmatpush1.xpose.msra.mxu0 0.0
        %1430 = vmatprep.subr.mxu0 0.0
        %1431 = vmatpush1.xpose.msra.mxu0 0.0
        %1432 = vmatprep.subr.mxu0 0.0
        %1433 = vmatpush1.xpose.msra.mxu0 0.0
        %1434 = vmatprep.subr.mxu0 0.0
        %1435 = vmatpush1.xpose.msra.mxu0 0.0
        %1436 = vmatprep.subr.mxu0 0.0
        %1437 = vmatpush1.xpose.msra.mxu0 %v1404
        %1438 = vmatprep.subr.mxu0 0.0
        %1439 = vmatpush2.xpose.msra.mxu0 0.0
        %1440 = vmatprep.subr.mxu0 0.0
        %1441 = vmatpush2.xpose.msra.mxu0 0.0
        %1442 = vmatprep.subr.mxu0 0.0
        %1443 = vmatpush2.xpose.msra.mxu0 0.0
        %1444 = vmatprep.subr.mxu0 0.0
        %1445 = vmatpush2.xpose.msra.mxu0 0.0
        %1446 = vmatprep.subr.mxu0 0.0
        %1447 = vmatpush2.xpose.msra.mxu0 0.0
        %1448 = vmatprep.subr.mxu0 0.0
        %1449 = vmatpush2.xpose.msra.mxu0 0.0
        %1450 = vmatprep.subr.mxu0 0.0
        %1451 = vmatpush2.xpose.msra.mxu0 0.0
        %1452 = vmatprep.subr.mxu0 0.0
        %1453 = vmatpush2.xpose.msra.mxu0 0.0
        %1454 = vmatprep.subr.mxu0 0.0
        %1455 = vmatpush2.xpose.msra.mxu0 0.0
        %1456 = vmatprep.subr.mxu0 0.0
        %1457 = vmatpush2.xpose.msra.mxu0 0.0
        %1458 = vmatprep.subr.mxu0 0.0
        %1459 = vmatpush2.xpose.msra.mxu0 0.0
        %1460 = vmatprep.subr.mxu0 0.0
        %1461 = vmatpush2.xpose.msra.mxu0 0.0
        %1462 = vmatprep.subr.mxu0 0.0
        %1463 = vmatpush2.xpose.msra.mxu0 0.0
        %1464 = vmatprep.subr.mxu0 0.0
        %1465 = vmatpush2.xpose.msra.mxu0 0.0
        %1466 = vmatprep.subr.mxu0 0.0
        %1467 = vmatpush2.xpose.msra.mxu0 0.0
        %1468 = vmatprep.subr.mxu0 0.0
        %1469 = vmatpush2.xpose.msra.mxu0 0.0
        %1470 = vmatprep.mubr.f32.mxu0 0.0
        %1471 = vmatmul.mubr.f32.gmra.mxu0 %v1402
        %v1472 = vpop.f32.mrf.mxu0
        %v1473 = vadd.f32 0.0, %v1472
        %v1474 = vpop.f32.mrf.mxu0
        %1475 = vdwg.mxu0
        %1476 = vrot.lane.b32.xlu0 %v990, 64
        %v1477 = vpop.permute.xlu0 %1476
        %1478 = vrot.lane.b32.xlu0 %v992, 64
        %v1479 = vpop.permute.xlu0 %1478
        %v1480 = vsel %vm1069, %v1477, 0
        %v1482 = vsel %vm1069, %v1479, 0
        %1484 = vmatprep.subr.mxu0 0.0
        %1485 = vmatpush1.xpose.msra.mxu0 0.0
        %1486 = vmatprep.subr.mxu0 0.0
        %1487 = vmatpush1.xpose.msra.mxu0 0.0
        %1488 = vmatprep.subr.mxu0 0.0
        %1489 = vmatpush1.xpose.msra.mxu0 0.0
        %1490 = vmatprep.subr.mxu0 0.0
        %1491 = vmatpush1.xpose.msra.mxu0 0.0
        %1492 = vmatprep.subr.mxu0 0.0
        %1493 = vmatpush1.xpose.msra.mxu0 0.0
        %1494 = vmatprep.subr.mxu0 0.0
        %1495 = vmatpush1.xpose.msra.mxu0 0.0
        %1496 = vmatprep.subr.mxu0 0.0
        %1497 = vmatpush1.xpose.msra.mxu0 0.0
        %1498 = vmatprep.subr.mxu0 0.0
        %1499 = vmatpush1.xpose.msra.mxu0 0.0
        %1500 = vmatprep.subr.mxu0 0.0
        %1501 = vmatpush1.xpose.msra.mxu0 0.0
        %1502 = vmatprep.subr.mxu0 0.0
        %1503 = vmatpush1.xpose.msra.mxu0 0.0
        %1504 = vmatprep.subr.mxu0 0.0
        %1505 = vmatpush1.xpose.msra.mxu0 0.0
        %1506 = vmatprep.subr.mxu0 0.0
        %1507 = vmatpush1.xpose.msra.mxu0 0.0
        %1508 = vmatprep.subr.mxu0 0.0
        %1509 = vmatpush1.xpose.msra.mxu0 0.0
        %1510 = vmatprep.subr.mxu0 0.0
        %1511 = vmatpush1.xpose.msra.mxu0 0.0
        %1512 = vmatprep.subr.mxu0 0.0
        %1513 = vmatpush1.xpose.msra.mxu0 0.0
        %1514 = vmatprep.subr.mxu0 0.0
        %1515 = vmatpush1.xpose.msra.mxu0 %v1482
        %1516 = vmatprep.subr.mxu0 0.0
        %1517 = vmatpush2.xpose.msra.mxu0 0.0
        %1518 = vmatprep.subr.mxu0 0.0
        %1519 = vmatpush2.xpose.msra.mxu0 0.0
        %1520 = vmatprep.subr.mxu0 0.0
        %1521 = vmatpush2.xpose.msra.mxu0 0.0
        %1522 = vmatprep.subr.mxu0 0.0
        %1523 = vmatpush2.xpose.msra.mxu0 0.0
        %1524 = vmatprep.subr.mxu0 0.0
        %1525 = vmatpush2.xpose.msra.mxu0 0.0
        %1526 = vmatprep.subr.mxu0 0.0
        %1527 = vmatpush2.xpose.msra.mxu0 0.0
        %1528 = vmatprep.subr.mxu0 0.0
        %1529 = vmatpush2.xpose.msra.mxu0 0.0
        %1530 = vmatprep.subr.mxu0 0.0
        %1531 = vmatpush2.xpose.msra.mxu0 0.0
        %1532 = vmatprep.subr.mxu0 0.0
        %1533 = vmatpush2.xpose.msra.mxu0 0.0
        %1534 = vmatprep.subr.mxu0 0.0
        %1535 = vmatpush2.xpose.msra.mxu0 0.0
        %1536 = vmatprep.subr.mxu0 0.0
        %1537 = vmatpush2.xpose.msra.mxu0 0.0
        %1538 = vmatprep.subr.mxu0 0.0
        %1539 = vmatpush2.xpose.msra.mxu0 0.0
        %1540 = vmatprep.subr.mxu0 0.0
        %1541 = vmatpush2.xpose.msra.mxu0 0.0
        %1542 = vmatprep.subr.mxu0 0.0
        %1543 = vmatpush2.xpose.msra.mxu0 0.0
        %1544 = vmatprep.subr.mxu0 0.0
        %1545 = vmatpush2.xpose.msra.mxu0 0.0
        %1546 = vmatprep.subr.mxu0 0.0
        %1547 = vmatpush2.xpose.msra.mxu0 0.0
        %1548 = vmatprep.mubr.f32.mxu0 0.0
        %1549 = vmatmul.mubr.f32.gmra.mxu0 %v1480
        %v1550 = vpop.f32.mrf.mxu0
        %v1551 = vadd.f32 0.0, %v1550
        %v1552 = vpop.f32.mrf.mxu0
        %1553 = vdwg.mxu0
        %v1554 = vsel %vm642, %v1473, -inf
        %1555 = vmax.xlane.f32.xlu0 %v1554
        %v1556 = vpop.xlane.xlu0 %1555
        %v1557 = vsel %vm642, %v1551, -inf
        %1558 = vmax.xlane.f32.xlu0 %v1557
        %v1559 = vpop.xlane.xlu0 %1558
        %v1560 = vsub.f32 %v1473, %v1556
        %v1561 = vsub.f32 %v1551, %v1559
        %v1562 = vmul.f32 %v1560, 1.442695
        %v1563 = vpow.pop %v1562
        %v1564 = vmul.f32 %v1561, 1.442695
        %v1565 = vpow.pop %v1564
        %v1566 = vsel %vm642, %v1563, 0.0
        %1567 = vadd.xlane.f32.xlu0 %v1566
        %v1568 = vpop.xlane.xlu0 %1567
        %v1569 = vsel %vm642, %v1565, 0.0
        %1570 = vadd.xlane.f32.xlu0 %v1569
        %v1571 = vpop.xlane.xlu0 %1570
        %v1572 = vrcp.pop %v1568
        %v1573 = vrcp.pop %v1571
        %v1574 = vmul.f32 %v1563, %v1572
        %v1575 = vmul.f32 %v1565, %v1573
        %1577 = vrot.lane.b32.xlu0 %v1061, 64
        %v1578 = vpop.permute.xlu0 %1577
        %v1581 = vsel %vm642, %v1574, 0
        %1583 = vmatprep.subr.mxu0 0.0
        %1584 = vmatpush1.msra.mxu0 0.0
        %1585 = vmatprep.subr.mxu0 0.0
        %1586 = vmatpush1.msra.mxu0 0.0
        %1587 = vmatprep.subr.mxu0 0.0
        %1588 = vmatpush1.msra.mxu0 0.0
        %1589 = vmatprep.subr.mxu0 0.0
        %1590 = vmatpush1.msra.mxu0 0.0
        %1591 = vmatprep.subr.mxu0 0.0
        %1592 = vmatpush1.msra.mxu0 0.0
        %1593 = vmatprep.subr.mxu0 0.0
        %1594 = vmatpush1.msra.mxu0 0.0
        %1595 = vmatprep.subr.mxu0 0.0
        %1596 = vmatpush1.msra.mxu0 0.0
        %1597 = vmatprep.subr.mxu0 0.0
        %1598 = vmatpush1.msra.mxu0 0.0
        %1599 = vmatprep.subr.mxu0 0.0
        %1600 = vmatpush1.msra.mxu0 0.0
        %1601 = vmatprep.subr.mxu0 0.0
        %1602 = vmatpush1.msra.mxu0 0.0
        %1603 = vmatprep.subr.mxu0 0.0
        %1604 = vmatpush1.msra.mxu0 0.0
        %1605 = vmatprep.subr.mxu0 0.0
        %1606 = vmatpush1.msra.mxu0 0.0
        %1607 = vmatprep.subr.mxu0 0.0
        %1608 = vmatpush1.msra.mxu0 0.0
        %1609 = vmatprep.subr.mxu0 0.0
        %1610 = vmatpush1.msra.mxu0 0.0
        %1611 = vmatprep.subr.mxu0 0.0
        %1612 = vmatpush1.msra.mxu0 0.0
        %1613 = vmatprep.subr.mxu0 0.0
        %1614 = vmatpush1.msra.mxu0 %v1578
        %1615 = vmatprep.subr.mxu0 0.0
        %1616 = vmatpush2.msra.mxu0 0.0
        %1617 = vmatprep.subr.mxu0 0.0
        %1618 = vmatpush2.msra.mxu0 0.0
        %1619 = vmatprep.subr.mxu0 0.0
        %1620 = vmatpush2.msra.mxu0 0.0
        %1621 = vmatprep.subr.mxu0 0.0
        %1622 = vmatpush2.msra.mxu0 0.0
        %1623 = vmatprep.subr.mxu0 0.0
        %1624 = vmatpush2.msra.mxu0 0.0
        %1625 = vmatprep.subr.mxu0 0.0
        %1626 = vmatpush2.msra.mxu0 0.0
        %1627 = vmatprep.subr.mxu0 0.0
        %1628 = vmatpush2.msra.mxu0 0.0
        %1629 = vmatprep.subr.mxu0 0.0
        %1630 = vmatpush2.msra.mxu0 0.0
        %1631 = vmatprep.subr.mxu0 0.0
        %1632 = vmatpush2.msra.mxu0 0.0
        %1633 = vmatprep.subr.mxu0 0.0
        %1634 = vmatpush2.msra.mxu0 0.0
        %1635 = vmatprep.subr.mxu0 0.0
        %1636 = vmatpush2.msra.mxu0 0.0
        %1637 = vmatprep.subr.mxu0 0.0
        %1638 = vmatpush2.msra.mxu0 0.0
        %1639 = vmatprep.subr.mxu0 0.0
        %1640 = vmatpush2.msra.mxu0 0.0
        %1641 = vmatprep.subr.mxu0 0.0
        %1642 = vmatpush2.msra.mxu0 0.0
        %1643 = vmatprep.subr.mxu0 0.0
        %1644 = vmatpush2.msra.mxu0 0.0
        %1645 = vmatprep.subr.mxu0 0.0
        %1646 = vmatpush2.msra.mxu0 0.0
        %1647 = vmatprep.mubr.f32.mxu0 0.0
        %1648 = vmatmul.mubr.f32.gmra.mxu0 %v1581
        %v1649 = vpop.f32.mrf.mxu0
        %v1650 = vadd.f32 0.0, %v1649
        %v1651 = vpop.f32.mrf.mxu0
        %1652 = vdwg.mxu0
        %1654 = vrot.lane.b32.xlu0 %v1066, 64
        %v1655 = vpop.permute.xlu0 %1654
        %v1658 = vsel %vm642, %v1575, 0
        %1660 = vmatprep.subr.mxu0 0.0
        %1661 = vmatpush1.msra.mxu0 0.0
        %1662 = vmatprep.subr.mxu0 0.0
        %1663 = vmatpush1.msra.mxu0 0.0
        %1664 = vmatprep.subr.mxu0 0.0
        %1665 = vmatpush1.msra.mxu0 0.0
        %1666 = vmatprep.subr.mxu0 0.0
        %1667 = vmatpush1.msra.mxu0 0.0
        %1668 = vmatprep.subr.mxu0 0.0
        %1669 = vmatpush1.msra.mxu0 0.0
        %1670 = vmatprep.subr.mxu0 0.0
        %1671 = vmatpush1.msra.mxu0 0.0
        %1672 = vmatprep.subr.mxu0 0.0
        %1673 = vmatpush1.msra.mxu0 0.0
        %1674 = vmatprep.subr.mxu0 0.0
        %1675 = vmatpush1.msra.mxu0 0.0
        %1676 = vmatprep.subr.mxu0 0.0
        %1677 = vmatpush1.msra.mxu0 0.0
        %1678 = vmatprep.subr.mxu0 0.0
        %1679 = vmatpush1.msra.mxu0 0.0
        %1680 = vmatprep.subr.mxu0 0.0
        %1681 = vmatpush1.msra.mxu0 0.0
        %1682 = vmatprep.subr.mxu0 0.0
        %1683 = vmatpush1.msra.mxu0 0.0
        %1684 = vmatprep.subr.mxu0 0.0
        %1685 = vmatpush1.msra.mxu0 0.0
        %1686 = vmatprep.subr.mxu0 0.0
        %1687 = vmatpush1.msra.mxu0 0.0
        %1688 = vmatprep.subr.mxu0 0.0
        %1689 = vmatpush1.msra.mxu0 0.0
        %1690 = vmatprep.subr.mxu0 0.0
        %1691 = vmatpush1.msra.mxu0 %v1655
        %1692 = vmatprep.subr.mxu0 0.0
        %1693 = vmatpush2.msra.mxu0 0.0
        %1694 = vmatprep.subr.mxu0 0.0
        %1695 = vmatpush2.msra.mxu0 0.0
        %1696 = vmatprep.subr.mxu0 0.0
        %1697 = vmatpush2.msra.mxu0 0.0
        %1698 = vmatprep.subr.mxu0 0.0
        %1699 = vmatpush2.msra.mxu0 0.0
        %1700 = vmatprep.subr.mxu0 0.0
        %1701 = vmatpush2.msra.mxu0 0.0
        %1702 = vmatprep.subr.mxu0 0.0
        %1703 = vmatpush2.msra.mxu0 0.0
        %1704 = vmatprep.subr.mxu0 0.0
        %1705 = vmatpush2.msra.mxu0 0.0
        %1706 = vmatprep.subr.mxu0 0.0
        %1707 = vmatpush2.msra.mxu0 0.0
        %1708 = vmatprep.subr.mxu0 0.0
        %1709 = vmatpush2.msra.mxu0 0.0
        %1710 = vmatprep.subr.mxu0 0.0
        %1711 = vmatpush2.msra.mxu0 0.0
        %1712 = vmatprep.subr.mxu0 0.0
        %1713 = vmatpush2.msra.mxu0 0.0
        %1714 = vmatprep.subr.mxu0 0.0
        %1715 = vmatpush2.msra.mxu0 0.0
        %1716 = vmatprep.subr.mxu0 0.0
        %1717 = vmatpush2.msra.mxu0 0.0
        %1718 = vmatprep.subr.mxu0 0.0
        %1719 = vmatpush2.msra.mxu0 0.0
        %1720 = vmatprep.subr.mxu0 0.0
        %1721 = vmatpush2.msra.mxu0 0.0
        %1722 = vmatprep.subr.mxu0 0.0
        %1723 = vmatpush2.msra.mxu0 0.0
        %1724 = vmatprep.mubr.f32.mxu0 0.0
        %1725 = vmatmul.mubr.f32.gmra.mxu0 %v1658
        %v1726 = vpop.f32.mrf.mxu0
        %v1727 = vadd.f32 0.0, %v1726
        %v1728 = vpop.f32.mrf.mxu0
        %1729 = vdwg.mxu0
        %s1730 = scalar_lea.vmem [#allocation9], 64
        %v1731 = vld [vmem:[%s1730] sm:$0xff]
        %v1732 = vld [vmem:[%s1730 + $0x8] sm:$0xff]
        %v1733 = vld [vmem:[%s1730 + $0x10] sm:$0xff]
        %v1734 = vld [vmem:[%s1730 + $0x18] sm:$0xff]
        %v1735 = vld [vmem:[%s1730 + $0x20] sm:$0xff]
        %v1736 = vld [vmem:[%s1730 + $0x28] sm:$0xff]
        %v1737 = vld [vmem:[%s1730 + $0x30] sm:$0xff]
        %v1738 = vld [vmem:[%s1730 + $0x38] sm:$0xff]
        %v1740 = vsel %vm1069, %v1650, 0
        %v1743 = vsel %vm1069, %v1727, 0
        %1745 = vmatprep.subr.mxu0 0.0
        %1746 = vmatpush1.msra.mxu0 0.0
        %1747 = vmatprep.subr.mxu0 0.0
        %1748 = vmatpush1.msra.mxu0 0.0
        %1749 = vmatprep.subr.mxu0 0.0
        %1750 = vmatpush1.msra.mxu0 0.0
        %1751 = vmatprep.subr.mxu0 0.0
        %1752 = vmatpush1.msra.mxu0 0.0
        %1753 = vmatprep.subr.mxu0 0.0
        %1754 = vmatpush1.msra.mxu0 0.0
        %1755 = vmatprep.subr.mxu0 0.0
        %1756 = vmatpush1.msra.mxu0 0.0
        %1757 = vmatprep.subr.mxu0 0.0
        %1758 = vmatpush1.msra.mxu0 0.0
        %1759 = vmatprep.subr.mxu0 0.0
        %1760 = vmatpush1.msra.mxu0 0.0
        %1761 = vmatprep.subr.mxu0 0.0
        %1762 = vmatpush1.msra.mxu0 %v1738
        %1763 = vmatprep.subr.mxu0 0.0
        %1764 = vmatpush1.msra.mxu0 %v1737
        %1765 = vmatprep.subr.mxu0 0.0
        %1766 = vmatpush1.msra.mxu0 %v1736
        %1767 = vmatprep.subr.mxu0 0.0
        %1768 = vmatpush1.msra.mxu0 %v1735
        %1769 = vmatprep.subr.mxu0 0.0
        %1770 = vmatpush1.msra.mxu0 %v1734
        %1771 = vmatprep.subr.mxu0 0.0
        %1772 = vmatpush1.msra.mxu0 %v1733
        %1773 = vmatprep.subr.mxu0 0.0
        %1774 = vmatpush1.msra.mxu0 %v1732
        %1775 = vmatprep.subr.mxu0 0.0
        %1776 = vmatpush1.msra.mxu0 %v1731
        %1777 = vmatprep.subr.mxu0 0.0
        %1778 = vmatpush2.msra.mxu0 0.0
        %1779 = vmatprep.subr.mxu0 0.0
        %1780 = vmatpush2.msra.mxu0 0.0
        %1781 = vmatprep.subr.mxu0 0.0
        %1782 = vmatpush2.msra.mxu0 0.0
        %1783 = vmatprep.subr.mxu0 0.0
        %1784 = vmatpush2.msra.mxu0 0.0
        %1785 = vmatprep.subr.mxu0 0.0
        %1786 = vmatpush2.msra.mxu0 0.0
        %1787 = vmatprep.subr.mxu0 0.0
        %1788 = vmatpush2.msra.mxu0 0.0
        %1789 = vmatprep.subr.mxu0 0.0
        %1790 = vmatpush2.msra.mxu0 0.0
        %1791 = vmatprep.subr.mxu0 0.0
        %1792 = vmatpush2.msra.mxu0 0.0
        %1793 = vmatprep.subr.mxu0 0.0
        %1794 = vmatpush2.msra.mxu0 0.0
        %1795 = vmatprep.subr.mxu0 0.0
        %1796 = vmatpush2.msra.mxu0 0.0
        %1797 = vmatprep.subr.mxu0 0.0
        %1798 = vmatpush2.msra.mxu0 0.0
        %1799 = vmatprep.subr.mxu0 0.0
        %1800 = vmatpush2.msra.mxu0 0.0
        %1801 = vmatprep.subr.mxu0 0.0
        %1802 = vmatpush2.msra.mxu0 0.0
        %1803 = vmatprep.subr.mxu0 0.0
        %1804 = vmatpush2.msra.mxu0 0.0
        %1805 = vmatprep.subr.mxu0 0.0
        %1806 = vmatpush2.msra.mxu0 0.0
        %1807 = vmatprep.subr.mxu0 0.0
        %1808 = vmatpush2.msra.mxu0 0.0
        %1809 = vmatprep.mubr.f32.mxu0 0.0
        %1810 = vmatmul.mubr.f32.gmra.mxu0 %v1740
        %v1811 = vpop.f32.mrf.mxu0
        %v1812 = vadd.f32 0.0, %v1811
        %v1813 = vpop.f32.mrf.mxu0
        %1814 = vmatprep.mubr.f32.mxu0 0.0
        %1815 = vmatmul.mubr.f32.gmra.mxu0 %v1743
        %v1816 = vpop.f32.mrf.mxu0
        %v1817 = vadd.f32 0.0, %v1816
        %v1818 = vpop.f32.mrf.mxu0
        %1819 = vdwg.mxu0
        %v1821 = vsel %vm1069, %v1314, 0
        %v1824 = vsel %vm1069, %v1387, 0
        %1826 = vmatprep.subr.mxu0 0.0
        %1827 = vmatpush1.msra.mxu0 0.0
        %1828 = vmatprep.subr.mxu0 0.0
        %1829 = vmatpush1.msra.mxu0 0.0
        %1830 = vmatprep.subr.mxu0 0.0
        %1831 = vmatpush1.msra.mxu0 0.0
        %1832 = vmatprep.subr.mxu0 0.0
        %1833 = vmatpush1.msra.mxu0 0.0
        %1834 = vmatprep.subr.mxu0 0.0
        %1835 = vmatpush1.msra.mxu0 0.0
        %1836 = vmatprep.subr.mxu0 0.0
        %1837 = vmatpush1.msra.mxu0 0.0
        %1838 = vmatprep.subr.mxu0 0.0
        %1839 = vmatpush1.msra.mxu0 0.0
        %1840 = vmatprep.subr.mxu0 0.0
        %1841 = vmatpush1.msra.mxu0 0.0
        %1842 = vmatprep.subr.mxu0 0.0
        %1843 = vmatpush1.msra.mxu0 %v1397
        %1844 = vmatprep.subr.mxu0 0.0
        %1845 = vmatpush1.msra.mxu0 %v1396
        %1846 = vmatprep.subr.mxu0 0.0
        %1847 = vmatpush1.msra.mxu0 %v1395
        %1848 = vmatprep.subr.mxu0 0.0
        %1849 = vmatpush1.msra.mxu0 %v1394
        %1850 = vmatprep.subr.mxu0 0.0
        %1851 = vmatpush1.msra.mxu0 %v1393
        %1852 = vmatprep.subr.mxu0 0.0
        %1853 = vmatpush1.msra.mxu0 %v1392
        %1854 = vmatprep.subr.mxu0 0.0
        %1855 = vmatpush1.msra.mxu0 %v1391
        %1856 = vmatprep.subr.mxu0 0.0
        %1857 = vmatpush1.msra.mxu0 %v1390
        %1858 = vmatprep.subr.mxu0 0.0
        %1859 = vmatpush2.msra.mxu0 0.0
        %1860 = vmatprep.subr.mxu0 0.0
        %1861 = vmatpush2.msra.mxu0 0.0
        %1862 = vmatprep.subr.mxu0 0.0
        %1863 = vmatpush2.msra.mxu0 0.0
        %1864 = vmatprep.subr.mxu0 0.0
        %1865 = vmatpush2.msra.mxu0 0.0
        %1866 = vmatprep.subr.mxu0 0.0
        %1867 = vmatpush2.msra.mxu0 0.0
        %1868 = vmatprep.subr.mxu0 0.0
        %1869 = vmatpush2.msra.mxu0 0.0
        %1870 = vmatprep.subr.mxu0 0.0
        %1871 = vmatpush2.msra.mxu0 0.0
        %1872 = vmatprep.subr.mxu0 0.0
        %1873 = vmatpush2.msra.mxu0 0.0
        %1874 = vmatprep.subr.mxu0 0.0
        %1875 = vmatpush2.msra.mxu0 0.0
        %1876 = vmatprep.subr.mxu0 0.0
        %1877 = vmatpush2.msra.mxu0 0.0
        %1878 = vmatprep.subr.mxu0 0.0
        %1879 = vmatpush2.msra.mxu0 0.0
        %1880 = vmatprep.subr.mxu0 0.0
        %1881 = vmatpush2.msra.mxu0 0.0
        %1882 = vmatprep.subr.mxu0 0.0
        %1883 = vmatpush2.msra.mxu0 0.0
        %1884 = vmatprep.subr.mxu0 0.0
        %1885 = vmatpush2.msra.mxu0 0.0
        %1886 = vmatprep.subr.mxu0 0.0
        %1887 = vmatpush2.msra.mxu0 0.0
        %1888 = vmatprep.subr.mxu0 0.0
        %1889 = vmatpush2.msra.mxu0 0.0
        %1890 = vmatprep.mubr.f32.mxu0 0.0
        %1891 = vmatmul.mubr.f32.gmra.mxu0 %v1821
        %v1892 = vpop.f32.mrf.mxu0
        %v1893 = vadd.f32 %v1812, %v1892
        %v1894 = vpop.f32.mrf.mxu0
        %1895 = vmatprep.mubr.f32.mxu0 0.0
        %1896 = vmatmul.mubr.f32.gmra.mxu0 %v1824
        %v1897 = vpop.f32.mrf.mxu0
        %v1898 = vadd.f32 %v1817, %v1897
        %v1899 = vpop.f32.mrf.mxu0
        %1900 = vdwg.mxu0
        %v1901 = vld [vmem:[%s8] sm:$0x1]
        %v1903 = vlaneseq
        %v1904 = vshrl.u32 %v1903, 7
        %v1905 = vsub.s32 0, %v1904
        %v1906 = vrot.slane %v1901, %v1905
        %v1908 = vadd.f32 %v1893, %v1906
        %v1909 = vadd.f32 %v1898, %v1906
        %v1910 = vadd.f32 %v1908, %v638
        %v1911 = vadd.f32 %v1909, %v639
        %v1912 = vld [vmem:[%s9] sm:$0x1]
        %v1913 = vld [vmem:[%s10] sm:$0x1]
        %1914 = vadd.xlane.f32.xlu0 %v1910
        %v1915 = vpop.xlane.xlu0 %1914
        %1916 = vadd.xlane.f32.xlu0 %v1911
        %v1917 = vpop.xlane.xlu0 %1916
        %v1918 = vmul.f32 %v1915, 0.03125
        %v1919 = vmul.f32 %v1917, 0.03125
        %v1920 = vsub.f32 %v1910, %v1918
        %v1921 = vsub.f32 %v1911, %v1919
        %v1922 = vmul.f32 %v1920, %v1920
        %v1923 = vmul.f32 %v1921, %v1921
        %1924 = vadd.xlane.f32.xlu0 %v1922
        %v1925 = vpop.xlane.xlu0 %1924
        %1926 = vadd.xlane.f32.xlu0 %v1923
        %v1927 = vpop.xlane.xlu0 %1926
        %v1928 = vmul.f32 %v1918, %v1918
        %v1929 = vmul.f32 %v1919, %v1919
        %v1930 = vmul.f32 %v1928, 96.0
        %v1931 = vmul.f32 %v1929, 96.0
        %v1932 = vsub.f32 %v1925, %v1930
        %v1933 = vsub.f32 %v1927, %v1931
        %v1934 = vmax.f32 %v1932, 0.0
        %v1935 = vmax.f32 %v1933, 0.0
        %v1936 = vmul.f32 %v1934, 0.03125
        %v1937 = vmul.f32 %v1935, 0.03125
        %v1938 = vadd.f32 %v1936, 1e-12
        %v1939 = vadd.f32 %v1937, 1e-12
        %v1940 = vrsqrt.pop %v1938
        %v1941 = vrsqrt.pop %v1939
        %v1942 = vmul.f32 %v1920, %v1940
        %v1943 = vmul.f32 %v1921, %v1941
        %v1945 = vlaneseq
        %v1946 = vshrl.u32 %v1945, 7
        %v1947 = vsub.s32 0, %v1946
        %v1948 = vrot.slane %v1912, %v1947
        %v1950 = vmul.f32 %v1942, %v1948
        %v1951 = vmul.f32 %v1943, %v1948
        %v1953 = vlaneseq
        %v1954 = vshrl.u32 %v1953, 7
        %v1955 = vsub.s32 0, %v1954
        %v1956 = vrot.slane %v1913, %v1955
        %v1958 = vadd.f32 %v1950, %v1956
        %v1959 = vadd.f32 %v1951, %v1956
        %v1960 = vmul.f32 %v850, 0.7
        %v1961 = vmul.f32 %v851, 0.7
        %v1962 = vmul.f32 %v1958, 0.3
        %v1963 = vmul.f32 %v1959, 0.3
        %v1964 = vadd.f32 %v1960, %v1962
        %v1965 = vadd.f32 %v1961, %v1963
        %v1966 = vld [vmem:[#allocation11] sm:$0xff]
        %v1967 = vld [vmem:[#allocation11 + $0x8] sm:$0xff]
        %v1968 = vld [vmem:[#allocation11 + $0x10] sm:$0xff]
        %v1969 = vld [vmem:[#allocation11 + $0x18] sm:$0xff]
        %v1970 = vld [vmem:[#allocation11 + $0x20] sm:$0xff]
        %v1971 = vld [vmem:[#allocation11 + $0x28] sm:$0xff]
        %v1972 = vld [vmem:[#allocation11 + $0x30] sm:$0xff]
        %v1973 = vld [vmem:[#allocation11 + $0x38] sm:$0xff]
        %v1974 = vld [vmem:[#allocation11 + $0x40] sm:$0xff]
        %v1975 = vld [vmem:[#allocation11 + $0x48] sm:$0xff]
        %v1976 = vld [vmem:[#allocation11 + $0x50] sm:$0xff]
        %v1977 = vld [vmem:[#allocation11 + $0x58] sm:$0xff]
        %v1978 = vld [vmem:[#allocation11 + $0x60] sm:$0xff]
        %v1979 = vld [vmem:[#allocation11 + $0x68] sm:$0xff]
        %v1980 = vld [vmem:[#allocation11 + $0x70] sm:$0xff]
        %v1981 = vld [vmem:[#allocation11 + $0x78] sm:$0xff]
        %v1982 = vld [vmem:[%s12] sm:$0x1]
        %v1984 = vlaneseq
        %v1985 = vshrl.u32 %v1984, 7
        %v1986 = vsub.s32 0, %v1985
        %v1987 = vrot.slane %v1982, %v1986
        %1989 = vmatprep.subr.mxu0 0.0
        %1990 = vmatpush1.msra.mxu0 %v1981
        %1991 = vmatprep.subr.mxu0 0.0
        %1992 = vmatpush1.msra.mxu0 %v1980
        %1993 = vmatprep.subr.mxu0 0.0
        %1994 = vmatpush1.msra.mxu0 %v1979
        %1995 = vmatprep.subr.mxu0 0.0
        %1996 = vmatpush1.msra.mxu0 %v1978
        %1997 = vmatprep.subr.mxu0 0.0
        %1998 = vmatpush1.msra.mxu0 %v1977
        %1999 = vmatprep.subr.mxu0 0.0
        %2000 = vmatpush1.msra.mxu0 %v1976
        %2001 = vmatprep.subr.mxu0 0.0
        %2002 = vmatpush1.msra.mxu0 %v1975
        %2003 = vmatprep.subr.mxu0 0.0
        %2004 = vmatpush1.msra.mxu0 %v1974
        %2005 = vmatprep.subr.mxu0 0.0
        %2006 = vmatpush1.msra.mxu0 %v1973
        %2007 = vmatprep.subr.mxu0 0.0
        %2008 = vmatpush1.msra.mxu0 %v1972
        %2009 = vmatprep.subr.mxu0 0.0
        %2010 = vmatpush1.msra.mxu0 %v1971
        %2011 = vmatprep.subr.mxu0 0.0
        %2012 = vmatpush1.msra.mxu0 %v1970
        %2013 = vmatprep.subr.mxu0 0.0
        %2014 = vmatpush1.msra.mxu0 %v1969
        %2015 = vmatprep.subr.mxu0 0.0
        %2016 = vmatpush1.msra.mxu0 %v1968
        %2017 = vmatprep.subr.mxu0 0.0
        %2018 = vmatpush1.msra.mxu0 %v1967
        %2019 = vmatprep.subr.mxu0 0.0
        %2020 = vmatpush1.msra.mxu0 %v1966
        %2021 = vmatprep.subr.mxu0 0.0
        %2022 = vmatpush2.msra.mxu0 0.0
        %2023 = vmatprep.subr.mxu0 0.0
        %2024 = vmatpush2.msra.mxu0 0.0
        %2025 = vmatprep.subr.mxu0 0.0
        %2026 = vmatpush2.msra.mxu0 0.0
        %2027 = vmatprep.subr.mxu0 0.0
        %2028 = vmatpush2.msra.mxu0 0.0
        %2029 = vmatprep.subr.mxu0 0.0
        %2030 = vmatpush2.msra.mxu0 0.0
        %2031 = vmatprep.subr.mxu0 0.0
        %2032 = vmatpush2.msra.mxu0 0.0
        %2033 = vmatprep.subr.mxu0 0.0
        %2034 = vmatpush2.msra.mxu0 0.0
        %2035 = vmatprep.subr.mxu0 0.0
        %2036 = vmatpush2.msra.mxu0 0.0
        %2037 = vmatprep.subr.mxu0 0.0
        %2038 = vmatpush2.msra.mxu0 0.0
        %2039 = vmatprep.subr.mxu0 0.0
        %2040 = vmatpush2.msra.mxu0 0.0
        %2041 = vmatprep.subr.mxu0 0.0
        %2042 = vmatpush2.msra.mxu0 0.0
        %2043 = vmatprep.subr.mxu0 0.0
        %2044 = vmatpush2.msra.mxu0 0.0
        %2045 = vmatprep.subr.mxu0 0.0
        %2046 = vmatpush2.msra.mxu0 0.0
        %2047 = vmatprep.subr.mxu0 0.0
        %2048 = vmatpush2.msra.mxu0 0.0
        %2049 = vmatprep.subr.mxu0 0.0
        %2050 = vmatpush2.msra.mxu0 0.0
        %2051 = vmatprep.subr.mxu0 0.0
        %2052 = vmatpush2.msra.mxu0 0.0
        %2053 = vmatprep.mubr.f32.mxu0 0.0
        %2054 = vmatmul.mubr.f32.gmra.mxu0 %v1964
        %v2055 = vpop.f32.mrf.mxu0
        %v2056 = vadd.f32 %v1987, %v2055
        %v2057 = vpop.f32.mrf.mxu0
        %2058 = vmatprep.mubr.f32.mxu0 0.0
        %2059 = vmatmul.mubr.f32.gmra.mxu0 %v1965
        %v2060 = vpop.f32.mrf.mxu0
        %v2061 = vadd.f32 %v1987, %v2060
        %v2062 = vpop.f32.mrf.mxu0
        %2063 = vdwg.mxu0
        %v2064 = vmul.f32 %v2056, 0.5
        %v2065 = vmul.f32 %v2061, 0.5
        %v2066 = vrcp.pop 1.4142135
        %v2067 = vmul.f32 %v2056, %v2066
        %v2068 = vmul.f32 %v2061, %v2066
        %v2069 = verf.f32.pop %v2067
        %v2070 = verf.f32.pop %v2068
        %v2071 = vadd.f32 %v2069, 1.0
        %v2072 = vadd.f32 %v2070, 1.0
        %v2073 = vmul.f32 %v2064, %v2071
        %v2074 = vmul.f32 %v2065, %v2072
        %v2075 = vld [vmem:[#allocation12] sm:$0xff]
        %v2076 = vld [vmem:[#allocation12 + $0x8] sm:$0xff]
        %v2077 = vld [vmem:[#allocation12 + $0x10] sm:$0xff]
        %v2078 = vld [vmem:[#allocation12 + $0x18] sm:$0xff]
        %v2079 = vld [vmem:[#allocation12 + $0x20] sm:$0xff]
        %v2080 = vld [vmem:[#allocation12 + $0x28] sm:$0xff]
        %v2081 = vld [vmem:[#allocation12 + $0x30] sm:$0xff]
        %v2082 = vld [vmem:[#allocation12 + $0x38] sm:$0xff]
        %v2083 = vld [vmem:[#allocation12 + $0x40] sm:$0xff]
        %v2084 = vld [vmem:[#allocation12 + $0x48] sm:$0xff]
        %v2085 = vld [vmem:[#allocation12 + $0x50] sm:$0xff]
        %v2086 = vld [vmem:[#allocation12 + $0x58] sm:$0xff]
        %v2087 = vld [vmem:[#allocation12 + $0x60] sm:$0xff]
        %v2088 = vld [vmem:[#allocation12 + $0x68] sm:$0xff]
        %v2089 = vld [vmem:[#allocation12 + $0x70] sm:$0xff]
        %v2090 = vld [vmem:[#allocation12 + $0x78] sm:$0xff]
        %v2091 = vld [vmem:[%s14] sm:$0x1]
        %v2093 = vlaneseq
        %v2094 = vshrl.u32 %v2093, 7
        %v2095 = vsub.s32 0, %v2094
        %v2096 = vrot.slane %v2091, %v2095
        %2098 = vmatprep.subr.mxu0 0.0
        %2099 = vmatpush1.msra.mxu0 %v2090
        %2100 = vmatprep.subr.mxu0 0.0
        %2101 = vmatpush1.msra.mxu0 %v2089
        %2102 = vmatprep.subr.mxu0 0.0
        %2103 = vmatpush1.msra.mxu0 %v2088
        %2104 = vmatprep.subr.mxu0 0.0
        %2105 = vmatpush1.msra.mxu0 %v2087
        %2106 = vmatprep.subr.mxu0 0.0
        %2107 = vmatpush1.msra.mxu0 %v2086
        %2108 = vmatprep.subr.mxu0 0.0
        %2109 = vmatpush1.msra.mxu0 %v2085
        %2110 = vmatprep.subr.mxu0 0.0
        %2111 = vmatpush1.msra.mxu0 %v2084
        %2112 = vmatprep.subr.mxu0 0.0
        %2113 = vmatpush1.msra.mxu0 %v2083
        %2114 = vmatprep.subr.mxu0 0.0
        %2115 = vmatpush1.msra.mxu0 %v2082
        %2116 = vmatprep.subr.mxu0 0.0
        %2117 = vmatpush1.msra.mxu0 %v2081
        %2118 = vmatprep.subr.mxu0 0.0
        %2119 = vmatpush1.msra.mxu0 %v2080
        %2120 = vmatprep.subr.mxu0 0.0
        %2121 = vmatpush1.msra.mxu0 %v2079
        %2122 = vmatprep.subr.mxu0 0.0
        %2123 = vmatpush1.msra.mxu0 %v2078
        %2124 = vmatprep.subr.mxu0 0.0
        %2125 = vmatpush1.msra.mxu0 %v2077
        %2126 = vmatprep.subr.mxu0 0.0
        %2127 = vmatpush1.msra.mxu0 %v2076
        %2128 = vmatprep.subr.mxu0 0.0
        %2129 = vmatpush1.msra.mxu0 %v2075
        %2130 = vmatprep.subr.mxu0 0.0
        %2131 = vmatpush2.msra.mxu0 0.0
        %2132 = vmatprep.subr.mxu0 0.0
        %2133 = vmatpush2.msra.mxu0 0.0
        %2134 = vmatprep.subr.mxu0 0.0
        %2135 = vmatpush2.msra.mxu0 0.0
        %2136 = vmatprep.subr.mxu0 0.0
        %2137 = vmatpush2.msra.mxu0 0.0
        %2138 = vmatprep.subr.mxu0 0.0
        %2139 = vmatpush2.msra.mxu0 0.0
        %2140 = vmatprep.subr.mxu0 0.0
        %2141 = vmatpush2.msra.mxu0 0.0
        %2142 = vmatprep.subr.mxu0 0.0
        %2143 = vmatpush2.msra.mxu0 0.0
        %2144 = vmatprep.subr.mxu0 0.0
        %2145 = vmatpush2.msra.mxu0 0.0
        %2146 = vmatprep.subr.mxu0 0.0
        %2147 = vmatpush2.msra.mxu0 0.0
        %2148 = vmatprep.subr.mxu0 0.0
        %2149 = vmatpush2.msra.mxu0 0.0
        %2150 = vmatprep.subr.mxu0 0.0
        %2151 = vmatpush2.msra.mxu0 0.0
        %2152 = vmatprep.subr.mxu0 0.0
        %2153 = vmatpush2.msra.mxu0 0.0
        %2154 = vmatprep.subr.mxu0 0.0
        %2155 = vmatpush2.msra.mxu0 0.0
        %2156 = vmatprep.subr.mxu0 0.0
        %2157 = vmatpush2.msra.mxu0 0.0
        %2158 = vmatprep.subr.mxu0 0.0
        %2159 = vmatpush2.msra.mxu0 0.0
        %2160 = vmatprep.subr.mxu0 0.0
        %2161 = vmatpush2.msra.mxu0 0.0
        %2162 = vmatprep.mubr.f32.mxu0 0.0
        %2163 = vmatmul.mubr.f32.gmra.mxu0 %v2073
        %v2164 = vpop.f32.mrf.mxu0
        %v2165 = vadd.f32 %v2096, %v2164
        %v2166 = vpop.f32.mrf.mxu0
        %2167 = vmatprep.mubr.f32.mxu0 0.0
        %2168 = vmatmul.mubr.f32.gmra.mxu0 %v2074
        %v2169 = vpop.f32.mrf.mxu0
        %v2170 = vadd.f32 %v2096, %v2169
        %v2171 = vpop.f32.mrf.mxu0
        %2172 = vdwg.mxu0
        %v2173 = vadd.f32 %v2165, %v1964
        %v2174 = vadd.f32 %v2170, %v1965
        %v2175 = vld [vmem:[%s15] sm:$0x1]
        %v2176 = vld [vmem:[%s16] sm:$0x1]
        %2177 = vadd.xlane.f32.xlu0 %v2173
        %v2178 = vpop.xlane.xlu0 %2177
        %2179 = vadd.xlane.f32.xlu0 %v2174
        %v2180 = vpop.xlane.xlu0 %2179
        %v2181 = vmul.f32 %v2178, 0.03125
        %v2182 = vmul.f32 %v2180, 0.03125
        %v2183 = vsub.f32 %v2173, %v2181
        %v2184 = vsub.f32 %v2174, %v2182
        %v2185 = vmul.f32 %v2183, %v2183
        %v2186 = vmul.f32 %v2184, %v2184
        %2187 = vadd.xlane.f32.xlu0 %v2185
        %v2188 = vpop.xlane.xlu0 %2187
        %2189 = vadd.xlane.f32.xlu0 %v2186
        %v2190 = vpop.xlane.xlu0 %2189
        %v2191 = vmul.f32 %v2181, %v2181
        %v2192 = vmul.f32 %v2182, %v2182
        %v2193 = vmul.f32 %v2191, 96.0
        %v2194 = vmul.f32 %v2192, 96.0
        %v2195 = vsub.f32 %v2188, %v2193
        %v2196 = vsub.f32 %v2190, %v2194
        %v2197 = vmax.f32 %v2195, 0.0
        %v2198 = vmax.f32 %v2196, 0.0
        %v2199 = vmul.f32 %v2197, 0.03125
        %v2200 = vmul.f32 %v2198, 0.03125
        %v2201 = vadd.f32 %v2199, 1e-12
        %v2202 = vadd.f32 %v2200, 1e-12
        %v2203 = vrsqrt.pop %v2201
        %v2204 = vrsqrt.pop %v2202
        %v2205 = vmul.f32 %v2183, %v2203
        %v2206 = vmul.f32 %v2184, %v2204
        %v2208 = vlaneseq
        %v2209 = vshrl.u32 %v2208, 7
        %v2210 = vsub.s32 0, %v2209
        %v2211 = vrot.slane %v2175, %v2210
        %v2213 = vmul.f32 %v2205, %v2211
        %v2214 = vmul.f32 %v2206, %v2211
        %v2216 = vlaneseq
        %v2217 = vshrl.u32 %v2216, 7
        %v2218 = vsub.s32 0, %v2217
        %v2219 = vrot.slane %v2176, %v2218
        %v2221 = vadd.f32 %v2213, %v2219
        %v2222 = vadd.f32 %v2214, %v2219
        %2223 = vst [vmem:[#allocation2] sm:$0xff] %v2221
        %2224 = vst [vmem:[#allocation2 + $0x8] sm:$0xff] %v2222
        %p2225 = scmp.eq.s32.totalorder %s38, 1
        // Predicated region
        $region117: #{tpu_custom_call.1} parent=87 // pred_check
          %p2226 = pneg %p2225
        $region118: #{tpu_custom_call.1} parent=87 // pred_check_branch
          %2228 = sbr.rel (%p2226) target = $region120
        $region119: #{tpu_custom_call.1} parent=87 // pred_region
          %2229 = vst [vmem:[#allocation14] sm:$0xff] %v2221
          %2230 = vst [vmem:[#allocation14 + $0x8] sm:$0xff] %v2222
        $region120: #{tpu_custom_call.1} parent=87 // pred_fallthru
          _
        // Predicated region
        $region121: #{tpu_custom_call.1} parent=87 // pred_check
          %p2231 = pneg %p425
        $region122: #{tpu_custom_call.1} parent=87 // pred_check_branch
          %2233 = sbr.rel (%p2231) target = $region124
        $region123: #{tpu_custom_call.1} parent=87 // pred_region
          %s2234 = smul.u32 2, %s37
          %s2236 = ssub.s32 256, 256
          %2237 = vsyncadd [#allocation5], %s2236
          %s2238 = smul.addr %s2234, 128
          %s2239 = scalar_lea.hbm %s17, %s2238
          %s2240 = sshll.u32 [#allocation14], 4
          %s2241 = int_to_ptr.vmem [resolvable:$true] %s2240
          %2246 = dma.vmem_to_hbm [thread:$0]  %s2241, 256, %s2239, [#allocation5], 128, 128, 8
        $region124: #{tpu_custom_call.1} parent=87 // pred_fallthru
          _
        // Predicated region
        $region125: #{tpu_custom_call.1} parent=87 // pred_check
          %p2247 = pneg %p425
        $region126: #{tpu_custom_call.1} parent=87 // pred_check_branch
          %2249 = sbr.rel (%p2247) target = $region128
        $region127: #{tpu_custom_call.1} parent=87 // pred_region
          %2250 = dma.done [#allocation5], 256
        $region128: #{tpu_custom_call.1} parent=87 // pred_fallthru
          _
      $region88: #{tpu_custom_call.1} parent=5 // pred_fallthru
        _
      %p2251 = scmp.le.s32.totalorder 2, %s28
      // Predicated region
      $region129: #{tpu_custom_call.1} parent=5 // pred_check
        %p2252 = pneg %p2251
      $region130: #{tpu_custom_call.1} parent=5 // pred_check_branch
        %2254 = sbr.rel (%p2252) target = $region132
      $region131: #{tpu_custom_call.1} parent=5 // pred_region
        %s2255 = ssub.s32 %s28, 2
      $region132: #{tpu_custom_call.1} parent=5 // pred_fallthru
        _
    $region6: #{tpu_custom_call.1} parent=1 // loop_footer
      %s32 = sadd.s32 1, %s28
    $region7: #{tpu_custom_call.1} parent=1 // loop_footer_branch
      %27 = sbr.rel target = $region3
    $region8: #{tpu_custom_call.1} parent=1 // loop_exit
      _
    %2256 = vsyncpa [#allocation4], 1
    %s2257 = scalar_lea.sflag [#allocation4], 1
    %2258 = vsyncpa %s2257, 1
    %2259 = vsyncpa [#allocation7], 1
    %2260 = vsyncpa [#allocation10], 1
    %2261 = vsyncpa [#allocation13], 1
    %2262 = vsyncpa [#allocation5], 1
    %s2263 = scalar_lea.sflag [#allocation5], 1
    %2264 = vsyncpa %s2263, 1

// kernel: tpu_custom_call.1
$region0: #{tpu_custom_call.1}
  #allocation0 [shape = 'u32[]', space=smem, size = 0x4, offset = 0x4, fixed_abs, tag = 'smem constant byte address 0x4 - core index']
  #allocation1 [shape = 'u32[144,128]{1,0:T(1,128)}', space=vmem, size = 0x12000, scoped, tag = 'internal scratch']
  #allocation2 [shape = 'f32[2,8,128]{2,1,0:T(8,128)}', space=vmem, size = 0x2000, scoped, tag = 'scratch operand']
  %s0 = inlined_call_operand.hbm [shape: f32[2,8,128], index: 0, kind: input, shape index: {}]
  %s1 = inlined_call_operand.hbm [shape: f32[2,8,8], index: 1, kind: input, shape index: {}]
  %s2 = inlined_call_operand.vmem [shape: f32[1,128], index: 2, kind: input, shape index: {}]
  %s3 = inlined_call_operand.vmem [shape: f32[1,128], index: 3, kind: input, shape index: {}]
  %s4 = inlined_call_operand.vmem [shape: f32[1,128], index: 4, kind: input, shape index: {}]
  %s5 = inlined_call_operand.hbm [shape: f32[128,384], index: 5, kind: input, shape index: {}]
  %s6 = inlined_call_operand.vmem [shape: f32[1,384], index: 6, kind: input, shape index: {}]
  %s7 = inlined_call_operand.hbm [shape: f32[2,64,128], index: 7, kind: input, shape index: {}]
  %s8 = inlined_call_operand.vmem [shape: f32[1,128], index: 8, kind: input, shape index: {}]
  %s9 = inlined_call_operand.vmem [shape: f32[1,128], index: 9, kind: input, shape index: {}]
  %s10 = inlined_call_operand.vmem [shape: f32[1,128], index: 10, kind: input, shape index: {}]
  %s11 = inlined_call_operand.hbm [shape: f32[128,128], index: 11, kind: input, shape index: {}]
  %s12 = inlined_call_operand.vmem [shape: f32[1,128], index: 12, kind: input, shape index: {}]
  %s13 = inlined_call_operand.hbm [shape: f32[128,128], index: 13, kind: input, shape index: {}]
  %s14 = inlined_call_operand.vmem [shape: f32[1,128], index: 14, kind: input, shape index: {}]
  %s15 = inlined_call_operand.vmem [shape: f32[1,128], index: 15, kind: input, shape index: {}]
  %s16 = inlined_call_operand.vmem [shape: f32[1,128], index: 16, kind: input, shape index: {}]
  %s17 = inlined_call_operand.hbm [shape: f32[2,8,128], index: 17, kind: output, shape index: {}]
  %s18 = sld [smem:[#allocation0]]
  $region133: #{tpu_custom_call.1} parent=0
    _
  %s20 = ssub.s32 1, %s18
  %s21 = scalar_select 0, %s20, %s18
  $region1: #{tpu_custom_call.1} parent=0
    #allocation3 [shape = 'u8[8192]{0}', space=vmem, size = 0x2000, scoped, tag = 'input window, operand 0, single buffered']
    #allocation4 [shape = 's32[2]{0}', space=sflag, size = 0x8, scoped, tag = 'scoped memory for tpu_custom_call.1']
    #allocation5 [shape = 's32[2]{0}', space=sflag, size = 0x8, scoped, tag = 'scoped memory for tpu_custom_call.1']
    #allocation6 [shape = 'u8[8192]{0}', space=vmem, size = 0x2000, scoped, tag = 'input window, operand 1, single buffered']
    #allocation7 [shape = 's32[1]{0}', space=sflag, size = 0x4, scoped, tag = 'scoped memory for tpu_custom_call.1']
    #allocation8 [shape = 'u8[196608]{0}', space=vmem, size = 0x30000, scoped, tag = 'input window, operand 5, single buffered']
    #allocation9 [shape = 'u8[65536]{0}', space=vmem, size = 0x10000, scoped, tag = 'input window, operand 7, single buffered']
    #allocation10 [shape = 's32[1]{0}', space=sflag, size = 0x4, scoped, tag = 'scoped memory for tpu_custom_call.1']
    #allocation11 [shape = 'u8[65536]{0}', space=vmem, size = 0x10000, scoped, tag = 'input window, operand 11, single buffered']
    #allocation12 [shape = 'u8[65536]{0}', space=vmem, size = 0x10000, scoped, tag = 'input window, operand 13, single buffered']
    #allocation13 [shape = 's32[1]{0}', space=sflag, size = 0x4, scoped, tag = 'scoped memory for tpu_custom_call.1']
    #allocation14 [shape = 'u8[8192]{0}', space=vmem, size = 0x2000, scoped, tag = 'output window, operand 0, single buffered']
    %22 = vsyncpa [#allocation4], 0
    %23 = vsyncpa [#allocation7], 0
    %24 = vsyncpa [#allocation10], 0
    %25 = vsyncpa [#allocation13], 0
    %26 = vsyncpa [#allocation5], 0
    loop: start=0, step=1, limit=4
    $region2: #{tpu_custom_call.1} parent=1 // loop_pre_header
      _
    $region3: #{tpu_custom_call.1} parent=1 // loop_header
      %s28 = sphi 0, %s32
      %p29 = scmp.ge.s32.totalorder %s28, 4
      %s35 = sphi 0, %s47
      %s36 = sphi 0, %s43
      %s37 = sphi 0, %s35
      %s38 = sphi 0, %s36
      %s39 = sphi 0, %s37
      %s40 = sphi 0, %s38
      %s50 = sphi 0, %s52
      %s53 = sphi 0, %s50
      %s54 = sphi 0, %s53
      %s70 = sphi 0, %s54
      %s74 = sphi 0, %s74
      %s76 = sphi 0, %s74
      %s77 = sphi 0, %s76
      %s91 = sphi 0, %s77
      %s95 = sphi 0, %s95
      %s97 = sphi 0, %s95
      %s98 = sphi 0, %s97
      %s112 = sphi 0, %s98
      %s116 = sphi 0, %s116
      %s118 = sphi 0, %s116
      %s119 = sphi 0, %s118
      %s133 = sphi 0, %s119
      %s137 = sphi 0, %s137
      %s139 = sphi 0, %s137
      %s140 = sphi 0, %s139
      %s154 = sphi 0, %s140
      %s158 = sphi 0, %s158
      %s160 = sphi 0, %s158
      %s161 = sphi 0, %s160
      %s175 = sphi 0, %s161
      %s179 = sphi 0, %s179
      %s181 = sphi 0, %s179
      %s182 = sphi 0, %s181
      %s196 = sphi 0, %s182
      %s200 = sphi 0, %s200
      %s202 = sphi 0, %s200
      %s203 = sphi 0, %s202
      %s217 = sphi 0, %s203
      %s221 = sphi 0, %s221
      %s223 = sphi 0, %s221
      %s224 = sphi 0, %s223
      %s238 = sphi 0, %s224
      %s242 = sphi 0, %s242
      %s244 = sphi 0, %s242
      %s245 = sphi 0, %s244
      %s259 = sphi 0, %s245
      %s263 = sphi 0, %s263
      %s265 = sphi 0, %s263
      %s266 = sphi 0, %s265
      %s280 = sphi 0, %s266
      %s284 = sphi 0, %s284
      %s286 = sphi 0, %s284
      %s287 = sphi 0, %s286
      %s301 = sphi 0, %s287
      %s305 = sphi 0, %s305
      %s307 = sphi 0, %s305
      %s308 = sphi 0, %s307
      %s322 = sphi 0, %s308
      %s326 = sphi 0, %s326
      %s328 = sphi 0, %s326
      %s329 = sphi 0, %s328
      %s343 = sphi 0, %s329
      %s347 = sphi 0, %s347
      %s349 = sphi 0, %s347
      %s350 = sphi 0, %s349
      %s364 = sphi 0, %s350
      %s368 = sphi 0, %s368
      %s370 = sphi 0, %s368
      %s371 = sphi 0, %s370
      %s385 = sphi 0, %s371
      %s389 = sphi 0, %s389
      %s391 = sphi 0, %s389
      %s392 = sphi 0, %s391
      %s406 = sphi 0, %s392
      %s412 = sphi 0, %s414
      %s415 = sphi 0, %s412
      %s416 = sphi 0, %s415
      %s432 = sphi 0, %s416
    $region4: #{tpu_custom_call.1} parent=1 // loop_header_branch
      %31 = sbr.rel (%p29) target = $region8
    $region5: #{tpu_custom_call.1} parent=1 // loop_body
      %s33 = ssub.s32 %s28, 1
      %s34 = ssub.s32 %s28, 2
      %s41 = sadd.s32 1, %s36
      %p42 = scmp.ge.s32.totalorder %s41, 2
      %s43 = scalar_select %p42, 0, %s41
      %s44 = sadd.s32 1, %s35
      %s45 = scalar_select %p42, %s44, %s35
      %p46 = scmp.ge.s32.totalorder %s45, 1
      %s47 = scalar_select %p46, 0, %s45
      %s48 = ssub.s32 %s35, %s47
      %p49 = scmp.eq.s32.totalorder %s48, 0
      %s51 = sadd.s32 %s50, 1
      %s52 = scalar_select %p49, %s50, %s51
      %p55 = pneg %p49
      %p56 = scmp.eq.s32.totalorder %s28, 1
      %p57 = por %p55, %p56
      %p58 = scmp.ne.s32.totalorder %s50, %s53
      %p59 = scmp.eq.s32.totalorder %s28, 0
      %p60 = por %p58, %p59
      %p61 = scmp.ne.s32.totalorder %s50, %s53
      %p62 = scmp.eq.s32.totalorder %s33, 1
      %p63 = por %p61, %p62
      %p64 = scmp.ne.s32.totalorder %s53, %s54
      %p65 = scmp.eq.s32.totalorder %s33, 0
      %p66 = por %p64, %p65
      %p67 = scmp.ne.s32.totalorder %s53, %s54
      %p68 = scmp.eq.s32.totalorder %s34, 1
      %p69 = por %p67, %p68
      %p71 = scmp.ne.s32.totalorder %s54, %s70
      %p72 = scmp.eq.s32.totalorder %s34, 0
      %p73 = por %p71, %p72
      %s75 = sadd.s32 %s74, 1
      %p78 = scmp.eq.s32.totalorder %s28, 1
      %p79 = scmp.ne.s32.totalorder %s74, %s76
      %p80 = scmp.eq.s32.totalorder %s28, 0
      %p81 = por %p79, %p80
      %p82 = scmp.ne.s32.totalorder %s74, %s76
      %p83 = scmp.eq.s32.totalorder %s33, 1
      %p84 = por %p82, %p83
      %p85 = scmp.ne.s32.totalorder %s76, %s77
      %p86 = scmp.eq.s32.totalorder %s33, 0
      %p87 = por %p85, %p86
      %p88 = scmp.ne.s32.totalorder %s76, %s77
      %p89 = scmp.eq.s32.totalorder %s34, 1
      %p90 = por %p88, %p89
      %p92 = scmp.ne.s32.totalorder %s77, %s91
      %p93 = scmp.eq.s32.totalorder %s34, 0
      %p94 = por %p92, %p93
      %s96 = sadd.s32 %s95, 1
      %p99 = scmp.eq.s32.totalorder %s28, 1
      %p100 = scmp.ne.s32.totalorder %s95, %s97
      %p101 = scmp.eq.s32.totalorder %s28, 0
      %p102 = por %p100, %p101
      %p103 = scmp.ne.s32.totalorder %s95, %s97
      %p104 = scmp.eq.s32.totalorder %s33, 1
      %p105 = por %p103, %p104
      %p106 = scmp.ne.s32.totalorder %s97, %s98
      %p107 = scmp.eq.s32.totalorder %s33, 0
      %p108 = por %p106, %p107
      %p109 = scmp.ne.s32.totalorder %s97, %s98
      %p110 = scmp.eq.s32.totalorder %s34, 1
      %p111 = por %p109, %p110
      %p113 = scmp.ne.s32.totalorder %s98, %s112
      %p114 = scmp.eq.s32.totalorder %s34, 0
      %p115 = por %p113, %p114
      %s117 = sadd.s32 %s116, 1
      %p120 = scmp.eq.s32.totalorder %s28, 1
      %p121 = scmp.ne.s32.totalorder %s116, %s118
      %p122 = scmp.eq.s32.totalorder %s28, 0
      %p123 = por %p121, %p122
      %p124 = scmp.ne.s32.totalorder %s116, %s118
      %p125 = scmp.eq.s32.totalorder %s33, 1
      %p126 = por %p124, %p125
      %p127 = scmp.ne.s32.totalorder %s118, %s119
      %p128 = scmp.eq.s32.totalorder %s33, 0
      %p129 = por %p127, %p128
      %p130 = scmp.ne.s32.totalorder %s118, %s119
      %p131 = scmp.eq.s32.totalorder %s34, 1
      %p132 = por %p130, %p131
      %p134 = scmp.ne.s32.totalorder %s119, %s133
      %p135 = scmp.eq.s32.totalorder %s34, 0
      %p136 = por %p134, %p135
      %s138 = sadd.s32 %s137, 1
      %p141 = scmp.eq.s32.totalorder %s28, 1
      %p142 = scmp.ne.s32.totalorder %s137, %s139
      %p143 = scmp.eq.s32.totalorder %s28, 0
      %p144 = por %p142, %p143
      %p145 = scmp.ne.s32.totalorder %s137, %s139
      %p146 = scmp.eq.s32.totalorder %s33, 1
      %p147 = por %p145, %p146
      %p148 = scmp.ne.s32.totalorder %s139, %s140
      %p149 = scmp.eq.s32.totalorder %s33, 0
      %p150 = por %p148, %p149
      %p151 = scmp.ne.s32.totalorder %s139, %s140
      %p152 = scmp.eq.s32.totalorder %s34, 1
      %p153 = por %p151, %p152
      %p155 = scmp.ne.s32.totalorder %s140, %s154
      %p156 = scmp.eq.s32.totalorder %s34, 0
      %p157 = por %p155, %p156
      %s159 = sadd.s32 %s158, 1
      %p162 = scmp.eq.s32.totalorder %s28, 1
      %p163 = scmp.ne.s32.totalorder %s158, %s160
      %p164 = scmp.eq.s32.totalorder %s28, 0
      %p165 = por %p163, %p164
      %p166 = scmp.ne.s32.totalorder %s158, %s160
      %p167 = scmp.eq.s32.totalorder %s33, 1
      %p168 = por %p166, %p167
      %p169 = scmp.ne.s32.totalorder %s160, %s161
      %p170 = scmp.eq.s32.totalorder %s33, 0
      %p171 = por %p169, %p170
      %p172 = scmp.ne.s32.totalorder %s160, %s161
      %p173 = scmp.eq.s32.totalorder %s34, 1
      %p174 = por %p172, %p173
      %p176 = scmp.ne.s32.totalorder %s161, %s175
      %p177 = scmp.eq.s32.totalorder %s34, 0
      %p178 = por %p176, %p177
      %s180 = sadd.s32 %s179, 1
      %p183 = scmp.eq.s32.totalorder %s28, 1
      %p184 = scmp.ne.s32.totalorder %s179, %s181
      %p185 = scmp.eq.s32.totalorder %s28, 0
      %p186 = por %p184, %p185
      %p187 = scmp.ne.s32.totalorder %s179, %s181
      %p188 = scmp.eq.s32.totalorder %s33, 1
      %p189 = por %p187, %p188
      %p190 = scmp.ne.s32.totalorder %s181, %s182
      %p191 = scmp.eq.s32.totalorder %s33, 0
      %p192 = por %p190, %p191
      %p193 = scmp.ne.s32.totalorder %s181, %s182
      %p194 = scmp.eq.s32.totalorder %s34, 1
      %p195 = por %p193, %p194
      %p197 = scmp.ne.s32.totalorder %s182, %s196
      %p198 = scmp.eq.s32.totalorder %s34, 0
      %p199 = por %p197, %p198
      %s201 = sadd.s32 %s200, 1
      %p204 = scmp.eq.s32.totalorder %s28, 1
      %p205 = scmp.ne.s32.totalorder %s200, %s202
      %p206 = scmp.eq.s32.totalorder %s28, 0
      %p207 = por %p205, %p206
      %p208 = scmp.ne.s32.totalorder %s200, %s202
      %p209 = scmp.eq.s32.totalorder %s33, 1
      %p210 = por %p208, %p209
      %p211 = scmp.ne.s32.totalorder %s202, %s203
      %p212 = scmp.eq.s32.totalorder %s33, 0
      %p213 = por %p211, %p212
      %p214 = scmp.ne.s32.totalorder %s202, %s203
      %p215 = scmp.eq.s32.totalorder %s34, 1
      %p216 = por %p214, %p215
      %p218 = scmp.ne.s32.totalorder %s203, %s217
      %p219 = scmp.eq.s32.totalorder %s34, 0
      %p220 = por %p218, %p219
      %s222 = sadd.s32 %s221, 1
      %p225 = scmp.eq.s32.totalorder %s28, 1
      %p226 = scmp.ne.s32.totalorder %s221, %s223
      %p227 = scmp.eq.s32.totalorder %s28, 0
      %p228 = por %p226, %p227
      %p229 = scmp.ne.s32.totalorder %s221, %s223
      %p230 = scmp.eq.s32.totalorder %s33, 1
      %p231 = por %p229, %p230
      %p232 = scmp.ne.s32.totalorder %s223, %s224
      %p233 = scmp.eq.s32.totalorder %s33, 0
      %p234 = por %p232, %p233
      %p235 = scmp.ne.s32.totalorder %s223, %s224
      %p236 = scmp.eq.s32.totalorder %s34, 1
      %p237 = por %p235, %p236
      %p239 = scmp.ne.s32.totalorder %s224, %s238
      %p240 = scmp.eq.s32.totalorder %s34, 0
      %p241 = por %p239, %p240
      %s243 = sadd.s32 %s242, 1
      %p246 = scmp.eq.s32.totalorder %s28, 1
      %p247 = scmp.ne.s32.totalorder %s242, %s244
      %p248 = scmp.eq.s32.totalorder %s28, 0
      %p249 = por %p247, %p248
      %p250 = scmp.ne.s32.totalorder %s242, %s244
      %p251 = scmp.eq.s32.totalorder %s33, 1
      %p252 = por %p250, %p251
      %p253 = scmp.ne.s32.totalorder %s244, %s245
      %p254 = scmp.eq.s32.totalorder %s33, 0
      %p255 = por %p253, %p254
      %p256 = scmp.ne.s32.totalorder %s244, %s245
      %p257 = scmp.eq.s32.totalorder %s34, 1
      %p258 = por %p256, %p257
      %p260 = scmp.ne.s32.totalorder %s245, %s259
      %p261 = scmp.eq.s32.totalorder %s34, 0
      %p262 = por %p260, %p261
      %s264 = sadd.s32 %s263, 1
      %p267 = scmp.eq.s32.totalorder %s28, 1
      %p268 = scmp.ne.s32.totalorder %s263, %s265
      %p269 = scmp.eq.s32.totalorder %s28, 0
      %p270 = por %p268, %p269
      %p271 = scmp.ne.s32.totalorder %s263, %s265
      %p272 = scmp.eq.s32.totalorder %s33, 1
      %p273 = por %p271, %p272
      %p274 = scmp.ne.s32.totalorder %s265, %s266
      %p275 = scmp.eq.s32.totalorder %s33, 0
      %p276 = por %p274, %p275
      %p277 = scmp.ne.s32.totalorder %s265, %s266
      %p278 = scmp.eq.s32.totalorder %s34, 1
      %p279 = por %p277, %p278
      %p281 = scmp.ne.s32.totalorder %s266, %s280
      %p282 = scmp.eq.s32.totalorder %s34, 0
      %p283 = por %p281, %p282
      %s285 = sadd.s32 %s284, 1
      %p288 = scmp.eq.s32.totalorder %s28, 1
      %p289 = scmp.ne.s32.totalorder %s284, %s286
      %p290 = scmp.eq.s32.totalorder %s28, 0
      %p291 = por %p289, %p290
      %p292 = scmp.ne.s32.totalorder %s284, %s286
      %p293 = scmp.eq.s32.totalorder %s33, 1
      %p294 = por %p292, %p293
      %p295 = scmp.ne.s32.totalorder %s286, %s287
      %p296 = scmp.eq.s32.totalorder %s33, 0
      %p297 = por %p295, %p296
      %p298 = scmp.ne.s32.totalorder %s286, %s287
      %p299 = scmp.eq.s32.totalorder %s34, 1
      %p300 = por %p298, %p299
      %p302 = scmp.ne.s32.totalorder %s287, %s301
      %p303 = scmp.eq.s32.totalorder %s34, 0
      %p304 = por %p302, %p303
      %s306 = sadd.s32 %s305, 1
      %p309 = scmp.eq.s32.totalorder %s28, 1
      %p310 = scmp.ne.s32.totalorder %s305, %s307
      %p311 = scmp.eq.s32.totalorder %s28, 0
      %p312 = por %p310, %p311
      %p313 = scmp.ne.s32.totalorder %s305, %s307
      %p314 = scmp.eq.s32.totalorder %s33, 1
      %p315 = por %p313, %p314
      %p316 = scmp.ne.s32.totalorder %s307, %s308
      %p317 = scmp.eq.s32.totalorder %s33, 0
      %p318 = por %p316, %p317
      %p319 = scmp.ne.s32.totalorder %s307, %s308
      %p320 = scmp.eq.s32.totalorder %s34, 1
      %p321 = por %p319, %p320
      %p323 = scmp.ne.s32.totalorder %s308, %s322
      %p324 = scmp.eq.s32.totalorder %s34, 0
      %p325 = por %p323, %p324
      %s327 = sadd.s32 %s326, 1
      %p330 = scmp.eq.s32.totalorder %s28, 1
      %p331 = scmp.ne.s32.totalorder %s326, %s328
      %p332 = scmp.eq.s32.totalorder %s28, 0
      %p333 = por %p331, %p332
      %p334 = scmp.ne.s32.totalorder %s326, %s328
      %p335 = scmp.eq.s32.totalorder %s33, 1
      %p336 = por %p334, %p335
      %p337 = scmp.ne.s32.totalorder %s328, %s329
      %p338 = scmp.eq.s32.totalorder %s33, 0
      %p339 = por %p337, %p338
      %p340 = scmp.ne.s32.totalorder %s328, %s329
      %p341 = scmp.eq.s32.totalorder %s34, 1
      %p342 = por %p340, %p341
      %p344 = scmp.ne.s32.totalorder %s329, %s343
      %p345 = scmp.eq.s32.totalorder %s34, 0
      %p346 = por %p344, %p345
      %s348 = sadd.s32 %s347, 1
      %p351 = scmp.eq.s32.totalorder %s28, 1
      %p352 = scmp.ne.s32.totalorder %s347, %s349
      %p353 = scmp.eq.s32.totalorder %s28, 0
      %p354 = por %p352, %p353
      %p355 = scmp.ne.s32.totalorder %s347, %s349
      %p356 = scmp.eq.s32.totalorder %s33, 1
      %p357 = por %p355, %p356
      %p358 = scmp.ne.s32.totalorder %s349, %s350
      %p359 = scmp.eq.s32.totalorder %s33, 0
      %p360 = por %p358, %p359
      %p361 = scmp.ne.s32.totalorder %s349, %s350
      %p362 = scmp.eq.s32.totalorder %s34, 1
      %p363 = por %p361, %p362
      %p365 = scmp.ne.s32.totalorder %s350, %s364
      %p366 = scmp.eq.s32.totalorder %s34, 0
      %p367 = por %p365, %p366
      %s369 = sadd.s32 %s368, 1
      %p372 = scmp.eq.s32.totalorder %s28, 1
      %p373 = scmp.ne.s32.totalorder %s368, %s370
      %p374 = scmp.eq.s32.totalorder %s28, 0
      %p375 = por %p373, %p374
      %p376 = scmp.ne.s32.totalorder %s368, %s370
      %p377 = scmp.eq.s32.totalorder %s33, 1
      %p378 = por %p376, %p377
      %p379 = scmp.ne.s32.totalorder %s370, %s371
      %p380 = scmp.eq.s32.totalorder %s33, 0
      %p381 = por %p379, %p380
      %p382 = scmp.ne.s32.totalorder %s370, %s371
      %p383 = scmp.eq.s32.totalorder %s34, 1
      %p384 = por %p382, %p383
      %p386 = scmp.ne.s32.totalorder %s371, %s385
      %p387 = scmp.eq.s32.totalorder %s34, 0
      %p388 = por %p386, %p387
      %s390 = sadd.s32 %s389, 1
      %p393 = scmp.eq.s32.totalorder %s28, 1
      %p394 = scmp.ne.s32.totalorder %s389, %s391
      %p395 = scmp.eq.s32.totalorder %s28, 0
      %p396 = por %p394, %p395
      %p397 = scmp.ne.s32.totalorder %s389, %s391
      %p398 = scmp.eq.s32.totalorder %s33, 1
      %p399 = por %p397, %p398
      %p400 = scmp.ne.s32.totalorder %s391, %s392
      %p401 = scmp.eq.s32.totalorder %s33, 0
      %p402 = por %p400, %p401
      %p403 = scmp.ne.s32.totalorder %s391, %s392
      %p404 = scmp.eq.s32.totalorder %s34, 1
      %p405 = por %p403, %p404
      %p407 = scmp.ne.s32.totalorder %s392, %s406
      %p408 = scmp.eq.s32.totalorder %s34, 0
      %p409 = por %p407, %p408
      %s410 = ssub.s32 %s35, %s47
      %p411 = scmp.eq.s32.totalorder %s410, 0
      %s413 = sadd.s32 %s412, 1
      %s414 = scalar_select %p411, %s412, %s413
      %p417 = pneg %p411
      %p418 = scmp.eq.s32.totalorder %s28, 1
      %p419 = por %p417, %p418
      %p420 = scmp.ne.s32.totalorder %s412, %s415
      %p421 = scmp.eq.s32.totalorder %s28, 0
      %p422 = por %p420, %p421
      %p423 = scmp.ne.s32.totalorder %s412, %s415
      %p424 = scmp.eq.s32.totalorder %s33, 1
      %p425 = por %p423, %p424
      %p426 = scmp.ne.s32.totalorder %s415, %s416
      %p427 = scmp.eq.s32.totalorder %s33, 0
      %p428 = por %p426, %p427
      %p429 = scmp.ne.s32.totalorder %s415, %s416
      %p430 = scmp.eq.s32.totalorder %s34, 1
      %p431 = por %p429, %p430
      %p433 = scmp.ne.s32.totalorder %s416, %s432
      %p434 = scmp.eq.s32.totalorder %s34, 0
      %p435 = por %p433, %p434
      %p436 = scmp.le.s32.totalorder 1, %s28
      %p437 = scmp.lt.s32.totalorder %s28, 3
      %p438 = pnand %p436, %p437
      %p439 = pneg %p438
      // Predicated region
      $region9: #{tpu_custom_call.1} parent=5 // pred_check
        _
      $region10: #{tpu_custom_call.1} parent=5 // pred_check_branch
        %441 = sbr.rel (%p438) target = $region12
      $region11: #{tpu_custom_call.1} parent=5 // pred_region
        %s442 = ssub.s32 %s28, 1
        // Predicated region
        $region13: #{tpu_custom_call.1} parent=11 // pred_check
          %p443 = pneg %p66
        $region14: #{tpu_custom_call.1} parent=11 // pred_check_branch
          %445 = sbr.rel (%p443) target = $region16
        $region15: #{tpu_custom_call.1} parent=11 // pred_region
          %s446 = smul.u32 2, %s37
          %s448 = ssub.s32 256, 256
          %449 = vsyncadd [#allocation4], %s448
          %s450 = smul.addr %s446, 128
          %s451 = scalar_lea.hbm %s0, %s450
          %s452 = sshll.u32 [#allocation3], 4
          %s453 = int_to_ptr.vmem [resolvable:$true] %s452
          %458 = dma.hbm_to_vmem [thread:$0]  %s451, 256, %s453, [#allocation4], 128, 128, 8
        $region16: #{tpu_custom_call.1} parent=11 // pred_fallthru
          _
        // Predicated region
        $region17: #{tpu_custom_call.1} parent=11 // pred_check
          %p459 = pneg %p87
        $region18: #{tpu_custom_call.1} parent=11 // pred_check_branch
          %461 = sbr.rel (%p459) target = $region20
        $region19: #{tpu_custom_call.1} parent=11 // pred_region
          %s463 = ssub.s32 256, 256
          %464 = vsyncadd [#allocation7], %s463
          %s465 = sshll.u32 [#allocation6], 4
          %s466 = int_to_ptr.vmem [resolvable:$true] %s465
          %471 = dma.hbm_to_vmem [thread:$0]  %s1, 256, %s466, [#allocation7], 128, 128, 8
        $region20: #{tpu_custom_call.1} parent=11 // pred_fallthru
          _
        // Predicated region
        $region21: #{tpu_custom_call.1} parent=11 // pred_check
          %p472 = pneg %p108
        $region22: #{tpu_custom_call.1} parent=11 // pred_check_branch
          %474 = sbr.rel (%p472) target = $region24
        $region23: #{tpu_custom_call.1} parent=11 // pred_region
          _
        $region24: #{tpu_custom_call.1} parent=11 // pred_fallthru
          _
        // Predicated region
        $region25: #{tpu_custom_call.1} parent=11 // pred_check
          %p475 = pneg %p129
        $region26: #{tpu_custom_call.1} parent=11 // pred_check_branch
          %477 = sbr.rel (%p475) target = $region28
        $region27: #{tpu_custom_call.1} parent=11 // pred_region
          _
        $region28: #{tpu_custom_call.1} parent=11 // pred_fallthru
          _
        // Predicated region
        $region29: #{tpu_custom_call.1} parent=11 // pred_check
          %p478 = pneg %p150
        $region30: #{tpu_custom_call.1} parent=11 // pred_check_branch
          %480 = sbr.rel (%p478) target = $region32
        $region31: #{tpu_custom_call.1} parent=11 // pred_region
          _
        $region32: #{tpu_custom_call.1} parent=11 // pred_fallthru
          _
        // Predicated region
        $region33: #{tpu_custom_call.1} parent=11 // pred_check
          %p481 = pneg %p171
        $region34: #{tpu_custom_call.1} parent=11 // pred_check_branch
          %483 = sbr.rel (%p481) target = $region36
        $region35: #{tpu_custom_call.1} parent=11 // pred_region
          %s485 = ssub.s32 6144, 6144
          %486 = vsyncadd [#allocation7], %s485
          %s487 = sshll.u32 [#allocation8], 4
          %s488 = int_to_ptr.vmem [resolvable:$true] %s487
          %493 = dma.hbm_to_vmem [thread:$0]  %s5, 6144, %s488, [#allocation7], 384, 384, 24
        $region36: #{tpu_custom_call.1} parent=11 // pred_fallthru
          _
        // Predicated region
        $region37: #{tpu_custom_call.1} parent=11 // pred_check
          %p494 = pneg %p192
        $region38: #{tpu_custom_call.1} parent=11 // pred_check_branch
          %496 = sbr.rel (%p494) target = $region40
        $region39: #{tpu_custom_call.1} parent=11 // pred_region
          _
        $region40: #{tpu_custom_call.1} parent=11 // pred_fallthru
          _
        // Predicated region
        $region41: #{tpu_custom_call.1} parent=11 // pred_check
          %p497 = pneg %p213
        $region42: #{tpu_custom_call.1} parent=11 // pred_check_branch
          %499 = sbr.rel (%p497) target = $region44
        $region43: #{tpu_custom_call.1} parent=11 // pred_region
          %s501 = ssub.s32 2048, 2048
          %502 = vsyncadd [#allocation10], %s501
          %s503 = sshll.u32 [#allocation9], 4
          %s504 = int_to_ptr.vmem [resolvable:$true] %s503
          %509 = dma.hbm_to_vmem [thread:$0]  %s7, 2048, %s504, [#allocation10], 128, 128, 8
        $region44: #{tpu_custom_call.1} parent=11 // pred_fallthru
          _
        // Predicated region
        $region45: #{tpu_custom_call.1} parent=11 // pred_check
          %p510 = pneg %p234
        $region46: #{tpu_custom_call.1} parent=11 // pred_check_branch
          %512 = sbr.rel (%p510) target = $region48
        $region47: #{tpu_custom_call.1} parent=11 // pred_region
          _
        $region48: #{tpu_custom_call.1} parent=11 // pred_fallthru
          _
        // Predicated region
        $region49: #{tpu_custom_call.1} parent=11 // pred_check
          %p513 = pneg %p255
        $region50: #{tpu_custom_call.1} parent=11 // pred_check_branch
          %515 = sbr.rel (%p513) target = $region52
        $region51: #{tpu_custom_call.1} parent=11 // pred_region
          _
        $region52: #{tpu_custom_call.1} parent=11 // pred_fallthru
          _
        // Predicated region
        $region53: #{tpu_custom_call.1} parent=11 // pred_check
          %p516 = pneg %p276
        $region54: #{tpu_custom_call.1} parent=11 // pred_check_branch
          %518 = sbr.rel (%p516) target = $region56
        $region55: #{tpu_custom_call.1} parent=11 // pred_region
          _
        $region56: #{tpu_custom_call.1} parent=11 // pred_fallthru
          _
        // Predicated region
        $region57: #{tpu_custom_call.1} parent=11 // pred_check
          %p519 = pneg %p297
        $region58: #{tpu_custom_call.1} parent=11 // pred_check_branch
          %521 = sbr.rel (%p519) target = $region60
        $region59: #{tpu_custom_call.1} parent=11 // pred_region
          %s523 = ssub.s32 2048, 2048
          %524 = vsyncadd [#allocation10], %s523
          %s525 = sshll.u32 [#allocation11], 4
          %s526 = int_to_ptr.vmem [resolvable:$true] %s525
          %531 = dma.hbm_to_vmem [thread:$0]  %s11, 2048, %s526, [#allocation10], 128, 128, 8
        $region60: #{tpu_custom_call.1} parent=11 // pred_fallthru
          _
        // Predicated region
        $region61: #{tpu_custom_call.1} parent=11 // pred_check
          %p532 = pneg %p318
        $region62: #{tpu_custom_call.1} parent=11 // pred_check_branch
          %534 = sbr.rel (%p532) target = $region64
        $region63: #{tpu_custom_call.1} parent=11 // pred_region
          _
        $region64: #{tpu_custom_call.1} parent=11 // pred_fallthru
          _
        // Predicated region
        $region65: #{tpu_custom_call.1} parent=11 // pred_check
          %p535 = pneg %p339
        $region66: #{tpu_custom_call.1} parent=11 // pred_check_branch
          %537 = sbr.rel (%p535) target = $region68
        $region67: #{tpu_custom_call.1} parent=11 // pred_region
          %s539 = ssub.s32 2048, 2048
          %540 = vsyncadd [#allocation13], %s539
          %s541 = sshll.u32 [#allocation12], 4
          %s542 = int_to_ptr.vmem [resolvable:$true] %s541
          %547 = dma.hbm_to_vmem [thread:$0]  %s13, 2048, %s542, [#allocation13], 128, 128, 8
        $region68: #{tpu_custom_call.1} parent=11 // pred_fallthru
          _
        // Predicated region
        $region69: #{tpu_custom_call.1} parent=11 // pred_check
          %p548 = pneg %p360
        $region70: #{tpu_custom_call.1} parent=11 // pred_check_branch
          %550 = sbr.rel (%p548) target = $region72
        $region71: #{tpu_custom_call.1} parent=11 // pred_region
          _
        $region72: #{tpu_custom_call.1} parent=11 // pred_fallthru
          _
        // Predicated region
        $region73: #{tpu_custom_call.1} parent=11 // pred_check
          %p551 = pneg %p381
        $region74: #{tpu_custom_call.1} parent=11 // pred_check_branch
          %553 = sbr.rel (%p551) target = $region76
        $region75: #{tpu_custom_call.1} parent=11 // pred_region
          _
        $region76: #{tpu_custom_call.1} parent=11 // pred_fallthru
          _
        // Predicated region
        $region77: #{tpu_custom_call.1} parent=11 // pred_check
          %p554 = pneg %p402
        $region78: #{tpu_custom_call.1} parent=11 // pred_check_branch
          %556 = sbr.rel (%p554) target = $region80
        $region79: #{tpu_custom_call.1} parent=11 // pred_region
          _
        $region80: #{tpu_custom_call.1} parent=11 // pred_fallthru
          _
      $region12: #{tpu_custom_call.1} parent=5 // pred_fallthru
        _
      %p557 = scmp.lt.s32.totalorder %s28, 2
      // Predicated region
      $region81: #{tpu_custom_call.1} parent=5 // pred_check
        %p558 = pneg %p557
      $region82: #{tpu_custom_call.1} parent=5 // pred_check_branch
        %560 = sbr.rel (%p558) target = $region84
      $region83: #{tpu_custom_call.1} parent=5 // pred_region
        _
      $region84: #{tpu_custom_call.1} parent=5 // pred_fallthru
        _
      %p561 = scmp.le.s32.totalorder 1, %s28
      %p562 = scmp.lt.s32.totalorder %s28, 3
      %p563 = pnand %p561, %p562
      %p564 = pneg %p563
      // Predicated region
      $region85: #{tpu_custom_call.1} parent=5 // pred_check
        _
      $region86: #{tpu_custom_call.1} parent=5 // pred_check_branch
        %566 = sbr.rel (%p563) target = $region88
      $region87: #{tpu_custom_call.1} parent=5 // pred_region
        %s567 = ssub.s32 %s28, 1
        // Predicated region
        $region89: #{tpu_custom_call.1} parent=87 // pred_check
          %p568 = pneg %p66
        $region90: #{tpu_custom_call.1} parent=87 // pred_check_branch
          %570 = sbr.rel (%p568) target = $region92
        $region91: #{tpu_custom_call.1} parent=87 // pred_region
          %571 = dma.done [#allocation4], 256
        $region92: #{tpu_custom_call.1} parent=87 // pred_fallthru
          _
        // Predicated region
        $region93: #{tpu_custom_call.1} parent=87 // pred_check
          %p572 = pneg %p87
        $region94: #{tpu_custom_call.1} parent=87 // pred_check_branch
          %574 = sbr.rel (%p572) target = $region96
        $region95: #{tpu_custom_call.1} parent=87 // pred_region
          %575 = dma.done [#allocation7], 256
        $region96: #{tpu_custom_call.1} parent=87 // pred_fallthru
          _
        // Predicated region
        $region97: #{tpu_custom_call.1} parent=87 // pred_check
          %p576 = pneg %p171
        $region98: #{tpu_custom_call.1} parent=87 // pred_check_branch
          %578 = sbr.rel (%p576) target = $region100
        $region99: #{tpu_custom_call.1} parent=87 // pred_region
          %579 = dma.done [#allocation7], 6144
        $region100: #{tpu_custom_call.1} parent=87 // pred_fallthru
          _
        // Predicated region
        $region101: #{tpu_custom_call.1} parent=87 // pred_check
          %p580 = pneg %p213
        $region102: #{tpu_custom_call.1} parent=87 // pred_check_branch
          %582 = sbr.rel (%p580) target = $region104
        $region103: #{tpu_custom_call.1} parent=87 // pred_region
          %583 = dma.done [#allocation10], 2048
        $region104: #{tpu_custom_call.1} parent=87 // pred_fallthru
          _
        // Predicated region
        $region105: #{tpu_custom_call.1} parent=87 // pred_check
          %p584 = pneg %p297
        $region106: #{tpu_custom_call.1} parent=87 // pred_check_branch
          %586 = sbr.rel (%p584) target = $region108
        $region107: #{tpu_custom_call.1} parent=87 // pred_region
          %587 = dma.done [#allocation10], 2048
        $region108: #{tpu_custom_call.1} parent=87 // pred_fallthru
          _
        // Predicated region
        $region109: #{tpu_custom_call.1} parent=87 // pred_check
          %p588 = pneg %p339
        $region110: #{tpu_custom_call.1} parent=87 // pred_check_branch
          %590 = sbr.rel (%p588) target = $region112
        $region111: #{tpu_custom_call.1} parent=87 // pred_region
          %591 = dma.done [#allocation13], 2048
        $region112: #{tpu_custom_call.1} parent=87 // pred_fallthru
          _
        %p592 = pneg %p66
        %p593 = pneg %p63
        %p594 = pneg %p87
        %p595 = pneg %p84
        %p596 = pneg %p108
        %p597 = pneg %p105
        %p598 = pneg %p129
        %p599 = pneg %p126
        %p600 = pneg %p150
        %p601 = pneg %p147
        %p602 = pneg %p171
        %p603 = pneg %p168
        %p604 = pneg %p192
        %p605 = pneg %p189
        %p606 = pneg %p213
        %p607 = pneg %p210
        %p608 = pneg %p234
        %p609 = pneg %p231
        %p610 = pneg %p255
        %p611 = pneg %p252
        %p612 = pneg %p276
        %p613 = pneg %p273
        %p614 = pneg %p297
        %p615 = pneg %p294
        %p616 = pneg %p318
        %p617 = pneg %p315
        %p618 = pneg %p339
        %p619 = pneg %p336
        %p620 = pneg %p360
        %p621 = pneg %p357
        %p622 = pneg %p381
        %p623 = pneg %p378
        %p624 = pneg %p402
        %p625 = pneg %p399
        %p626 = pneg %p428
        %p627 = pneg %p425
        %s628 = smul.u32 2, %s37
        %s629 = smul.u32 2, %s37
        %p630 = scmp.eq.s32.totalorder %s38, 0
        // Predicated region
        $region113: #{tpu_custom_call.1} parent=87 // pred_check
          %p631 = pneg %p630
        $region114: #{tpu_custom_call.1} parent=87 // pred_check_branch
          %633 = sbr.rel (%p631) target = $region116
        $region115: #{tpu_custom_call.1} parent=87 // pred_region
          %v634 = vld [vmem:[#allocation3] sm:$0xff]
          %v635 = vld [vmem:[#allocation3 + $0x8] sm:$0xff]
          %636 = vst [vmem:[#allocation2] sm:$0xff] %v634
          %637 = vst [vmem:[#allocation2 + $0x8] sm:$0xff] %v635
        $region116: #{tpu_custom_call.1} parent=87 // pred_fallthru
          _
        %v638 = vld [vmem:[#allocation2] sm:$0xff]
        %v639 = vld [vmem:[#allocation2 + $0x8] sm:$0xff]
        %v640 = vld [vmem:[#allocation6] sm:$0xff]
        %v641 = vld [vmem:[#allocation6 + $0x8] sm:$0xff]
        %vm642 = vcmask 64512
        %v644 = vsel %vm642, %v640, 0
        %646 = vmatprep.subr.mxu0 0.0
        %647 = vmatpush1.msra.mxu0 0.0
        %648 = vmatprep.subr.mxu0 0.0
        %649 = vmatpush1.msra.mxu0 0.0
        %650 = vmatprep.subr.mxu0 0.0
        %651 = vmatpush1.msra.mxu0 0.0
        %652 = vmatprep.subr.mxu0 0.0
        %653 = vmatpush1.msra.mxu0 0.0
        %654 = vmatprep.subr.mxu0 0.0
        %655 = vmatpush1.msra.mxu0 0.0
        %656 = vmatprep.subr.mxu0 0.0
        %657 = vmatpush1.msra.mxu0 0.0
        %658 = vmatprep.subr.mxu0 0.0
        %659 = vmatpush1.msra.mxu0 0.0
        %660 = vmatprep.subr.mxu0 0.0
        %661 = vmatpush1.msra.mxu0 0.0
        %662 = vmatprep.subr.mxu0 0.0
        %663 = vmatpush1.msra.mxu0 0.0
        %664 = vmatprep.subr.mxu0 0.0
        %665 = vmatpush1.msra.mxu0 0.0
        %666 = vmatprep.subr.mxu0 0.0
        %667 = vmatpush1.msra.mxu0 0.0
        %668 = vmatprep.subr.mxu0 0.0
        %669 = vmatpush1.msra.mxu0 0.0
        %670 = vmatprep.subr.mxu0 0.0
        %671 = vmatpush1.msra.mxu0 0.0
        %672 = vmatprep.subr.mxu0 0.0
        %673 = vmatpush1.msra.mxu0 0.0
        %674 = vmatprep.subr.mxu0 0.0
        %675 = vmatpush1.msra.mxu0 0.0
        %676 = vmatprep.subr.mxu0 0.0
        %677 = vmatpush1.msra.mxu0 %v638
        %678 = vmatprep.subr.mxu0 0.0
        %679 = vmatpush2.msra.mxu0 0.0
        %680 = vmatprep.subr.mxu0 0.0
        %681 = vmatpush2.msra.mxu0 0.0
        %682 = vmatprep.subr.mxu0 0.0
        %683 = vmatpush2.msra.mxu0 0.0
        %684 = vmatprep.subr.mxu0 0.0
        %685 = vmatpush2.msra.mxu0 0.0
        %686 = vmatprep.subr.mxu0 0.0
        %687 = vmatpush2.msra.mxu0 0.0
        %688 = vmatprep.subr.mxu0 0.0
        %689 = vmatpush2.msra.mxu0 0.0
        %690 = vmatprep.subr.mxu0 0.0
        %691 = vmatpush2.msra.mxu0 0.0
        %692 = vmatprep.subr.mxu0 0.0
        %693 = vmatpush2.msra.mxu0 0.0
        %694 = vmatprep.subr.mxu0 0.0
        %695 = vmatpush2.msra.mxu0 0.0
        %696 = vmatprep.subr.mxu0 0.0
        %697 = vmatpush2.msra.mxu0 0.0
        %698 = vmatprep.subr.mxu0 0.0
        %699 = vmatpush2.msra.mxu0 0.0
        %700 = vmatprep.subr.mxu0 0.0
        %701 = vmatpush2.msra.mxu0 0.0
        %702 = vmatprep.subr.mxu0 0.0
        %703 = vmatpush2.msra.mxu0 0.0
        %704 = vmatprep.subr.mxu0 0.0
        %705 = vmatpush2.msra.mxu0 0.0
        %706 = vmatprep.subr.mxu0 0.0
        %707 = vmatpush2.msra.mxu0 0.0
        %708 = vmatprep.subr.mxu0 0.0
        %709 = vmatpush2.msra.mxu0 0.0
        %710 = vmatprep.mubr.f32.mxu0 0.0
        %711 = vmatmul.mubr.f32.gmra.mxu0 %v644
        %v712 = vpop.f32.mrf.mxu0
        %v713 = vadd.f32 0.0, %v712
        %v714 = vpop.f32.mrf.mxu0
        %715 = vdwg.mxu0
        %v717 = vsel %vm642, %v641, 0
        %719 = vmatprep.subr.mxu0 0.0
        %720 = vmatpush1.msra.mxu0 0.0
        %721 = vmatprep.subr.mxu0 0.0
        %722 = vmatpush1.msra.mxu0 0.0
        %723 = vmatprep.subr.mxu0 0.0
        %724 = vmatpush1.msra.mxu0 0.0
        %725 = vmatprep.subr.mxu0 0.0
        %726 = vmatpush1.msra.mxu0 0.0
        %727 = vmatprep.subr.mxu0 0.0
        %728 = vmatpush1.msra.mxu0 0.0
        %729 = vmatprep.subr.mxu0 0.0
        %730 = vmatpush1.msra.mxu0 0.0
        %731 = vmatprep.subr.mxu0 0.0
        %732 = vmatpush1.msra.mxu0 0.0
        %733 = vmatprep.subr.mxu0 0.0
        %734 = vmatpush1.msra.mxu0 0.0
        %735 = vmatprep.subr.mxu0 0.0
        %736 = vmatpush1.msra.mxu0 0.0
        %737 = vmatprep.subr.mxu0 0.0
        %738 = vmatpush1.msra.mxu0 0.0
        %739 = vmatprep.subr.mxu0 0.0
        %740 = vmatpush1.msra.mxu0 0.0
        %741 = vmatprep.subr.mxu0 0.0
        %742 = vmatpush1.msra.mxu0 0.0
        %743 = vmatprep.subr.mxu0 0.0
        %744 = vmatpush1.msra.mxu0 0.0
        %745 = vmatprep.subr.mxu0 0.0
        %746 = vmatpush1.msra.mxu0 0.0
        %747 = vmatprep.subr.mxu0 0.0
        %748 = vmatpush1.msra.mxu0 0.0
        %749 = vmatprep.subr.mxu0 0.0
        %750 = vmatpush1.msra.mxu0 %v639
        %751 = vmatprep.subr.mxu0 0.0
        %752 = vmatpush2.msra.mxu0 0.0
        %753 = vmatprep.subr.mxu0 0.0
        %754 = vmatpush2.msra.mxu0 0.0
        %755 = vmatprep.subr.mxu0 0.0
        %756 = vmatpush2.msra.mxu0 0.0
        %757 = vmatprep.subr.mxu0 0.0
        %758 = vmatpush2.msra.mxu0 0.0
        %759 = vmatprep.subr.mxu0 0.0
        %760 = vmatpush2.msra.mxu0 0.0
        %761 = vmatprep.subr.mxu0 0.0
        %762 = vmatpush2.msra.mxu0 0.0
        %763 = vmatprep.subr.mxu0 0.0
        %764 = vmatpush2.msra.mxu0 0.0
        %765 = vmatprep.subr.mxu0 0.0
        %766 = vmatpush2.msra.mxu0 0.0
        %767 = vmatprep.subr.mxu0 0.0
        %768 = vmatpush2.msra.mxu0 0.0
        %769 = vmatprep.subr.mxu0 0.0
        %770 = vmatpush2.msra.mxu0 0.0
        %771 = vmatprep.subr.mxu0 0.0
        %772 = vmatpush2.msra.mxu0 0.0
        %773 = vmatprep.subr.mxu0 0.0
        %774 = vmatpush2.msra.mxu0 0.0
        %775 = vmatprep.subr.mxu0 0.0
        %776 = vmatpush2.msra.mxu0 0.0
        %777 = vmatprep.subr.mxu0 0.0
        %778 = vmatpush2.msra.mxu0 0.0
        %779 = vmatprep.subr.mxu0 0.0
        %780 = vmatpush2.msra.mxu0 0.0
        %781 = vmatprep.subr.mxu0 0.0
        %782 = vmatpush2.msra.mxu0 0.0
        %783 = vmatprep.mubr.f32.mxu0 0.0
        %784 = vmatmul.mubr.f32.gmra.mxu0 %v717
        %v785 = vpop.f32.mrf.mxu0
        %v786 = vadd.f32 0.0, %v785
        %v787 = vpop.f32.mrf.mxu0
        %788 = vdwg.mxu0
        %v789 = vld [vmem:[%s2] sm:$0x1]
        %v790 = vsub.f32 %v638, %v713
        %v791 = vsub.f32 %v639, %v786
        %v793 = vlaneseq
        %v794 = vshrl.u32 %v793, 7
        %v795 = vsub.s32 0, %v794
        %v796 = vrot.slane %v789, %v795
        %v798 = vmul.f32 %v796, %v790
        %v799 = vmul.f32 %v796, %v791
        %v800 = vadd.f32 %v713, %v798
        %v801 = vadd.f32 %v786, %v799
        %v802 = vadd.f32 %v800, %v638
        %v803 = vadd.f32 %v801, %v639
        %v804 = vld [vmem:[%s3] sm:$0x1]
        %v805 = vld [vmem:[%s4] sm:$0x1]
        %806 = vadd.xlane.f32.xlu0 %v802
        %v807 = vpop.xlane.xlu0 %806
        %808 = vadd.xlane.f32.xlu0 %v803
        %v809 = vpop.xlane.xlu0 %808
        %v810 = vmul.f32 %v807, 0.03125
        %v811 = vmul.f32 %v809, 0.03125
        %v812 = vsub.f32 %v802, %v810
        %v813 = vsub.f32 %v803, %v811
        %v814 = vmul.f32 %v812, %v812
        %v815 = vmul.f32 %v813, %v813
        %816 = vadd.xlane.f32.xlu0 %v814
        %v817 = vpop.xlane.xlu0 %816
        %818 = vadd.xlane.f32.xlu0 %v815
        %v819 = vpop.xlane.xlu0 %818
        %v820 = vmul.f32 %v810, %v810
        %v821 = vmul.f32 %v811, %v811
        %v822 = vmul.f32 %v820, 96.0
        %v823 = vmul.f32 %v821, 96.0
        %v824 = vsub.f32 %v817, %v822
        %v825 = vsub.f32 %v819, %v823
        %v826 = vmax.f32 %v824, 0.0
        %v827 = vmax.f32 %v825, 0.0
        %v828 = vmul.f32 %v826, 0.03125
        %v829 = vmul.f32 %v827, 0.03125
        %v830 = vadd.f32 %v828, 1e-12
        %v831 = vadd.f32 %v829, 1e-12
        %v832 = vrsqrt.pop %v830
        %v833 = vrsqrt.pop %v831
        %v834 = vmul.f32 %v812, %v832
        %v835 = vmul.f32 %v813, %v833
        %v837 = vlaneseq
        %v838 = vshrl.u32 %v837, 7
        %v839 = vsub.s32 0, %v838
        %v840 = vrot.slane %v804, %v839
        %v842 = vmul.f32 %v834, %v840
        %v843 = vmul.f32 %v835, %v840
        %v845 = vlaneseq
        %v846 = vshrl.u32 %v845, 7
        %v847 = vsub.s32 0, %v846
        %v848 = vrot.slane %v805, %v847
        %v850 = vadd.f32 %v842, %v848
        %v851 = vadd.f32 %v843, %v848
        %v852 = vld [vmem:[#allocation8] sm:$0xff]
        %v853 = vld [vmem:[#allocation8 + $0x8] sm:$0xff]
        %v854 = vld [vmem:[#allocation8 + $0x10] sm:$0xff]
        %v855 = vld [vmem:[#allocation8 + $0x18] sm:$0xff]
        %v856 = vld [vmem:[#allocation8 + $0x20] sm:$0xff]
        %v857 = vld [vmem:[#allocation8 + $0x28] sm:$0xff]
        %v858 = vld [vmem:[#allocation8 + $0x30] sm:$0xff]
        %v859 = vld [vmem:[#allocation8 + $0x38] sm:$0xff]
        %v860 = vld [vmem:[#allocation8 + $0x40] sm:$0xff]
        %v861 = vld [vmem:[#allocation8 + $0x48] sm:$0xff]
        %v862 = vld [vmem:[#allocation8 + $0x50] sm:$0xff]
        %v863 = vld [vmem:[#allocation8 + $0x58] sm:$0xff]
        %v864 = vld [vmem:[#allocation8 + $0x60] sm:$0xff]
        %v865 = vld [vmem:[#allocation8 + $0x68] sm:$0xff]
        %v866 = vld [vmem:[#allocation8 + $0x70] sm:$0xff]
        %v867 = vld [vmem:[#allocation8 + $0x78] sm:$0xff]
        %v868 = vld [vmem:[#allocation8 + $0x80] sm:$0xff]
        %v869 = vld [vmem:[#allocation8 + $0x88] sm:$0xff]
        %v870 = vld [vmem:[#allocation8 + $0x90] sm:$0xff]
        %v871 = vld [vmem:[#allocation8 + $0x98] sm:$0xff]
        %v872 = vld [vmem:[#allocation8 + $0xa0] sm:$0xff]
        %v873 = vld [vmem:[#allocation8 + $0xa8] sm:$0xff]
        %v874 = vld [vmem:[#allocation8 + $0xb0] sm:$0xff]
        %v875 = vld [vmem:[#allocation8 + $0xb8] sm:$0xff]
        %v876 = vld [vmem:[#allocation8 + $0xc0] sm:$0xff]
        %v877 = vld [vmem:[#allocation8 + $0xc8] sm:$0xff]
        %v878 = vld [vmem:[#allocation8 + $0xd0] sm:$0xff]
        %v879 = vld [vmem:[#allocation8 + $0xd8] sm:$0xff]
        %v880 = vld [vmem:[#allocation8 + $0xe0] sm:$0xff]
        %v881 = vld [vmem:[#allocation8 + $0xe8] sm:$0xff]
        %v882 = vld [vmem:[#allocation8 + $0xf0] sm:$0xff]
        %v883 = vld [vmem:[#allocation8 + $0xf8] sm:$0xff]
        %v884 = vld [vmem:[#allocation8 + $0x100] sm:$0xff]
        %v885 = vld [vmem:[#allocation8 + $0x108] sm:$0xff]
        %v886 = vld [vmem:[#allocation8 + $0x110] sm:$0xff]
        %v887 = vld [vmem:[#allocation8 + $0x118] sm:$0xff]
        %v888 = vld [vmem:[#allocation8 + $0x120] sm:$0xff]
        %v889 = vld [vmem:[#allocation8 + $0x128] sm:$0xff]
        %v890 = vld [vmem:[#allocation8 + $0x130] sm:$0xff]
        %v891 = vld [vmem:[#allocation8 + $0x138] sm:$0xff]
        %v892 = vld [vmem:[#allocation8 + $0x140] sm:$0xff]
        %v893 = vld [vmem:[#allocation8 + $0x148] sm:$0xff]
        %v894 = vld [vmem:[#allocation8 + $0x150] sm:$0xff]
        %v895 = vld [vmem:[#allocation8 + $0x158] sm:$0xff]
        %v896 = vld [vmem:[#allocation8 + $0x160] sm:$0xff]
        %v897 = vld [vmem:[#allocation8 + $0x168] sm:$0xff]
        %v898 = vld [vmem:[#allocation8 + $0x170] sm:$0xff]
        %v899 = vld [vmem:[#allocation8 + $0x178] sm:$0xff]
        %v900 = vld [vmem:[%s6] sm:$0x7]
        %v902 = vlaneseq
        %v903 = vshrl.u32 %v902, 7
        %v904 = vsub.s32 0, %v903
        %v905 = vrot.slane %v900, %v904
        %v906 = vlaneseq
        %v907 = vshrl.u32 %v906, 7
        %v908 = vsub.s32 1, %v907
        %v909 = vrot.slane %v900, %v908
        %v910 = vlaneseq
        %v911 = vshrl.u32 %v910, 7
        %v912 = vsub.s32 2, %v911
        %v913 = vrot.slane %v900, %v912
        %917 = vmatprep.subr.mxu0 %v898
        %918 = vmatpush1.msra.mxu0 %v897
        %919 = vmatprep.subr.mxu0 %v895
        %920 = vmatpush1.msra.mxu0 %v894
        %921 = vmatprep.subr.mxu0 %v892
        %922 = vmatpush1.msra.mxu0 %v891
        %923 = vmatprep.subr.mxu0 %v889
        %924 = vmatpush1.msra.mxu0 %v888
        %925 = vmatprep.subr.mxu0 %v886
        %926 = vmatpush1.msra.mxu0 %v885
        %927 = vmatprep.subr.mxu0 %v883
        %928 = vmatpush1.msra.mxu0 %v882
        %929 = vmatprep.subr.mxu0 %v880
        %930 = vmatpush1.msra.mxu0 %v879
        %931 = vmatprep.subr.mxu0 %v877
        %932 = vmatpush1.msra.mxu0 %v876
        %933 = vmatprep.subr.mxu0 %v874
        %934 = vmatpush1.msra.mxu0 %v873
        %935 = vmatprep.subr.mxu0 %v871
        %936 = vmatpush1.msra.mxu0 %v870
        %937 = vmatprep.subr.mxu0 %v868
        %938 = vmatpush1.msra.mxu0 %v867
        %939 = vmatprep.subr.mxu0 %v865
        %940 = vmatpush1.msra.mxu0 %v864
        %941 = vmatprep.subr.mxu0 %v862
        %942 = vmatpush1.msra.mxu0 %v861
        %943 = vmatprep.subr.mxu0 %v859
        %944 = vmatpush1.msra.mxu0 %v858
        %945 = vmatprep.subr.mxu0 %v856
        %946 = vmatpush1.msra.mxu0 %v855
        %947 = vmatprep.subr.mxu0 %v853
        %948 = vmatpush1.msra.mxu0 %v852
        %949 = vmatprep.subr.mxu0 0.0
        %950 = vmatpush2.msra.mxu0 0.0
        %951 = vmatprep.subr.mxu0 0.0
        %952 = vmatpush2.msra.mxu0 0.0
        %953 = vmatprep.subr.mxu0 0.0
        %954 = vmatpush2.msra.mxu0 0.0
        %955 = vmatprep.subr.mxu0 0.0
        %956 = vmatpush2.msra.mxu0 0.0
        %957 = vmatprep.subr.mxu0 0.0
        %958 = vmatpush2.msra.mxu0 0.0
        %959 = vmatprep.subr.mxu0 0.0
        %960 = vmatpush2.msra.mxu0 0.0
        %961 = vmatprep.subr.mxu0 0.0
        %962 = vmatpush2.msra.mxu0 0.0
        %963 = vmatprep.subr.mxu0 0.0
        %964 = vmatpush2.msra.mxu0 0.0
        %965 = vmatprep.subr.mxu0 0.0
        %966 = vmatpush2.msra.mxu0 0.0
        %967 = vmatprep.subr.mxu0 0.0
        %968 = vmatpush2.msra.mxu0 0.0
        %969 = vmatprep.subr.mxu0 0.0
        %970 = vmatpush2.msra.mxu0 0.0
        %971 = vmatprep.subr.mxu0 0.0
        %972 = vmatpush2.msra.mxu0 0.0
        %973 = vmatprep.subr.mxu0 0.0
        %974 = vmatpush2.msra.mxu0 0.0
        %975 = vmatprep.subr.mxu0 0.0
        %976 = vmatpush2.msra.mxu0 0.0
        %977 = vmatprep.subr.mxu0 0.0
        %978 = vmatpush2.msra.mxu0 0.0
        %979 = vmatprep.subr.mxu0 0.0
        %980 = vmatpush2.msra.mxu0 0.0
        %981 = vmatprep.mubr.f32.mxu0 0.0
        %982 = vmatmul.mubr.f32.gmra.mxu0 %v638
        %v983 = vpop.f32.mrf.mxu0
        %v984 = vadd.f32 %v905, %v983
        %v985 = vpop.f32.mrf.mxu0
        %v986 = vadd.f32 %v909, %v985
        %987 = vmatprep.mubr.f32.mxu0 0.0
        %988 = vmatmul.mubr.f32.gmra.mxu0 %v639
        %v989 = vpop.f32.mrf.mxu0
        %v990 = vadd.f32 %v905, %v989
        %v991 = vpop.f32.mrf.mxu0
        %v992 = vadd.f32 %v909, %v991
        %993 = vdwg.mxu0
        %994 = vmatprep.subr.mxu0 0.0
        %995 = vmatpush1.msra.mxu0 %v899
        %996 = vmatprep.subr.mxu0 0.0
        %997 = vmatpush1.msra.mxu0 %v896
        %998 = vmatprep.subr.mxu0 0.0
        %999 = vmatpush1.msra.mxu0 %v893
        %1000 = vmatprep.subr.mxu0 0.0
        %1001 = vmatpush1.msra.mxu0 %v890
        %1002 = vmatprep.subr.mxu0 0.0
        %1003 = vmatpush1.msra.mxu0 %v887
        %1004 = vmatprep.subr.mxu0 0.0
        %1005 = vmatpush1.msra.mxu0 %v884
        %1006 = vmatprep.subr.mxu0 0.0
        %1007 = vmatpush1.msra.mxu0 %v881
        %1008 = vmatprep.subr.mxu0 0.0
        %1009 = vmatpush1.msra.mxu0 %v878
        %1010 = vmatprep.subr.mxu0 0.0
        %1011 = vmatpush1.msra.mxu0 %v875
        %1012 = vmatprep.subr.mxu0 0.0
        %1013 = vmatpush1.msra.mxu0 %v872
        %1014 = vmatprep.subr.mxu0 0.0
        %1015 = vmatpush1.msra.mxu0 %v869
        %1016 = vmatprep.subr.mxu0 0.0
        %1017 = vmatpush1.msra.mxu0 %v866
        %1018 = vmatprep.subr.mxu0 0.0
        %1019 = vmatpush1.msra.mxu0 %v863
        %1020 = vmatprep.subr.mxu0 0.0
        %1021 = vmatpush1.msra.mxu0 %v860
        %1022 = vmatprep.subr.mxu0 0.0
        %1023 = vmatpush1.msra.mxu0 %v857
        %1024 = vmatprep.subr.mxu0 0.0
        %1025 = vmatpush1.msra.mxu0 %v854
        %1026 = vmatprep.subr.mxu0 0.0
        %1027 = vmatpush2.msra.mxu0 0.0
        %1028 = vmatprep.subr.mxu0 0.0
        %1029 = vmatpush2.msra.mxu0 0.0
        %1030 = vmatprep.subr.mxu0 0.0
        %1031 = vmatpush2.msra.mxu0 0.0
        %1032 = vmatprep.subr.mxu0 0.0
        %1033 = vmatpush2.msra.mxu0 0.0
        %1034 = vmatprep.subr.mxu0 0.0
        %1035 = vmatpush2.msra.mxu0 0.0
        %1036 = vmatprep.subr.mxu0 0.0
        %1037 = vmatpush2.msra.mxu0 0.0
        %1038 = vmatprep.subr.mxu0 0.0
        %1039 = vmatpush2.msra.mxu0 0.0
        %1040 = vmatprep.subr.mxu0 0.0
        %1041 = vmatpush2.msra.mxu0 0.0
        %1042 = vmatprep.subr.mxu0 0.0
        %1043 = vmatpush2.msra.mxu0 0.0
        %1044 = vmatprep.subr.mxu0 0.0
        %1045 = vmatpush2.msra.mxu0 0.0
        %1046 = vmatprep.subr.mxu0 0.0
        %1047 = vmatpush2.msra.mxu0 0.0
        %1048 = vmatprep.subr.mxu0 0.0
        %1049 = vmatpush2.msra.mxu0 0.0
        %1050 = vmatprep.subr.mxu0 0.0
        %1051 = vmatpush2.msra.mxu0 0.0
        %1052 = vmatprep.subr.mxu0 0.0
        %1053 = vmatpush2.msra.mxu0 0.0
        %1054 = vmatprep.subr.mxu0 0.0
        %1055 = vmatpush2.msra.mxu0 0.0
        %1056 = vmatprep.subr.mxu0 0.0
        %1057 = vmatpush2.msra.mxu0 0.0
        %1058 = vmatprep.mubr.f32.mxu0 0.0
        %1059 = vmatmul.mubr.f32.gmra.mxu0 %v638
        %v1060 = vpop.f32.mrf.mxu0
        %v1061 = vadd.f32 %v913, %v1060
        %v1062 = vpop.f32.mrf.mxu0
        %1063 = vmatprep.mubr.f32.mxu0 0.0
        %1064 = vmatmul.mubr.f32.gmra.mxu0 %v639
        %v1065 = vpop.f32.mrf.mxu0
        %v1066 = vadd.f32 %v913, %v1065
        %v1067 = vpop.f32.mrf.mxu0
        %1068 = vdwg.mxu0
        %vm1069 = vcmask 523264
        %v1071 = vsel %vm1069, %v984, 0
        %v1074 = vsel %vm1069, %v986, 0
        %1076 = vmatprep.subr.mxu0 0.0
        %1077 = vmatpush1.xpose.msra.mxu0 0.0
        %1078 = vmatprep.subr.mxu0 0.0
        %1079 = vmatpush1.xpose.msra.mxu0 0.0
        %1080 = vmatprep.subr.mxu0 0.0
        %1081 = vmatpush1.xpose.msra.mxu0 0.0
        %1082 = vmatprep.subr.mxu0 0.0
        %1083 = vmatpush1.xpose.msra.mxu0 0.0
        %1084 = vmatprep.subr.mxu0 0.0
        %1085 = vmatpush1.xpose.msra.mxu0 0.0
        %1086 = vmatprep.subr.mxu0 0.0
        %1087 = vmatpush1.xpose.msra.mxu0 0.0
        %1088 = vmatprep.subr.mxu0 0.0
        %1089 = vmatpush1.xpose.msra.mxu0 0.0
        %1090 = vmatprep.subr.mxu0 0.0
        %1091 = vmatpush1.xpose.msra.mxu0 0.0
        %1092 = vmatprep.subr.mxu0 0.0
        %1093 = vmatpush1.xpose.msra.mxu0 0.0
        %1094 = vmatprep.subr.mxu0 0.0
        %1095 = vmatpush1.xpose.msra.mxu0 0.0
        %1096 = vmatprep.subr.mxu0 0.0
        %1097 = vmatpush1.xpose.msra.mxu0 0.0
        %1098 = vmatprep.subr.mxu0 0.0
        %1099 = vmatpush1.xpose.msra.mxu0 0.0
        %1100 = vmatprep.subr.mxu0 0.0
        %1101 = vmatpush1.xpose.msra.mxu0 0.0
        %1102 = vmatprep.subr.mxu0 0.0
        %1103 = vmatpush1.xpose.msra.mxu0 0.0
        %1104 = vmatprep.subr.mxu0 0.0
        %1105 = vmatpush1.xpose.msra.mxu0 0.0
        %1106 = vmatprep.subr.mxu0 0.0
        %1107 = vmatpush1.xpose.msra.mxu0 %v1074
        %1108 = vmatprep.subr.mxu0 0.0
        %1109 = vmatpush2.xpose.msra.mxu0 0.0
        %1110 = vmatprep.subr.mxu0 0.0
        %1111 = vmatpush2.xpose.msra.mxu0 0.0
        %1112 = vmatprep.subr.mxu0 0.0
        %1113 = vmatpush2.xpose.msra.mxu0 0.0
        %1114 = vmatprep.subr.mxu0 0.0
        %1115 = vmatpush2.xpose.msra.mxu0 0.0
        %1116 = vmatprep.subr.mxu0 0.0
        %1117 = vmatpush2.xpose.msra.mxu0 0.0
        %1118 = vmatprep.subr.mxu0 0.0
        %1119 = vmatpush2.xpose.msra.mxu0 0.0
        %1120 = vmatprep.subr.mxu0 0.0
        %1121 = vmatpush2.xpose.msra.mxu0 0.0
        %1122 = vmatprep.subr.mxu0 0.0
        %1123 = vmatpush2.xpose.msra.mxu0 0.0
        %1124 = vmatprep.subr.mxu0 0.0
        %1125 = vmatpush2.xpose.msra.mxu0 0.0
        %1126 = vmatprep.subr.mxu0 0.0
        %1127 = vmatpush2.xpose.msra.mxu0 0.0
        %1128 = vmatprep.subr.mxu0 0.0
        %1129 = vmatpush2.xpose.msra.mxu0 0.0
        %1130 = vmatprep.subr.mxu0 0.0
        %1131 = vmatpush2.xpose.msra.mxu0 0.0
        %1132 = vmatprep.subr.mxu0 0.0
        %1133 = vmatpush2.xpose.msra.mxu0 0.0
        %1134 = vmatprep.subr.mxu0 0.0
        %1135 = vmatpush2.xpose.msra.mxu0 0.0
        %1136 = vmatprep.subr.mxu0 0.0
        %1137 = vmatpush2.xpose.msra.mxu0 0.0
        %1138 = vmatprep.subr.mxu0 0.0
        %1139 = vmatpush2.xpose.msra.mxu0 0.0
        %1140 = vmatprep.mubr.f32.mxu0 0.0
        %1141 = vmatmul.mubr.f32.gmra.mxu0 %v1071
        %v1142 = vpop.f32.mrf.mxu0
        %v1143 = vadd.f32 0.0, %v1142
        %v1144 = vpop.f32.mrf.mxu0
        %1145 = vdwg.mxu0
        %v1147 = vsel %vm1069, %v990, 0
        %v1150 = vsel %vm1069, %v992, 0
        %1152 = vmatprep.subr.mxu0 0.0
        %1153 = vmatpush1.xpose.msra.mxu0 0.0
        %1154 = vmatprep.subr.mxu0 0.0
        %1155 = vmatpush1.xpose.msra.mxu0 0.0
        %1156 = vmatprep.subr.mxu0 0.0
        %1157 = vmatpush1.xpose.msra.mxu0 0.0
        %1158 = vmatprep.subr.mxu0 0.0
        %1159 = vmatpush1.xpose.msra.mxu0 0.0
        %1160 = vmatprep.subr.mxu0 0.0
        %1161 = vmatpush1.xpose.msra.mxu0 0.0
        %1162 = vmatprep.subr.mxu0 0.0
        %1163 = vmatpush1.xpose.msra.mxu0 0.0
        %1164 = vmatprep.subr.mxu0 0.0
        %1165 = vmatpush1.xpose.msra.mxu0 0.0
        %1166 = vmatprep.subr.mxu0 0.0
        %1167 = vmatpush1.xpose.msra.mxu0 0.0
        %1168 = vmatprep.subr.mxu0 0.0
        %1169 = vmatpush1.xpose.msra.mxu0 0.0
        %1170 = vmatprep.subr.mxu0 0.0
        %1171 = vmatpush1.xpose.msra.mxu0 0.0
        %1172 = vmatprep.subr.mxu0 0.0
        %1173 = vmatpush1.xpose.msra.mxu0 0.0
        %1174 = vmatprep.subr.mxu0 0.0
        %1175 = vmatpush1.xpose.msra.mxu0 0.0
        %1176 = vmatprep.subr.mxu0 0.0
        %1177 = vmatpush1.xpose.msra.mxu0 0.0
        %1178 = vmatprep.subr.mxu0 0.0
        %1179 = vmatpush1.xpose.msra.mxu0 0.0
        %1180 = vmatprep.subr.mxu0 0.0
        %1181 = vmatpush1.xpose.msra.mxu0 0.0
        %1182 = vmatprep.subr.mxu0 0.0
        %1183 = vmatpush1.xpose.msra.mxu0 %v1150
        %1184 = vmatprep.subr.mxu0 0.0
        %1185 = vmatpush2.xpose.msra.mxu0 0.0
        %1186 = vmatprep.subr.mxu0 0.0
        %1187 = vmatpush2.xpose.msra.mxu0 0.0
        %1188 = vmatprep.subr.mxu0 0.0
        %1189 = vmatpush2.xpose.msra.mxu0 0.0
        %1190 = vmatprep.subr.mxu0 0.0
        %1191 = vmatpush2.xpose.msra.mxu0 0.0
        %1192 = vmatprep.subr.mxu0 0.0
        %1193 = vmatpush2.xpose.msra.mxu0 0.0
        %1194 = vmatprep.subr.mxu0 0.0
        %1195 = vmatpush2.xpose.msra.mxu0 0.0
        %1196 = vmatprep.subr.mxu0 0.0
        %1197 = vmatpush2.xpose.msra.mxu0 0.0
        %1198 = vmatprep.subr.mxu0 0.0
        %1199 = vmatpush2.xpose.msra.mxu0 0.0
        %1200 = vmatprep.subr.mxu0 0.0
        %1201 = vmatpush2.xpose.msra.mxu0 0.0
        %1202 = vmatprep.subr.mxu0 0.0
        %1203 = vmatpush2.xpose.msra.mxu0 0.0
        %1204 = vmatprep.subr.mxu0 0.0
        %1205 = vmatpush2.xpose.msra.mxu0 0.0
        %1206 = vmatprep.subr.mxu0 0.0
        %1207 = vmatpush2.xpose.msra.mxu0 0.0
        %1208 = vmatprep.subr.mxu0 0.0
        %1209 = vmatpush2.xpose.msra.mxu0 0.0
        %1210 = vmatprep.subr.mxu0 0.0
        %1211 = vmatpush2.xpose.msra.mxu0 0.0
        %1212 = vmatprep.subr.mxu0 0.0
        %1213 = vmatpush2.xpose.msra.mxu0 0.0
        %1214 = vmatprep.subr.mxu0 0.0
        %1215 = vmatpush2.xpose.msra.mxu0 0.0
        %1216 = vmatprep.mubr.f32.mxu0 0.0
        %1217 = vmatmul.mubr.f32.gmra.mxu0 %v1147
        %v1218 = vpop.f32.mrf.mxu0
        %v1219 = vadd.f32 0.0, %v1218
        %v1220 = vpop.f32.mrf.mxu0
        %1221 = vdwg.mxu0
        %v1222 = vsel %vm642, %v1143, -inf
        %1223 = vmax.xlane.f32.xlu0 %v1222
        %v1224 = vpop.xlane.xlu0 %1223
        %v1225 = vsel %vm642, %v1219, -inf
        %1226 = vmax.xlane.f32.xlu0 %v1225
        %v1227 = vpop.xlane.xlu0 %1226
        %v1228 = vsub.f32 %v1143, %v1224
        %v1229 = vsub.f32 %v1219, %v1227
        %v1230 = vmul.f32 %v1228, 1.442695
        %v1231 = vpow.pop %v1230
        %v1232 = vmul.f32 %v1229, 1.442695
        %v1233 = vpow.pop %v1232
        %v1234 = vsel %vm642, %v1231, 0.0
        %1235 = vadd.xlane.f32.xlu0 %v1234
        %v1236 = vpop.xlane.xlu0 %1235
        %v1237 = vsel %vm642, %v1233, 0.0
        %1238 = vadd.xlane.f32.xlu0 %v1237
        %v1239 = vpop.xlane.xlu0 %1238
        %v1240 = vrcp.pop %v1236
        %v1241 = vrcp.pop %v1239
        %v1242 = vmul.f32 %v1231, %v1240
        %v1243 = vmul.f32 %v1233, %v1241
        %v1245 = vsel %vm642, %v1242, 0
        %1247 = vmatprep.subr.mxu0 0.0
        %1248 = vmatpush1.msra.mxu0 0.0
        %1249 = vmatprep.subr.mxu0 0.0
        %1250 = vmatpush1.msra.mxu0 0.0
        %1251 = vmatprep.subr.mxu0 0.0
        %1252 = vmatpush1.msra.mxu0 0.0
        %1253 = vmatprep.subr.mxu0 0.0
        %1254 = vmatpush1.msra.mxu0 0.0
        %1255 = vmatprep.subr.mxu0 0.0
        %1256 = vmatpush1.msra.mxu0 0.0
        %1257 = vmatprep.subr.mxu0 0.0
        %1258 = vmatpush1.msra.mxu0 0.0
        %1259 = vmatprep.subr.mxu0 0.0
        %1260 = vmatpush1.msra.mxu0 0.0
        %1261 = vmatprep.subr.mxu0 0.0
        %1262 = vmatpush1.msra.mxu0 0.0
        %1263 = vmatprep.subr.mxu0 0.0
        %1264 = vmatpush1.msra.mxu0 0.0
        %1265 = vmatprep.subr.mxu0 0.0
        %1266 = vmatpush1.msra.mxu0 0.0
        %1267 = vmatprep.subr.mxu0 0.0
        %1268 = vmatpush1.msra.mxu0 0.0
        %1269 = vmatprep.subr.mxu0 0.0
        %1270 = vmatpush1.msra.mxu0 0.0
        %1271 = vmatprep.subr.mxu0 0.0
        %1272 = vmatpush1.msra.mxu0 0.0
        %1273 = vmatprep.subr.mxu0 0.0
        %1274 = vmatpush1.msra.mxu0 0.0
        %1275 = vmatprep.subr.mxu0 0.0
        %1276 = vmatpush1.msra.mxu0 0.0
        %1277 = vmatprep.subr.mxu0 0.0
        %1278 = vmatpush1.msra.mxu0 %v1061
        %1279 = vmatprep.subr.mxu0 0.0
        %1280 = vmatpush2.msra.mxu0 0.0
        %1281 = vmatprep.subr.mxu0 0.0
        %1282 = vmatpush2.msra.mxu0 0.0
        %1283 = vmatprep.subr.mxu0 0.0
        %1284 = vmatpush2.msra.mxu0 0.0
        %1285 = vmatprep.subr.mxu0 0.0
        %1286 = vmatpush2.msra.mxu0 0.0
        %1287 = vmatprep.subr.mxu0 0.0
        %1288 = vmatpush2.msra.mxu0 0.0
        %1289 = vmatprep.subr.mxu0 0.0
        %1290 = vmatpush2.msra.mxu0 0.0
        %1291 = vmatprep.subr.mxu0 0.0
        %1292 = vmatpush2.msra.mxu0 0.0
        %1293 = vmatprep.subr.mxu0 0.0
        %1294 = vmatpush2.msra.mxu0 0.0
        %1295 = vmatprep.subr.mxu0 0.0
        %1296 = vmatpush2.msra.mxu0 0.0
        %1297 = vmatprep.subr.mxu0 0.0
        %1298 = vmatpush2.msra.mxu0 0.0
        %1299 = vmatprep.subr.mxu0 0.0
        %1300 = vmatpush2.msra.mxu0 0.0
        %1301 = vmatprep.subr.mxu0 0.0
        %1302 = vmatpush2.msra.mxu0 0.0
        %1303 = vmatprep.subr.mxu0 0.0
        %1304 = vmatpush2.msra.mxu0 0.0
        %1305 = vmatprep.subr.mxu0 0.0
        %1306 = vmatpush2.msra.mxu0 0.0
        %1307 = vmatprep.subr.mxu0 0.0
        %1308 = vmatpush2.msra.mxu0 0.0
        %1309 = vmatprep.subr.mxu0 0.0
        %1310 = vmatpush2.msra.mxu0 0.0
        %1311 = vmatprep.mubr.f32.mxu0 0.0
        %1312 = vmatmul.mubr.f32.gmra.mxu0 %v1245
        %v1313 = vpop.f32.mrf.mxu0
        %v1314 = vadd.f32 0.0, %v1313
        %v1315 = vpop.f32.mrf.mxu0
        %1316 = vdwg.mxu0
        %v1318 = vsel %vm642, %v1243, 0
        %1320 = vmatprep.subr.mxu0 0.0
        %1321 = vmatpush1.msra.mxu0 0.0
        %1322 = vmatprep.subr.mxu0 0.0
        %1323 = vmatpush1.msra.mxu0 0.0
        %1324 = vmatprep.subr.mxu0 0.0
        %1325 = vmatpush1.msra.mxu0 0.0
        %1326 = vmatprep.subr.mxu0 0.0
        %1327 = vmatpush1.msra.mxu0 0.0
        %1328 = vmatprep.subr.mxu0 0.0
        %1329 = vmatpush1.msra.mxu0 0.0
        %1330 = vmatprep.subr.mxu0 0.0
        %1331 = vmatpush1.msra.mxu0 0.0
        %1332 = vmatprep.subr.mxu0 0.0
        %1333 = vmatpush1.msra.mxu0 0.0
        %1334 = vmatprep.subr.mxu0 0.0
        %1335 = vmatpush1.msra.mxu0 0.0
        %1336 = vmatprep.subr.mxu0 0.0
        %1337 = vmatpush1.msra.mxu0 0.0
        %1338 = vmatprep.subr.mxu0 0.0
        %1339 = vmatpush1.msra.mxu0 0.0
        %1340 = vmatprep.subr.mxu0 0.0
        %1341 = vmatpush1.msra.mxu0 0.0
        %1342 = vmatprep.subr.mxu0 0.0
        %1343 = vmatpush1.msra.mxu0 0.0
        %1344 = vmatprep.subr.mxu0 0.0
        %1345 = vmatpush1.msra.mxu0 0.0
        %1346 = vmatprep.subr.mxu0 0.0
        %1347 = vmatpush1.msra.mxu0 0.0
        %1348 = vmatprep.subr.mxu0 0.0
        %1349 = vmatpush1.msra.mxu0 0.0
        %1350 = vmatprep.subr.mxu0 0.0
        %1351 = vmatpush1.msra.mxu0 %v1066
        %1352 = vmatprep.subr.mxu0 0.0
        %1353 = vmatpush2.msra.mxu0 0.0
        %1354 = vmatprep.subr.mxu0 0.0
        %1355 = vmatpush2.msra.mxu0 0.0
        %1356 = vmatprep.subr.mxu0 0.0
        %1357 = vmatpush2.msra.mxu0 0.0
        %1358 = vmatprep.subr.mxu0 0.0
        %1359 = vmatpush2.msra.mxu0 0.0
        %1360 = vmatprep.subr.mxu0 0.0
        %1361 = vmatpush2.msra.mxu0 0.0
        %1362 = vmatprep.subr.mxu0 0.0
        %1363 = vmatpush2.msra.mxu0 0.0
        %1364 = vmatprep.subr.mxu0 0.0
        %1365 = vmatpush2.msra.mxu0 0.0
        %1366 = vmatprep.subr.mxu0 0.0
        %1367 = vmatpush2.msra.mxu0 0.0
        %1368 = vmatprep.subr.mxu0 0.0
        %1369 = vmatpush2.msra.mxu0 0.0
        %1370 = vmatprep.subr.mxu0 0.0
        %1371 = vmatpush2.msra.mxu0 0.0
        %1372 = vmatprep.subr.mxu0 0.0
        %1373 = vmatpush2.msra.mxu0 0.0
        %1374 = vmatprep.subr.mxu0 0.0
        %1375 = vmatpush2.msra.mxu0 0.0
        %1376 = vmatprep.subr.mxu0 0.0
        %1377 = vmatpush2.msra.mxu0 0.0
        %1378 = vmatprep.subr.mxu0 0.0
        %1379 = vmatpush2.msra.mxu0 0.0
        %1380 = vmatprep.subr.mxu0 0.0
        %1381 = vmatpush2.msra.mxu0 0.0
        %1382 = vmatprep.subr.mxu0 0.0
        %1383 = vmatpush2.msra.mxu0 0.0
        %1384 = vmatprep.mubr.f32.mxu0 0.0
        %1385 = vmatmul.mubr.f32.gmra.mxu0 %v1318
        %v1386 = vpop.f32.mrf.mxu0
        %v1387 = vadd.f32 0.0, %v1386
        %v1388 = vpop.f32.mrf.mxu0
        %1389 = vdwg.mxu0
        %v1390 = vld [vmem:[#allocation9] sm:$0xff]
        %v1391 = vld [vmem:[#allocation9 + $0x8] sm:$0xff]
        %v1392 = vld [vmem:[#allocation9 + $0x10] sm:$0xff]
        %v1393 = vld [vmem:[#allocation9 + $0x18] sm:$0xff]
        %v1394 = vld [vmem:[#allocation9 + $0x20] sm:$0xff]
        %v1395 = vld [vmem:[#allocation9 + $0x28] sm:$0xff]
        %v1396 = vld [vmem:[#allocation9 + $0x30] sm:$0xff]
        %v1397 = vld [vmem:[#allocation9 + $0x38] sm:$0xff]
        %1398 = vrot.lane.b32.xlu0 %v984, 64
        %v1399 = vpop.permute.xlu0 %1398
        %1400 = vrot.lane.b32.xlu0 %v986, 64
        %v1401 = vpop.permute.xlu0 %1400
        %v1402 = vsel %vm1069, %v1399, 0
        %v1404 = vsel %vm1069, %v1401, 0
        %1406 = vmatprep.subr.mxu0 0.0
        %1407 = vmatpush1.xpose.msra.mxu0 0.0
        %1408 = vmatprep.subr.mxu0 0.0
        %1409 = vmatpush1.xpose.msra.mxu0 0.0
        %1410 = vmatprep.subr.mxu0 0.0
        %1411 = vmatpush1.xpose.msra.mxu0 0.0
        %1412 = vmatprep.subr.mxu0 0.0
        %1413 = vmatpush1.xpose.msra.mxu0 0.0
        %1414 = vmatprep.subr.mxu0 0.0
        %1415 = vmatpush1.xpose.msra.mxu0 0.0
        %1416 = vmatprep.subr.mxu0 0.0
        %1417 = vmatpush1.xpose.msra.mxu0 0.0
        %1418 = vmatprep.subr.mxu0 0.0
        %1419 = vmatpush1.xpose.msra.mxu0 0.0
        %1420 = vmatprep.subr.mxu0 0.0
        %1421 = vmatpush1.xpose.msra.mxu0 0.0
        %1422 = vmatprep.subr.mxu0 0.0
        %1423 = vmatpush1.xpose.msra.mxu0 0.0
        %1424 = vmatprep.subr.mxu0 0.0
        %1425 = vmatpush1.xpose.msra.mxu0 0.0
        %1426 = vmatprep.subr.mxu0 0.0
        %1427 = vmatpush1.xpose.msra.mxu0 0.0
        %1428 = vmatprep.subr.mxu0 0.0
        %1429 = vmatpush1.xpose.msra.mxu0 0.0
        %1430 = vmatprep.subr.mxu0 0.0
        %1431 = vmatpush1.xpose.msra.mxu0 0.0
        %1432 = vmatprep.subr.mxu0 0.0
        %1433 = vmatpush1.xpose.msra.mxu0 0.0
        %1434 = vmatprep.subr.mxu0 0.0
        %1435 = vmatpush1.xpose.msra.mxu0 0.0
        %1436 = vmatprep.subr.mxu0 0.0
        %1437 = vmatpush1.xpose.msra.mxu0 %v1404
        %1438 = vmatprep.subr.mxu0 0.0
        %1439 = vmatpush2.xpose.msra.mxu0 0.0
        %1440 = vmatprep.subr.mxu0 0.0
        %1441 = vmatpush2.xpose.msra.mxu0 0.0
        %1442 = vmatprep.subr.mxu0 0.0
        %1443 = vmatpush2.xpose.msra.mxu0 0.0
        %1444 = vmatprep.subr.mxu0 0.0
        %1445 = vmatpush2.xpose.msra.mxu0 0.0
        %1446 = vmatprep.subr.mxu0 0.0
        %1447 = vmatpush2.xpose.msra.mxu0 0.0
        %1448 = vmatprep.subr.mxu0 0.0
        %1449 = vmatpush2.xpose.msra.mxu0 0.0
        %1450 = vmatprep.subr.mxu0 0.0
        %1451 = vmatpush2.xpose.msra.mxu0 0.0
        %1452 = vmatprep.subr.mxu0 0.0
        %1453 = vmatpush2.xpose.msra.mxu0 0.0
        %1454 = vmatprep.subr.mxu0 0.0
        %1455 = vmatpush2.xpose.msra.mxu0 0.0
        %1456 = vmatprep.subr.mxu0 0.0
        %1457 = vmatpush2.xpose.msra.mxu0 0.0
        %1458 = vmatprep.subr.mxu0 0.0
        %1459 = vmatpush2.xpose.msra.mxu0 0.0
        %1460 = vmatprep.subr.mxu0 0.0
        %1461 = vmatpush2.xpose.msra.mxu0 0.0
        %1462 = vmatprep.subr.mxu0 0.0
        %1463 = vmatpush2.xpose.msra.mxu0 0.0
        %1464 = vmatprep.subr.mxu0 0.0
        %1465 = vmatpush2.xpose.msra.mxu0 0.0
        %1466 = vmatprep.subr.mxu0 0.0
        %1467 = vmatpush2.xpose.msra.mxu0 0.0
        %1468 = vmatprep.subr.mxu0 0.0
        %1469 = vmatpush2.xpose.msra.mxu0 0.0
        %1470 = vmatprep.mubr.f32.mxu0 0.0
        %1471 = vmatmul.mubr.f32.gmra.mxu0 %v1402
        %v1472 = vpop.f32.mrf.mxu0
        %v1473 = vadd.f32 0.0, %v1472
        %v1474 = vpop.f32.mrf.mxu0
        %1475 = vdwg.mxu0
        %1476 = vrot.lane.b32.xlu0 %v990, 64
        %v1477 = vpop.permute.xlu0 %1476
        %1478 = vrot.lane.b32.xlu0 %v992, 64
        %v1479 = vpop.permute.xlu0 %1478
        %v1480 = vsel %vm1069, %v1477, 0
        %v1482 = vsel %vm1069, %v1479, 0
        %1484 = vmatprep.subr.mxu0 0.0
        %1485 = vmatpush1.xpose.msra.mxu0 0.0
        %1486 = vmatprep.subr.mxu0 0.0
        %1487 = vmatpush1.xpose.msra.mxu0 0.0
        %1488 = vmatprep.subr.mxu0 0.0
        %1489 = vmatpush1.xpose.msra.mxu0 0.0
        %1490 = vmatprep.subr.mxu0 0.0
        %1491 = vmatpush1.xpose.msra.mxu0 0.0
        %1492 = vmatprep.subr.mxu0 0.0
        %1493 = vmatpush1.xpose.msra.mxu0 0.0
        %1494 = vmatprep.subr.mxu0 0.0
        %1495 = vmatpush1.xpose.msra.mxu0 0.0
        %1496 = vmatprep.subr.mxu0 0.0
        %1497 = vmatpush1.xpose.msra.mxu0 0.0
        %1498 = vmatprep.subr.mxu0 0.0
        %1499 = vmatpush1.xpose.msra.mxu0 0.0
        %1500 = vmatprep.subr.mxu0 0.0
        %1501 = vmatpush1.xpose.msra.mxu0 0.0
        %1502 = vmatprep.subr.mxu0 0.0
        %1503 = vmatpush1.xpose.msra.mxu0 0.0
        %1504 = vmatprep.subr.mxu0 0.0
        %1505 = vmatpush1.xpose.msra.mxu0 0.0
        %1506 = vmatprep.subr.mxu0 0.0
        %1507 = vmatpush1.xpose.msra.mxu0 0.0
        %1508 = vmatprep.subr.mxu0 0.0
        %1509 = vmatpush1.xpose.msra.mxu0 0.0
        %1510 = vmatprep.subr.mxu0 0.0
        %1511 = vmatpush1.xpose.msra.mxu0 0.0
        %1512 = vmatprep.subr.mxu0 0.0
        %1513 = vmatpush1.xpose.msra.mxu0 0.0
        %1514 = vmatprep.subr.mxu0 0.0
        %1515 = vmatpush1.xpose.msra.mxu0 %v1482
        %1516 = vmatprep.subr.mxu0 0.0
        %1517 = vmatpush2.xpose.msra.mxu0 0.0
        %1518 = vmatprep.subr.mxu0 0.0
        %1519 = vmatpush2.xpose.msra.mxu0 0.0
        %1520 = vmatprep.subr.mxu0 0.0
        %1521 = vmatpush2.xpose.msra.mxu0 0.0
        %1522 = vmatprep.subr.mxu0 0.0
        %1523 = vmatpush2.xpose.msra.mxu0 0.0
        %1524 = vmatprep.subr.mxu0 0.0
        %1525 = vmatpush2.xpose.msra.mxu0 0.0
        %1526 = vmatprep.subr.mxu0 0.0
        %1527 = vmatpush2.xpose.msra.mxu0 0.0
        %1528 = vmatprep.subr.mxu0 0.0
        %1529 = vmatpush2.xpose.msra.mxu0 0.0
        %1530 = vmatprep.subr.mxu0 0.0
        %1531 = vmatpush2.xpose.msra.mxu0 0.0
        %1532 = vmatprep.subr.mxu0 0.0
        %1533 = vmatpush2.xpose.msra.mxu0 0.0
        %1534 = vmatprep.subr.mxu0 0.0
        %1535 = vmatpush2.xpose.msra.mxu0 0.0
        %1536 = vmatprep.subr.mxu0 0.0
        %1537 = vmatpush2.xpose.msra.mxu0 0.0
        %1538 = vmatprep.subr.mxu0 0.0
        %1539 = vmatpush2.xpose.msra.mxu0 0.0
        %1540 = vmatprep.subr.mxu0 0.0
        %1541 = vmatpush2.xpose.msra.mxu0 0.0
        %1542 = vmatprep.subr.mxu0 0.0
        %1543 = vmatpush2.xpose.msra.mxu0 0.0
        %1544 = vmatprep.subr.mxu0 0.0
        %1545 = vmatpush2.xpose.msra.mxu0 0.0
        %1546 = vmatprep.subr.mxu0 0.0
        %1547 = vmatpush2.xpose.msra.mxu0 0.0
        %1548 = vmatprep.mubr.f32.mxu0 0.0
        %1549 = vmatmul.mubr.f32.gmra.mxu0 %v1480
        %v1550 = vpop.f32.mrf.mxu0
        %v1551 = vadd.f32 0.0, %v1550
        %v1552 = vpop.f32.mrf.mxu0
        %1553 = vdwg.mxu0
        %v1554 = vsel %vm642, %v1473, -inf
        %1555 = vmax.xlane.f32.xlu0 %v1554
        %v1556 = vpop.xlane.xlu0 %1555
        %v1557 = vsel %vm642, %v1551, -inf
        %1558 = vmax.xlane.f32.xlu0 %v1557
        %v1559 = vpop.xlane.xlu0 %1558
        %v1560 = vsub.f32 %v1473, %v1556
        %v1561 = vsub.f32 %v1551, %v1559
        %v1562 = vmul.f32 %v1560, 1.442695
        %v1563 = vpow.pop %v1562
        %v1564 = vmul.f32 %v1561, 1.442695
        %v1565 = vpow.pop %v1564
        %v1566 = vsel %vm642, %v1563, 0.0
        %1567 = vadd.xlane.f32.xlu0 %v1566
        %v1568 = vpop.xlane.xlu0 %1567
        %v1569 = vsel %vm642, %v1565, 0.0
        %1570 = vadd.xlane.f32.xlu0 %v1569
        %v1571 = vpop.xlane.xlu0 %1570
        %v1572 = vrcp.pop %v1568
        %v1573 = vrcp.pop %v1571
        %v1574 = vmul.f32 %v1563, %v1572
        %v1575 = vmul.f32 %v1565, %v1573
        %1577 = vrot.lane.b32.xlu0 %v1061, 64
        %v1578 = vpop.permute.xlu0 %1577
        %v1581 = vsel %vm642, %v1574, 0
        %1583 = vmatprep.subr.mxu0 0.0
        %1584 = vmatpush1.msra.mxu0 0.0
        %1585 = vmatprep.subr.mxu0 0.0
        %1586 = vmatpush1.msra.mxu0 0.0
        %1587 = vmatprep.subr.mxu0 0.0
        %1588 = vmatpush1.msra.mxu0 0.0
        %1589 = vmatprep.subr.mxu0 0.0
        %1590 = vmatpush1.msra.mxu0 0.0
        %1591 = vmatprep.subr.mxu0 0.0
        %1592 = vmatpush1.msra.mxu0 0.0
        %1593 = vmatprep.subr.mxu0 0.0
        %1594 = vmatpush1.msra.mxu0 0.0
        %1595 = vmatprep.subr.mxu0 0.0
        %1596 = vmatpush1.msra.mxu0 0.0
        %1597 = vmatprep.subr.mxu0 0.0
        %1598 = vmatpush1.msra.mxu0 0.0
        %1599 = vmatprep.subr.mxu0 0.0
        %1600 = vmatpush1.msra.mxu0 0.0
        %1601 = vmatprep.subr.mxu0 0.0
        %1602 = vmatpush1.msra.mxu0 0.0
        %1603 = vmatprep.subr.mxu0 0.0
        %1604 = vmatpush1.msra.mxu0 0.0
        %1605 = vmatprep.subr.mxu0 0.0
        %1606 = vmatpush1.msra.mxu0 0.0
        %1607 = vmatprep.subr.mxu0 0.0
        %1608 = vmatpush1.msra.mxu0 0.0
        %1609 = vmatprep.subr.mxu0 0.0
        %1610 = vmatpush1.msra.mxu0 0.0
        %1611 = vmatprep.subr.mxu0 0.0
        %1612 = vmatpush1.msra.mxu0 0.0
        %1613 = vmatprep.subr.mxu0 0.0
        %1614 = vmatpush1.msra.mxu0 %v1578
        %1615 = vmatprep.subr.mxu0 0.0
        %1616 = vmatpush2.msra.mxu0 0.0
        %1617 = vmatprep.subr.mxu0 0.0
        %1618 = vmatpush2.msra.mxu0 0.0
        %1619 = vmatprep.subr.mxu0 0.0
        %1620 = vmatpush2.msra.mxu0 0.0
        %1621 = vmatprep.subr.mxu0 0.0
        %1622 = vmatpush2.msra.mxu0 0.0
        %1623 = vmatprep.subr.mxu0 0.0
        %1624 = vmatpush2.msra.mxu0 0.0
        %1625 = vmatprep.subr.mxu0 0.0
        %1626 = vmatpush2.msra.mxu0 0.0
        %1627 = vmatprep.subr.mxu0 0.0
        %1628 = vmatpush2.msra.mxu0 0.0
        %1629 = vmatprep.subr.mxu0 0.0
        %1630 = vmatpush2.msra.mxu0 0.0
        %1631 = vmatprep.subr.mxu0 0.0
        %1632 = vmatpush2.msra.mxu0 0.0
        %1633 = vmatprep.subr.mxu0 0.0
        %1634 = vmatpush2.msra.mxu0 0.0
        %1635 = vmatprep.subr.mxu0 0.0
        %1636 = vmatpush2.msra.mxu0 0.0
        %1637 = vmatprep.subr.mxu0 0.0
        %1638 = vmatpush2.msra.mxu0 0.0
        %1639 = vmatprep.subr.mxu0 0.0
        %1640 = vmatpush2.msra.mxu0 0.0
        %1641 = vmatprep.subr.mxu0 0.0
        %1642 = vmatpush2.msra.mxu0 0.0
        %1643 = vmatprep.subr.mxu0 0.0
        %1644 = vmatpush2.msra.mxu0 0.0
        %1645 = vmatprep.subr.mxu0 0.0
        %1646 = vmatpush2.msra.mxu0 0.0
        %1647 = vmatprep.mubr.f32.mxu0 0.0
        %1648 = vmatmul.mubr.f32.gmra.mxu0 %v1581
        %v1649 = vpop.f32.mrf.mxu0
        %v1650 = vadd.f32 0.0, %v1649
        %v1651 = vpop.f32.mrf.mxu0
        %1652 = vdwg.mxu0
        %1654 = vrot.lane.b32.xlu0 %v1066, 64
        %v1655 = vpop.permute.xlu0 %1654
        %v1658 = vsel %vm642, %v1575, 0
        %1660 = vmatprep.subr.mxu0 0.0
        %1661 = vmatpush1.msra.mxu0 0.0
        %1662 = vmatprep.subr.mxu0 0.0
        %1663 = vmatpush1.msra.mxu0 0.0
        %1664 = vmatprep.subr.mxu0 0.0
        %1665 = vmatpush1.msra.mxu0 0.0
        %1666 = vmatprep.subr.mxu0 0.0
        %1667 = vmatpush1.msra.mxu0 0.0
        %1668 = vmatprep.subr.mxu0 0.0
        %1669 = vmatpush1.msra.mxu0 0.0
        %1670 = vmatprep.subr.mxu0 0.0
        %1671 = vmatpush1.msra.mxu0 0.0
        %1672 = vmatprep.subr.mxu0 0.0
        %1673 = vmatpush1.msra.mxu0 0.0
        %1674 = vmatprep.subr.mxu0 0.0
        %1675 = vmatpush1.msra.mxu0 0.0
        %1676 = vmatprep.subr.mxu0 0.0
        %1677 = vmatpush1.msra.mxu0 0.0
        %1678 = vmatprep.subr.mxu0 0.0
        %1679 = vmatpush1.msra.mxu0 0.0
        %1680 = vmatprep.subr.mxu0 0.0
        %1681 = vmatpush1.msra.mxu0 0.0
        %1682 = vmatprep.subr.mxu0 0.0
        %1683 = vmatpush1.msra.mxu0 0.0
        %1684 = vmatprep.subr.mxu0 0.0
        %1685 = vmatpush1.msra.mxu0 0.0
        %1686 = vmatprep.subr.mxu0 0.0
        %1687 = vmatpush1.msra.mxu0 0.0
        %1688 = vmatprep.subr.mxu0 0.0
        %1689 = vmatpush1.msra.mxu0 0.0
        %1690 = vmatprep.subr.mxu0 0.0
        %1691 = vmatpush1.msra.mxu0 %v1655
        %1692 = vmatprep.subr.mxu0 0.0
        %1693 = vmatpush2.msra.mxu0 0.0
        %1694 = vmatprep.subr.mxu0 0.0
        %1695 = vmatpush2.msra.mxu0 0.0
        %1696 = vmatprep.subr.mxu0 0.0
        %1697 = vmatpush2.msra.mxu0 0.0
        %1698 = vmatprep.subr.mxu0 0.0
        %1699 = vmatpush2.msra.mxu0 0.0
        %1700 = vmatprep.subr.mxu0 0.0
        %1701 = vmatpush2.msra.mxu0 0.0
        %1702 = vmatprep.subr.mxu0 0.0
        %1703 = vmatpush2.msra.mxu0 0.0
        %1704 = vmatprep.subr.mxu0 0.0
        %1705 = vmatpush2.msra.mxu0 0.0
        %1706 = vmatprep.subr.mxu0 0.0
        %1707 = vmatpush2.msra.mxu0 0.0
        %1708 = vmatprep.subr.mxu0 0.0
        %1709 = vmatpush2.msra.mxu0 0.0
        %1710 = vmatprep.subr.mxu0 0.0
        %1711 = vmatpush2.msra.mxu0 0.0
        %1712 = vmatprep.subr.mxu0 0.0
        %1713 = vmatpush2.msra.mxu0 0.0
        %1714 = vmatprep.subr.mxu0 0.0
        %1715 = vmatpush2.msra.mxu0 0.0
        %1716 = vmatprep.subr.mxu0 0.0
        %1717 = vmatpush2.msra.mxu0 0.0
        %1718 = vmatprep.subr.mxu0 0.0
        %1719 = vmatpush2.msra.mxu0 0.0
        %1720 = vmatprep.subr.mxu0 0.0
        %1721 = vmatpush2.msra.mxu0 0.0
        %1722 = vmatprep.subr.mxu0 0.0
        %1723 = vmatpush2.msra.mxu0 0.0
        %1724 = vmatprep.mubr.f32.mxu0 0.0
        %1725 = vmatmul.mubr.f32.gmra.mxu0 %v1658
        %v1726 = vpop.f32.mrf.mxu0
        %v1727 = vadd.f32 0.0, %v1726
        %v1728 = vpop.f32.mrf.mxu0
        %1729 = vdwg.mxu0
        %s1730 = scalar_lea.vmem [#allocation9], 64
        %v1731 = vld [vmem:[%s1730] sm:$0xff]
        %v1732 = vld [vmem:[%s1730 + $0x8] sm:$0xff]
        %v1733 = vld [vmem:[%s1730 + $0x10] sm:$0xff]
        %v1734 = vld [vmem:[%s1730 + $0x18] sm:$0xff]
        %v1735 = vld [vmem:[%s1730 + $0x20] sm:$0xff]
        %v1736 = vld [vmem:[%s1730 + $0x28] sm:$0xff]
        %v1737 = vld [vmem:[%s1730 + $0x30] sm:$0xff]
        %v1738 = vld [vmem:[%s1730 + $0x38] sm:$0xff]
        %v1740 = vsel %vm1069, %v1650, 0
        %v1743 = vsel %vm1069, %v1727, 0
        %1745 = vmatprep.subr.mxu0 0.0
        %1746 = vmatpush1.msra.mxu0 0.0
        %1747 = vmatprep.subr.mxu0 0.0
        %1748 = vmatpush1.msra.mxu0 0.0
        %1749 = vmatprep.subr.mxu0 0.0
        %1750 = vmatpush1.msra.mxu0 0.0
        %1751 = vmatprep.subr.mxu0 0.0
        %1752 = vmatpush1.msra.mxu0 0.0
        %1753 = vmatprep.subr.mxu0 0.0
        %1754 = vmatpush1.msra.mxu0 0.0
        %1755 = vmatprep.subr.mxu0 0.0
        %1756 = vmatpush1.msra.mxu0 0.0
        %1757 = vmatprep.subr.mxu0 0.0
        %1758 = vmatpush1.msra.mxu0 0.0
        %1759 = vmatprep.subr.mxu0 0.0
        %1760 = vmatpush1.msra.mxu0 0.0
        %1761 = vmatprep.subr.mxu0 0.0
        %1762 = vmatpush1.msra.mxu0 %v1738
        %1763 = vmatprep.subr.mxu0 0.0
        %1764 = vmatpush1.msra.mxu0 %v1737
        %1765 = vmatprep.subr.mxu0 0.0
        %1766 = vmatpush1.msra.mxu0 %v1736
        %1767 = vmatprep.subr.mxu0 0.0
        %1768 = vmatpush1.msra.mxu0 %v1735
        %1769 = vmatprep.subr.mxu0 0.0
        %1770 = vmatpush1.msra.mxu0 %v1734
        %1771 = vmatprep.subr.mxu0 0.0
        %1772 = vmatpush1.msra.mxu0 %v1733
        %1773 = vmatprep.subr.mxu0 0.0
        %1774 = vmatpush1.msra.mxu0 %v1732
        %1775 = vmatprep.subr.mxu0 0.0
        %1776 = vmatpush1.msra.mxu0 %v1731
        %1777 = vmatprep.subr.mxu0 0.0
        %1778 = vmatpush2.msra.mxu0 0.0
        %1779 = vmatprep.subr.mxu0 0.0
        %1780 = vmatpush2.msra.mxu0 0.0
        %1781 = vmatprep.subr.mxu0 0.0
        %1782 = vmatpush2.msra.mxu0 0.0
        %1783 = vmatprep.subr.mxu0 0.0
        %1784 = vmatpush2.msra.mxu0 0.0
        %1785 = vmatprep.subr.mxu0 0.0
        %1786 = vmatpush2.msra.mxu0 0.0
        %1787 = vmatprep.subr.mxu0 0.0
        %1788 = vmatpush2.msra.mxu0 0.0
        %1789 = vmatprep.subr.mxu0 0.0
        %1790 = vmatpush2.msra.mxu0 0.0
        %1791 = vmatprep.subr.mxu0 0.0
        %1792 = vmatpush2.msra.mxu0 0.0
        %1793 = vmatprep.subr.mxu0 0.0
        %1794 = vmatpush2.msra.mxu0 0.0
        %1795 = vmatprep.subr.mxu0 0.0
        %1796 = vmatpush2.msra.mxu0 0.0
        %1797 = vmatprep.subr.mxu0 0.0
        %1798 = vmatpush2.msra.mxu0 0.0
        %1799 = vmatprep.subr.mxu0 0.0
        %1800 = vmatpush2.msra.mxu0 0.0
        %1801 = vmatprep.subr.mxu0 0.0
        %1802 = vmatpush2.msra.mxu0 0.0
        %1803 = vmatprep.subr.mxu0 0.0
        %1804 = vmatpush2.msra.mxu0 0.0
        %1805 = vmatprep.subr.mxu0 0.0
        %1806 = vmatpush2.msra.mxu0 0.0
        %1807 = vmatprep.subr.mxu0 0.0
        %1808 = vmatpush2.msra.mxu0 0.0
        %1809 = vmatprep.mubr.f32.mxu0 0.0
        %1810 = vmatmul.mubr.f32.gmra.mxu0 %v1740
        %v1811 = vpop.f32.mrf.mxu0
        %v1812 = vadd.f32 0.0, %v1811
        %v1813 = vpop.f32.mrf.mxu0
        %1814 = vmatprep.mubr.f32.mxu0 0.0
        %1815 = vmatmul.mubr.f32.gmra.mxu0 %v1743
        %v1816 = vpop.f32.mrf.mxu0
        %v1817 = vadd.f32 0.0, %v1816
        %v1818 = vpop.f32.mrf.mxu0
        %1819 = vdwg.mxu0
        %v1821 = vsel %vm1069, %v1314, 0
        %v1824 = vsel %vm1069, %v1387, 0
        %1826 = vmatprep.subr.mxu0 0.0
        %1827 = vmatpush1.msra.mxu0 0.0
        %1828 = vmatprep.subr.mxu0 0.0
        %1829 = vmatpush1.msra.mxu0 0.0
        %1830 = vmatprep.subr.mxu0 0.0
        %1831 = vmatpush1.msra.mxu0 0.0
        %1832 = vmatprep.subr.mxu0 0.0
        %1833 = vmatpush1.msra.mxu0 0.0
        %1834 = vmatprep.subr.mxu0 0.0
        %1835 = vmatpush1.msra.mxu0 0.0
        %1836 = vmatprep.subr.mxu0 0.0
        %1837 = vmatpush1.msra.mxu0 0.0
        %1838 = vmatprep.subr.mxu0 0.0
        %1839 = vmatpush1.msra.mxu0 0.0
        %1840 = vmatprep.subr.mxu0 0.0
        %1841 = vmatpush1.msra.mxu0 0.0
        %1842 = vmatprep.subr.mxu0 0.0
        %1843 = vmatpush1.msra.mxu0 %v1397
        %1844 = vmatprep.subr.mxu0 0.0
        %1845 = vmatpush1.msra.mxu0 %v1396
        %1846 = vmatprep.subr.mxu0 0.0
        %1847 = vmatpush1.msra.mxu0 %v1395
        %1848 = vmatprep.subr.mxu0 0.0
        %1849 = vmatpush1.msra.mxu0 %v1394
        %1850 = vmatprep.subr.mxu0 0.0
        %1851 = vmatpush1.msra.mxu0 %v1393
        %1852 = vmatprep.subr.mxu0 0.0
        %1853 = vmatpush1.msra.mxu0 %v1392
        %1854 = vmatprep.subr.mxu0 0.0
        %1855 = vmatpush1.msra.mxu0 %v1391
        %1856 = vmatprep.subr.mxu0 0.0
        %1857 = vmatpush1.msra.mxu0 %v1390
        %1858 = vmatprep.subr.mxu0 0.0
        %1859 = vmatpush2.msra.mxu0 0.0
        %1860 = vmatprep.subr.mxu0 0.0
        %1861 = vmatpush2.msra.mxu0 0.0
        %1862 = vmatprep.subr.mxu0 0.0
        %1863 = vmatpush2.msra.mxu0 0.0
        %1864 = vmatprep.subr.mxu0 0.0
        %1865 = vmatpush2.msra.mxu0 0.0
        %1866 = vmatprep.subr.mxu0 0.0
        %1867 = vmatpush2.msra.mxu0 0.0
        %1868 = vmatprep.subr.mxu0 0.0
        %1869 = vmatpush2.msra.mxu0 0.0
        %1870 = vmatprep.subr.mxu0 0.0
        %1871 = vmatpush2.msra.mxu0 0.0
        %1872 = vmatprep.subr.mxu0 0.0
        %1873 = vmatpush2.msra.mxu0 0.0
        %1874 = vmatprep.subr.mxu0 0.0
        %1875 = vmatpush2.msra.mxu0 0.0
        %1876 = vmatprep.subr.mxu0 0.0
        %1877 = vmatpush2.msra.mxu0 0.0
        %1878 = vmatprep.subr.mxu0 0.0
        %1879 = vmatpush2.msra.mxu0 0.0
        %1880 = vmatprep.subr.mxu0 0.0
        %1881 = vmatpush2.msra.mxu0 0.0
        %1882 = vmatprep.subr.mxu0 0.0
        %1883 = vmatpush2.msra.mxu0 0.0
        %1884 = vmatprep.subr.mxu0 0.0
        %1885 = vmatpush2.msra.mxu0 0.0
        %1886 = vmatprep.subr.mxu0 0.0
        %1887 = vmatpush2.msra.mxu0 0.0
        %1888 = vmatprep.subr.mxu0 0.0
        %1889 = vmatpush2.msra.mxu0 0.0
        %1890 = vmatprep.mubr.f32.mxu0 0.0
        %1891 = vmatmul.mubr.f32.gmra.mxu0 %v1821
        %v1892 = vpop.f32.mrf.mxu0
        %v1893 = vadd.f32 %v1812, %v1892
        %v1894 = vpop.f32.mrf.mxu0
        %1895 = vmatprep.mubr.f32.mxu0 0.0
        %1896 = vmatmul.mubr.f32.gmra.mxu0 %v1824
        %v1897 = vpop.f32.mrf.mxu0
        %v1898 = vadd.f32 %v1817, %v1897
        %v1899 = vpop.f32.mrf.mxu0
        %1900 = vdwg.mxu0
        %v1901 = vld [vmem:[%s8] sm:$0x1]
        %v1903 = vlaneseq
        %v1904 = vshrl.u32 %v1903, 7
        %v1905 = vsub.s32 0, %v1904
        %v1906 = vrot.slane %v1901, %v1905
        %v1908 = vadd.f32 %v1893, %v1906
        %v1909 = vadd.f32 %v1898, %v1906
        %v1910 = vadd.f32 %v1908, %v638
        %v1911 = vadd.f32 %v1909, %v639
        %v1912 = vld [vmem:[%s9] sm:$0x1]
        %v1913 = vld [vmem:[%s10] sm:$0x1]
        %1914 = vadd.xlane.f32.xlu0 %v1910
        %v1915 = vpop.xlane.xlu0 %1914
        %1916 = vadd.xlane.f32.xlu0 %v1911
        %v1917 = vpop.xlane.xlu0 %1916
        %v1918 = vmul.f32 %v1915, 0.03125
        %v1919 = vmul.f32 %v1917, 0.03125
        %v1920 = vsub.f32 %v1910, %v1918
        %v1921 = vsub.f32 %v1911, %v1919
        %v1922 = vmul.f32 %v1920, %v1920
        %v1923 = vmul.f32 %v1921, %v1921
        %1924 = vadd.xlane.f32.xlu0 %v1922
        %v1925 = vpop.xlane.xlu0 %1924
        %1926 = vadd.xlane.f32.xlu0 %v1923
        %v1927 = vpop.xlane.xlu0 %1926
        %v1928 = vmul.f32 %v1918, %v1918
        %v1929 = vmul.f32 %v1919, %v1919
        %v1930 = vmul.f32 %v1928, 96.0
        %v1931 = vmul.f32 %v1929, 96.0
        %v1932 = vsub.f32 %v1925, %v1930
        %v1933 = vsub.f32 %v1927, %v1931
        %v1934 = vmax.f32 %v1932, 0.0
        %v1935 = vmax.f32 %v1933, 0.0
        %v1936 = vmul.f32 %v1934, 0.03125
        %v1937 = vmul.f32 %v1935, 0.03125
        %v1938 = vadd.f32 %v1936, 1e-12
        %v1939 = vadd.f32 %v1937, 1e-12
        %v1940 = vrsqrt.pop %v1938
        %v1941 = vrsqrt.pop %v1939
        %v1942 = vmul.f32 %v1920, %v1940
        %v1943 = vmul.f32 %v1921, %v1941
        %v1945 = vlaneseq
        %v1946 = vshrl.u32 %v1945, 7
        %v1947 = vsub.s32 0, %v1946
        %v1948 = vrot.slane %v1912, %v1947
        %v1950 = vmul.f32 %v1942, %v1948
        %v1951 = vmul.f32 %v1943, %v1948
        %v1953 = vlaneseq
        %v1954 = vshrl.u32 %v1953, 7
        %v1955 = vsub.s32 0, %v1954
        %v1956 = vrot.slane %v1913, %v1955
        %v1958 = vadd.f32 %v1950, %v1956
        %v1959 = vadd.f32 %v1951, %v1956
        %v1960 = vmul.f32 %v850, 0.7
        %v1961 = vmul.f32 %v851, 0.7
        %v1962 = vmul.f32 %v1958, 0.3
        %v1963 = vmul.f32 %v1959, 0.3
        %v1964 = vadd.f32 %v1960, %v1962
        %v1965 = vadd.f32 %v1961, %v1963
        %v1966 = vld [vmem:[#allocation11] sm:$0xff]
        %v1967 = vld [vmem:[#allocation11 + $0x8] sm:$0xff]
        %v1968 = vld [vmem:[#allocation11 + $0x10] sm:$0xff]
        %v1969 = vld [vmem:[#allocation11 + $0x18] sm:$0xff]
        %v1970 = vld [vmem:[#allocation11 + $0x20] sm:$0xff]
        %v1971 = vld [vmem:[#allocation11 + $0x28] sm:$0xff]
        %v1972 = vld [vmem:[#allocation11 + $0x30] sm:$0xff]
        %v1973 = vld [vmem:[#allocation11 + $0x38] sm:$0xff]
        %v1974 = vld [vmem:[#allocation11 + $0x40] sm:$0xff]
        %v1975 = vld [vmem:[#allocation11 + $0x48] sm:$0xff]
        %v1976 = vld [vmem:[#allocation11 + $0x50] sm:$0xff]
        %v1977 = vld [vmem:[#allocation11 + $0x58] sm:$0xff]
        %v1978 = vld [vmem:[#allocation11 + $0x60] sm:$0xff]
        %v1979 = vld [vmem:[#allocation11 + $0x68] sm:$0xff]
        %v1980 = vld [vmem:[#allocation11 + $0x70] sm:$0xff]
        %v1981 = vld [vmem:[#allocation11 + $0x78] sm:$0xff]
        %v1982 = vld [vmem:[%s12] sm:$0x1]
        %v1984 = vlaneseq
        %v1985 = vshrl.u32 %v1984, 7
        %v1986 = vsub.s32 0, %v1985
        %v1987 = vrot.slane %v1982, %v1986
        %1989 = vmatprep.subr.mxu0 0.0
        %1990 = vmatpush1.msra.mxu0 %v1981
        %1991 = vmatprep.subr.mxu0 0.0
        %1992 = vmatpush1.msra.mxu0 %v1980
        %1993 = vmatprep.subr.mxu0 0.0
        %1994 = vmatpush1.msra.mxu0 %v1979
        %1995 = vmatprep.subr.mxu0 0.0
        %1996 = vmatpush1.msra.mxu0 %v1978
        %1997 = vmatprep.subr.mxu0 0.0
        %1998 = vmatpush1.msra.mxu0 %v1977
        %1999 = vmatprep.subr.mxu0 0.0
        %2000 = vmatpush1.msra.mxu0 %v1976
        %2001 = vmatprep.subr.mxu0 0.0
        %2002 = vmatpush1.msra.mxu0 %v1975
        %2003 = vmatprep.subr.mxu0 0.0
        %2004 = vmatpush1.msra.mxu0 %v1974
        %2005 = vmatprep.subr.mxu0 0.0
        %2006 = vmatpush1.msra.mxu0 %v1973
        %2007 = vmatprep.subr.mxu0 0.0
        %2008 = vmatpush1.msra.mxu0 %v1972
        %2009 = vmatprep.subr.mxu0 0.0
        %2010 = vmatpush1.msra.mxu0 %v1971
        %2011 = vmatprep.subr.mxu0 0.0
        %2012 = vmatpush1.msra.mxu0 %v1970
        %2013 = vmatprep.subr.mxu0 0.0
        %2014 = vmatpush1.msra.mxu0 %v1969
        %2015 = vmatprep.subr.mxu0 0.0
        %2016 = vmatpush1.msra.mxu0 %v1968
        %2017 = vmatprep.subr.mxu0 0.0
        %2018 = vmatpush1.msra.mxu0 %v1967
        %2019 = vmatprep.subr.mxu0 0.0
        %2020 = vmatpush1.msra.mxu0 %v1966
        %2021 = vmatprep.subr.mxu0 0.0
        %2022 = vmatpush2.msra.mxu0 0.0
        %2023 = vmatprep.subr.mxu0 0.0
        %2024 = vmatpush2.msra.mxu0 0.0
        %2025 = vmatprep.subr.mxu0 0.0
        %2026 = vmatpush2.msra.mxu0 0.0
        %2027 = vmatprep.subr.mxu0 0.0
        %2028 = vmatpush2.msra.mxu0 0.0
        %2029 = vmatprep.subr.mxu0 0.0
        %2030 = vmatpush2.msra.mxu0 0.0
        %2031 = vmatprep.subr.mxu0 0.0
        %2032 = vmatpush2.msra.mxu0 0.0
        %2033 = vmatprep.subr.mxu0 0.0
        %2034 = vmatpush2.msra.mxu0 0.0
        %2035 = vmatprep.subr.mxu0 0.0
        %2036 = vmatpush2.msra.mxu0 0.0
        %2037 = vmatprep.subr.mxu0 0.0
        %2038 = vmatpush2.msra.mxu0 0.0
        %2039 = vmatprep.subr.mxu0 0.0
        %2040 = vmatpush2.msra.mxu0 0.0
        %2041 = vmatprep.subr.mxu0 0.0
        %2042 = vmatpush2.msra.mxu0 0.0
        %2043 = vmatprep.subr.mxu0 0.0
        %2044 = vmatpush2.msra.mxu0 0.0
        %2045 = vmatprep.subr.mxu0 0.0
        %2046 = vmatpush2.msra.mxu0 0.0
        %2047 = vmatprep.subr.mxu0 0.0
        %2048 = vmatpush2.msra.mxu0 0.0
        %2049 = vmatprep.subr.mxu0 0.0
        %2050 = vmatpush2.msra.mxu0 0.0
        %2051 = vmatprep.subr.mxu0 0.0
        %2052 = vmatpush2.msra.mxu0 0.0
        %2053 = vmatprep.mubr.f32.mxu0 0.0
        %2054 = vmatmul.mubr.f32.gmra.mxu0 %v1964
        %v2055 = vpop.f32.mrf.mxu0
        %v2056 = vadd.f32 %v1987, %v2055
        %v2057 = vpop.f32.mrf.mxu0
        %2058 = vmatprep.mubr.f32.mxu0 0.0
        %2059 = vmatmul.mubr.f32.gmra.mxu0 %v1965
        %v2060 = vpop.f32.mrf.mxu0
        %v2061 = vadd.f32 %v1987, %v2060
        %v2062 = vpop.f32.mrf.mxu0
        %2063 = vdwg.mxu0
        %v2064 = vmul.f32 %v2056, 0.5
        %v2065 = vmul.f32 %v2061, 0.5
        %v2066 = vrcp.pop 1.4142135
        %v2067 = vmul.f32 %v2056, %v2066
        %v2068 = vmul.f32 %v2061, %v2066
        %v2069 = verf.f32.pop %v2067
        %v2070 = verf.f32.pop %v2068
        %v2071 = vadd.f32 %v2069, 1.0
        %v2072 = vadd.f32 %v2070, 1.0
        %v2073 = vmul.f32 %v2064, %v2071
        %v2074 = vmul.f32 %v2065, %v2072
        %v2075 = vld [vmem:[#allocation12] sm:$0xff]
        %v2076 = vld [vmem:[#allocation12 + $0x8] sm:$0xff]
        %v2077 = vld [vmem:[#allocation12 + $0x10] sm:$0xff]
        %v2078 = vld [vmem:[#allocation12 + $0x18] sm:$0xff]
        %v2079 = vld [vmem:[#allocation12 + $0x20] sm:$0xff]
        %v2080 = vld [vmem:[#allocation12 + $0x28] sm:$0xff]
        %v2081 = vld [vmem:[#allocation12 + $0x30] sm:$0xff]
        %v2082 = vld [vmem:[#allocation12 + $0x38] sm:$0xff]
        %v2083 = vld [vmem:[#allocation12 + $0x40] sm:$0xff]
        %v2084 = vld [vmem:[#allocation12 + $0x48] sm:$0xff]
        %v2085 = vld [vmem:[#allocation12 + $0x50] sm:$0xff]
        %v2086 = vld [vmem:[#allocation12 + $0x58] sm:$0xff]
        %v2087 = vld [vmem:[#allocation12 + $0x60] sm:$0xff]
        %v2088 = vld [vmem:[#allocation12 + $0x68] sm:$0xff]
        %v2089 = vld [vmem:[#allocation12 + $0x70] sm:$0xff]
        %v2090 = vld [vmem:[#allocation12 + $0x78] sm:$0xff]
        %v2091 = vld [vmem:[%s14] sm:$0x1]
        %v2093 = vlaneseq
        %v2094 = vshrl.u32 %v2093, 7
        %v2095 = vsub.s32 0, %v2094
        %v2096 = vrot.slane %v2091, %v2095
        %2098 = vmatprep.subr.mxu0 0.0
        %2099 = vmatpush1.msra.mxu0 %v2090
        %2100 = vmatprep.subr.mxu0 0.0
        %2101 = vmatpush1.msra.mxu0 %v2089
        %2102 = vmatprep.subr.mxu0 0.0
        %2103 = vmatpush1.msra.mxu0 %v2088
        %2104 = vmatprep.subr.mxu0 0.0
        %2105 = vmatpush1.msra.mxu0 %v2087
        %2106 = vmatprep.subr.mxu0 0.0
        %2107 = vmatpush1.msra.mxu0 %v2086
        %2108 = vmatprep.subr.mxu0 0.0
        %2109 = vmatpush1.msra.mxu0 %v2085
        %2110 = vmatprep.subr.mxu0 0.0
        %2111 = vmatpush1.msra.mxu0 %v2084
        %2112 = vmatprep.subr.mxu0 0.0
        %2113 = vmatpush1.msra.mxu0 %v2083
        %2114 = vmatprep.subr.mxu0 0.0
        %2115 = vmatpush1.msra.mxu0 %v2082
        %2116 = vmatprep.subr.mxu0 0.0
        %2117 = vmatpush1.msra.mxu0 %v2081
        %2118 = vmatprep.subr.mxu0 0.0
        %2119 = vmatpush1.msra.mxu0 %v2080
        %2120 = vmatprep.subr.mxu0 0.0
        %2121 = vmatpush1.msra.mxu0 %v2079
        %2122 = vmatprep.subr.mxu0 0.0
        %2123 = vmatpush1.msra.mxu0 %v2078
        %2124 = vmatprep.subr.mxu0 0.0
        %2125 = vmatpush1.msra.mxu0 %v2077
        %2126 = vmatprep.subr.mxu0 0.0
        %2127 = vmatpush1.msra.mxu0 %v2076
        %2128 = vmatprep.subr.mxu0 0.0
        %2129 = vmatpush1.msra.mxu0 %v2075
        %2130 = vmatprep.subr.mxu0 0.0
        %2131 = vmatpush2.msra.mxu0 0.0
        %2132 = vmatprep.subr.mxu0 0.0
        %2133 = vmatpush2.msra.mxu0 0.0
        %2134 = vmatprep.subr.mxu0 0.0
        %2135 = vmatpush2.msra.mxu0 0.0
        %2136 = vmatprep.subr.mxu0 0.0
        %2137 = vmatpush2.msra.mxu0 0.0
        %2138 = vmatprep.subr.mxu0 0.0
        %2139 = vmatpush2.msra.mxu0 0.0
        %2140 = vmatprep.subr.mxu0 0.0
        %2141 = vmatpush2.msra.mxu0 0.0
        %2142 = vmatprep.subr.mxu0 0.0
        %2143 = vmatpush2.msra.mxu0 0.0
        %2144 = vmatprep.subr.mxu0 0.0
        %2145 = vmatpush2.msra.mxu0 0.0
        %2146 = vmatprep.subr.mxu0 0.0
        %2147 = vmatpush2.msra.mxu0 0.0
        %2148 = vmatprep.subr.mxu0 0.0
        %2149 = vmatpush2.msra.mxu0 0.0
        %2150 = vmatprep.subr.mxu0 0.0
        %2151 = vmatpush2.msra.mxu0 0.0
        %2152 = vmatprep.subr.mxu0 0.0
        %2153 = vmatpush2.msra.mxu0 0.0
        %2154 = vmatprep.subr.mxu0 0.0
        %2155 = vmatpush2.msra.mxu0 0.0
        %2156 = vmatprep.subr.mxu0 0.0
        %2157 = vmatpush2.msra.mxu0 0.0
        %2158 = vmatprep.subr.mxu0 0.0
        %2159 = vmatpush2.msra.mxu0 0.0
        %2160 = vmatprep.subr.mxu0 0.0
        %2161 = vmatpush2.msra.mxu0 0.0
        %2162 = vmatprep.mubr.f32.mxu0 0.0
        %2163 = vmatmul.mubr.f32.gmra.mxu0 %v2073
        %v2164 = vpop.f32.mrf.mxu0
        %v2165 = vadd.f32 %v2096, %v2164
        %v2166 = vpop.f32.mrf.mxu0
        %2167 = vmatprep.mubr.f32.mxu0 0.0
        %2168 = vmatmul.mubr.f32.gmra.mxu0 %v2074
        %v2169 = vpop.f32.mrf.mxu0
        %v2170 = vadd.f32 %v2096, %v2169
        %v2171 = vpop.f32.mrf.mxu0
        %2172 = vdwg.mxu0
        %v2173 = vadd.f32 %v2165, %v1964
        %v2174 = vadd.f32 %v2170, %v1965
        %v2175 = vld [vmem:[%s15] sm:$0x1]
        %v2176 = vld [vmem:[%s16] sm:$0x1]
        %2177 = vadd.xlane.f32.xlu0 %v2173
        %v2178 = vpop.xlane.xlu0 %2177
        %2179 = vadd.xlane.f32.xlu0 %v2174
        %v2180 = vpop.xlane.xlu0 %2179
        %v2181 = vmul.f32 %v2178, 0.03125
        %v2182 = vmul.f32 %v2180, 0.03125
        %v2183 = vsub.f32 %v2173, %v2181
        %v2184 = vsub.f32 %v2174, %v2182
        %v2185 = vmul.f32 %v2183, %v2183
        %v2186 = vmul.f32 %v2184, %v2184
        %2187 = vadd.xlane.f32.xlu0 %v2185
        %v2188 = vpop.xlane.xlu0 %2187
        %2189 = vadd.xlane.f32.xlu0 %v2186
        %v2190 = vpop.xlane.xlu0 %2189
        %v2191 = vmul.f32 %v2181, %v2181
        %v2192 = vmul.f32 %v2182, %v2182
        %v2193 = vmul.f32 %v2191, 96.0
        %v2194 = vmul.f32 %v2192, 96.0
        %v2195 = vsub.f32 %v2188, %v2193
        %v2196 = vsub.f32 %v2190, %v2194
        %v2197 = vmax.f32 %v2195, 0.0
        %v2198 = vmax.f32 %v2196, 0.0
        %v2199 = vmul.f32 %v2197, 0.03125
        %v2200 = vmul.f32 %v2198, 0.03125
        %v2201 = vadd.f32 %v2199, 1e-12
        %v2202 = vadd.f32 %v2200, 1e-12
        %v2203 = vrsqrt.pop %v2201
        %v2204 = vrsqrt.pop %v2202
        %v2205 = vmul.f32 %v2183, %v2203
        %v2206 = vmul.f32 %v2184, %v2204
        %v2208 = vlaneseq
        %v2209 = vshrl.u32 %v2208, 7
        %v2210 = vsub.s32 0, %v2209
        %v2211 = vrot.slane %v2175, %v2210
        %v2213 = vmul.f32 %v2205, %v2211
        %v2214 = vmul.f32 %v2206, %v2211
        %v2216 = vlaneseq
        %v2217 = vshrl.u32 %v2216, 7
        %v2218 = vsub.s32 0, %v2217
        %v2219 = vrot.slane %v2176, %v2218
        %v2221 = vadd.f32 %v2213, %v2219
        %v2222 = vadd.f32 %v2214, %v2219
        %2223 = vst [vmem:[#allocation2] sm:$0xff] %v2221
        %2224 = vst [vmem:[#allocation2 + $0x8] sm:$0xff] %v2222
        %p2225 = scmp.eq.s32.totalorder %s38, 1
        // Predicated region
        $region117: #{tpu_custom_call.1} parent=87 // pred_check
          %p2226 = pneg %p2225
        $region118: #{tpu_custom_call.1} parent=87 // pred_check_branch
          %2228 = sbr.rel (%p2226) target = $region120
        $region119: #{tpu_custom_call.1} parent=87 // pred_region
          %2229 = vst [vmem:[#allocation14] sm:$0xff] %v2221
          %2230 = vst [vmem:[#allocation14 + $0x8] sm:$0xff] %v2222
        $region120: #{tpu_custom_call.1} parent=87 // pred_fallthru
          _
        // Predicated region
        $region121: #{tpu_custom_call.1} parent=87 // pred_check
          %p2231 = pneg %p425
        $region122: #{tpu_custom_call.1} parent=87 // pred_check_branch
          %2233 = sbr.rel (%p2231) target = $region124
        $region123: #{tpu_custom_call.1} parent=87 // pred_region
          %s2234 = smul.u32 2, %s37
          %s2236 = ssub.s32 256, 256
          %2237 = vsyncadd [#allocation5], %s2236
          %s2238 = smul.addr %s2234, 128
          %s2239 = scalar_lea.hbm %s17, %s2238
          %s2240 = sshll.u32 [#allocation14], 4
          %s2241 = int_to_ptr.vmem [resolvable:$true] %s2240
          %2246 = dma.vmem_to_hbm [thread:$0]  %s2241, 256, %s2239, [#allocation5], 128, 128, 8
        $region124: #{tpu_custom_call.1} parent=87 // pred_fallthru
          _
        // Predicated region
        $region125: #{tpu_custom_call.1} parent=87 // pred_check
          %p2247 = pneg %p425
        $region126: #{tpu_custom_call.1} parent=87 // pred_check_branch
          %2249 = sbr.rel (%p2247) target = $region128
        $region127: #{tpu_custom_call.1} parent=87 // pred_region
          %2250 = dma.done [#allocation5], 256
        $region128: #{tpu_custom_call.1} parent=87 // pred_fallthru
          _
      $region88: #{tpu_custom_call.1} parent=5 // pred_fallthru
        _
      %p2251 = scmp.le.s32.totalorder 2, %s28
      // Predicated region
      $region129: #{tpu_custom_call.1} parent=5 // pred_check
        %p2252 = pneg %p2251
      $region130: #{tpu_custom_call.1} parent=5 // pred_check_branch
        %2254 = sbr.rel (%p2252) target = $region132
      $region131: #{tpu_custom_call.1} parent=5 // pred_region
        %s2255 = ssub.s32 %s28, 2
      $region132: #{tpu_custom_call.1} parent=5 // pred_fallthru
        _
    $region6: #{tpu_custom_call.1} parent=1 // loop_footer
      %s32 = sadd.s32 1, %s28
    $region7: #{tpu_custom_call.1} parent=1 // loop_footer_branch
      %27 = sbr.rel target = $region3
    $region8: #{tpu_custom_call.1} parent=1 // loop_exit
      _
    %2256 = vsyncpa [#allocation4], 1
    %s2257 = scalar_lea.sflag [#allocation4], 1
    %2258 = vsyncpa %s2257, 1
    %2259 = vsyncpa [#allocation7], 1
    %2260 = vsyncpa [#allocation10], 1
    %2261 = vsyncpa [#allocation13], 1
    %2262 = vsyncpa [#allocation5], 1
    %s2263 = scalar_lea.sflag [#allocation5], 1
    %2264 = vsyncpa %s2263, 1

</llo_original>
